<compile_context>
chip_gen: v7x
topology: tpu7x:2x2x1
jax: 0.10.0
libtpu: 0.0.40
codegen_flags: <defaults>
</compile_context>

<pallas_src>
import jax
import jax.numpy as jnp
from jax.experimental import pallas as pl
from jax.experimental.pallas import tpu as pltpu

NEG_SLOPE = 0.2


# ------------------------------ kernel body ---------------------------------

def _make_decoder_kernel(plan, *, seq_len, time_tile, n_conv, halo_pad,
                         compute_dtype):
    """Builds the fused decoder kernel.

    plan:      static op list, each ("res",) or ("conv", apply_lrelu).
    seq_len:   true sequence length T (for boundary masking).
    time_tile: TT output rows produced per grid step.
    n_conv:    total convs in the chain (= per-side halo actually consumed).
    halo_pad:  per-side halo rows provided in the window (>= n_conv, mult of 8).
    """
    L, Lp, TT, T = n_conv, halo_pad, time_tile, seq_len

    def kernel(*refs):
        x_ref, halo_ref = refs[0], refs[1]
        o_ref, win_ref = refs[-2], refs[-1]
        wb = refs[2:-2]                          # (w0, b0, w1, b1, ...)

        # Absolute time index of window row 0 (negative for the first tile).
        row0 = pl.program_id(1) * TT - Lp

        # ---- assemble the haloed window in VMEM (all stores 8-row aligned) -
        win_ref[0:Lp, :] = halo_ref[0, 0, 0:Lp, :]
        win_ref[Lp:Lp + TT, :] = x_ref[0]
        win_ref[Lp + TT:Lp + TT + Lp, :] = halo_ref[0, 0, Lp:2 * Lp, :]
        h = win_ref[...]

        def conv3(v, w_ref, b_ref):
            # Conv1d(k=3, s=1, p=1) on a window: three shifted MXU matmuls,
            # f32 accumulation, fused bias.  Output has 2 fewer rows.
            r = v.shape[0]
            acc = jnp.dot(v[0:r - 2, :], w_ref[0],
                          preferred_element_type=jnp.float32)
            acc = acc + jnp.dot(v[1:r - 1, :], w_ref[1],
                                preferred_element_type=jnp.float32)
            acc = acc + jnp.dot(v[2:r, :], w_ref[2],
                                preferred_element_type=jnp.float32)
            return acc + b_ref[...]

        def lrelu(v):
            return jnp.where(v > 0, v, NEG_SLOPE * v)

        def zero_outside_seq(v, n_applied):
            # Rows whose absolute time index is outside [0, T) must be zero
            # before feeding the next conv — this reproduces the zero padding
            # each Conv1d applies in the reference network.
            r = v.shape[0]
            idx = (row0 + n_applied) + jax.lax.broadcasted_iota(
                jnp.int32, (r, 1), 0)
            keep = jnp.logical_and(idx >= 0, idx < T)
            return jnp.where(keep, v, jnp.zeros_like(v))

        applied = 0      # convs applied so far (window shrank by 2*applied)
        ci = 0           # index of the next conv's (w, b) pair in wb
        for op in plan:
            if op[0] == "res":
                w1, b1 = wb[2 * ci], wb[2 * ci + 1]
                w2, b2 = wb[2 * ci + 2], wb[2 * ci + 3]
                ci += 2
                t = lrelu(conv3(h, w1, b1))
                t = zero_outside_seq(t, applied + 1).astype(compute_dtype)
                y = conv3(t, w2, b2)
                r = h.shape[0]
                y = y + h[2:r - 2, :].astype(jnp.float32)   # residual add
                applied += 2
            else:
                w, b = wb[2 * ci], wb[2 * ci + 1]
                ci += 1
                y = conv3(h, w, b)
                if op[1]:
                    y = lrelu(y)
                applied += 1
            if applied < L:
                y = zero_outside_seq(y, applied)
            h = y.astype(compute_dtype)

        # h now has TT + 2*(Lp - L) rows; its central TT rows are exactly the
        # output rows [tile_start, tile_start + TT).
        off = Lp - L
        o_ref[0] = h[off:off + TT, :].astype(o_ref.dtype)

    return kernel


# ------------------------------- wrapper ------------------------------------

def _round_up(v, m):
    return ((v + m - 1) // m) * m


def _choose_time_tile(T, halo_pad, requested):
    if requested is not None:
        tt = int(requested)
        if tt != T:
            if T % tt != 0 or tt % 8 != 0 or tt < halo_pad:
                raise ValueError("invalid time_tile")
        return tt
    if T <= 512:
        return T
    for tt in (512, 256, 128, 64):
        if T % tt == 0 and tt >= halo_pad:
            return tt
    return T


def vq_decoder_v5(x, params, *, time_tile=None, compute_dtype=None):
    """Fused VQDecoderV5 forward.  x: (B, T, vae_length) -> (B, T, vae_test_dim).

    params: flat list of {"w": (3, Cin, Cout), "b": (Cout,)} in conv order
    (res1.a, res1.b, res2.a, res2.b, up_0, ..., up_{n_up-1}, final).
    """
    B, T, Cin = x.shape
    n_conv = len(params)
    n_up = n_conv - 5
    assert n_up >= 1, "need at least one up layer"
    assert params[0]["w"].shape[1] == Cin

    plan = [("res",), ("res",)] + [("conv", True)] * n_up + [("conv", False)]
    L = n_conv                          # per-side halo consumed by the chain
    Lp = max(8, _round_up(L, 8))        # provided halo (8-row aligned stores)
    cdt = jnp.dtype(compute_dtype) if compute_dtype is not None else x.dtype

    TT = _choose_time_tile(T, Lp, time_tile)
    nT = T // TT

    # ---- tiny per-tile halo side array: (B, nT, 2*Lp, Cin) ------------------
    # Left halo = last Lp rows of the previous tile, right halo = first Lp
    # rows of the next tile, zeros outside the sequence.  This replaces the
    # full-activation jnp.pad of the previous version (only O(Lp*nT) rows of
    # extra HBM traffic) and lets non-overlapping BlockSpec tiles carry the
    # conv halo they need.
    if nT == 1:
        halo = jnp.zeros((B, 1, 2 * Lp, Cin), x.dtype)
    else:
        xr = x.reshape(B, nT, TT, Cin)
        zpad = jnp.zeros((B, 1, Lp, Cin), x.dtype)
        left = jnp.concatenate([zpad, xr[:, :-1, TT - Lp:, :]], axis=1)
        right = jnp.concatenate([xr[:, 1:, :Lp, :], zpad], axis=1)
        halo = jnp.concatenate([left, right], axis=2)

    # ---- operands & specs ----------------------------------------------------
    operands = [x.astype(cdt), halo.astype(cdt)]
    in_specs = [
        pl.BlockSpec((1, TT, Cin), lambda b, i: (b, i, 0)),
        pl.BlockSpec((1, 1, 2 * Lp, Cin), lambda b, i: (b, i, 0, 0)),
    ]
    for p in params:
        w = p["w"].astype(cdt)
        bb = p["b"].reshape(1, -1).astype(jnp.float32)
        operands += [w, bb]
        # Constant index maps: weights/biases are DMA'd once and stay
        # VMEM-resident across every (batch, time-tile) grid step.
        in_specs += [
            pl.BlockSpec(w.shape, lambda b, i: (0, 0, 0)),
            pl.BlockSpec(bb.shape, lambda b, i: (0, 0)),
        ]

    Cout = params[-1]["w"].shape[-1]
    out_shape = jax.ShapeDtypeStruct((B, T, Cout), x.dtype)
    out_spec = pl.BlockSpec((1, TT, Cout), lambda b, i: (b, i, 0))

    kernel = _make_decoder_kernel(
        plan, seq_len=T, time_tile=TT, n_conv=L, halo_pad=Lp,
        compute_dtype=cdt)

    return pl.pallas_call(
        kernel,
        out_shape=out_shape,
        grid=(B, nT),
        in_specs=in_specs,
        out_specs=out_spec,
        scratch_shapes=[pltpu.VMEM((TT + 2 * Lp, Cin), cdt)],
        compiler_params=pltpu.CompilerParams(
            dimension_semantics=("parallel", "parallel"),
            vmem_limit_bytes=32 * 1024 * 1024,
        ),
    )(*operands)


# --------------------------- parameter creation ------------------------------

def xavier_normal_conv(key, cin, cout, k=3, dtype=jnp.float32):
    # nn.init.xavier_normal_ for Conv1d: fan_in = cin*k, fan_out = cout*k.
    std = (2.0 / (cin * k + cout * k)) ** 0.5
    # stored tap-major (k, Cin, Cout) for channels-last matmuls
    return std * jax.random.normal(key, (k, cin, cout), dtype=dtype)


def make_params(key, vae_test_dim, vae_length, vae_layer, bias_scale=0.1):
    """Conv parameters in forward order.  (The PyTorch init zeroes biases;
    small random biases are used here so the bias path and the in-kernel
    boundary masking are actually exercised — forward semantics unchanged.)"""
    n_up = vae_layer
    channels = [vae_length] * n_up + [vae_test_dim]
    c0 = channels[0]
    dims = [(c0, c0)] * 4                                       # 2 ResBlocks
    dims += [(channels[i], channels[i + 1]) for i in range(n_up)]
    dims += [(channels[-1], channels[-1])]                      # final conv
    params = []
    for cin, cout in dims:
        key, kw, kb = jax.random.split(key, 3)
        params.append({
            "w": xavier_normal_conv(kw, cin, cout),
            "b": bias_scale * jax.random.normal(kb, (cout,), jnp.float32),
        })
    return params


# ------------------------------ pure-JAX ref ---------------------------------

def _lrelu(x):
    return jnp.where(x > 0, x, NEG_SLOPE * x)


def _ref_conv(x, w, b):
    y = jax.lax.conv_general_dilated(
        x, w, window_strides=(1,), padding=[(1, 1)],
        dimension_numbers=("NWC", "WIO", "NWC"))
    return y + b


def vq_decoder_v5_ref(x, params):
    n_up = len(params) - 5
    h = x
    i = 0
    for _ in range(2):                                  # ResBlocks
        t = _lrelu(_ref_conv(h, params[i]["w"], params[i]["b"]))
        h = _ref_conv(t, params[i + 1]["w"], params[i + 1]["b"]) + h
        i += 2
    for _ in range(n_up):                               # up convs + LReLU
        h = _lrelu(_ref_conv(h, params[i]["w"], params[i]["b"]))
        i += 1
    return _ref_conv(h, params[i]["w"], params[i]["b"])  # final conv


# ---------------------------------- main -------------------------------------

if __name__ == "__main__":
    # Small config: args.vae_test_dim=16, args.vae_length=32, args.vae_layer=2.
    B, T, VAE_TEST_DIM, VAE_LENGTH, VAE_LAYER = 2, 8, 16, 32, 2

    key = jax.random.PRNGKey(0)
    key, kx, kp, kx2 = jax.random.split(key, 4)
    params = make_params(kp, VAE_TEST_DIM, VAE_LENGTH, VAE_LAYER)

    # 1) spec-sized input (single time tile).
    x = jax.random.normal(kx, (B, T, VAE_LENGTH), dtype=jnp.float32)
    out = jax.block_until_ready(vq_decoder_v5(x, params))
    ref = jax.block_until_ready(vq_decoder_v5_ref(x, params))
    assert out.shape == (B, T, VAE_TEST_DIM), out.shape
    assert jnp.allclose(out, ref, atol=1e-4, rtol=1e-4), \
        float(jnp.max(jnp.abs(out - ref)))

    # 2) longer sequence with a forced small time tile to exercise the
    #    multi-tile halo-exchange / boundary-masking path.
    T2 = 32
    x2 = jax.random.normal(kx2, (B, T2, VAE_LENGTH), dtype=jnp.float32)
    out2 = jax.block_until_ready(vq_decoder_v5(x2, params, time_tile=16))
    ref2 = jax.block_until_ready(vq_decoder_v5_ref(x2, params))
    assert out2.shape == (B, T2, VAE_TEST_DIM), out2.shape
    assert jnp.allclose(out2, ref2, atol=1e-4, rtol=1e-4), \
        float(jnp.max(jnp.abs(out2 - ref2)))

    print("KERNEL_OK")
</pallas_src>

<mosaic_0001>
module attributes {stable_mosaic.version = 11 : i64} {
  func.func @kernel(%arg0: i32, %arg1: i32, %arg2: memref<1x8x32xf32, #tpu.memory_space<vmem>>, %arg3: memref<1x1x16x32xf32, #tpu.memory_space<vmem>>, %arg4: memref<3x32x32xf32, #tpu.memory_space<vmem>>, %arg5: memref<1x32xf32, #tpu.memory_space<vmem>>, %arg6: memref<3x32x32xf32, #tpu.memory_space<vmem>>, %arg7: memref<1x32xf32, #tpu.memory_space<vmem>>, %arg8: memref<3x32x32xf32, #tpu.memory_space<vmem>>, %arg9: memref<1x32xf32, #tpu.memory_space<vmem>>, %arg10: memref<3x32x32xf32, #tpu.memory_space<vmem>>, %arg11: memref<1x32xf32, #tpu.memory_space<vmem>>, %arg12: memref<3x32x32xf32, #tpu.memory_space<vmem>>, %arg13: memref<1x32xf32, #tpu.memory_space<vmem>>, %arg14: memref<3x32x16xf32, #tpu.memory_space<vmem>>, %arg15: memref<1x16xf32, #tpu.memory_space<vmem>>, %arg16: memref<3x16x16xf32, #tpu.memory_space<vmem>>, %arg17: memref<1x16xf32, #tpu.memory_space<vmem>>, %arg18: memref<1x8x16xf32, #tpu.memory_space<vmem>>, %arg19: memref<24x32xf32, #tpu.memory_space<vmem>>) attributes {dimension_semantics = [#tpu.dimension_semantics<parallel>, #tpu.dimension_semantics<parallel>], iteration_bounds = array<i64: 2, 1>, scalar_prefetch = 0 : i64, scratch_operands = 1 : i64, tpu.core_type = #tpu.core_type<tc>, window_params = [{transform_indices = @transform_0, window_bounds = array<i64: 1, 8, 32>}, {transform_indices = @transform_1, window_bounds = array<i64: 1, 1, 16, 32>}, {pipeline_mode = #tpu.pipeline_mode<synchronous>, transform_indices = @transform_2, window_bounds = array<i64: 3, 32, 32>}, {pipeline_mode = #tpu.pipeline_mode<synchronous>, transform_indices = @transform_3, window_bounds = array<i64: 1, 32>}, {pipeline_mode = #tpu.pipeline_mode<synchronous>, transform_indices = @transform_4, window_bounds = array<i64: 3, 32, 32>}, {pipeline_mode = #tpu.pipeline_mode<synchronous>, transform_indices = @transform_5, window_bounds = array<i64: 1, 32>}, {pipeline_mode = #tpu.pipeline_mode<synchronous>, transform_indices = @transform_6, window_bounds = array<i64: 3, 32, 32>}, {pipeline_mode = #tpu.pipeline_mode<synchronous>, transform_indices = @transform_7, window_bounds = array<i64: 1, 32>}, {pipeline_mode = #tpu.pipeline_mode<synchronous>, transform_indices = @transform_8, window_bounds = array<i64: 3, 32, 32>}, {pipeline_mode = #tpu.pipeline_mode<synchronous>, transform_indices = @transform_9, window_bounds = array<i64: 1, 32>}, {pipeline_mode = #tpu.pipeline_mode<synchronous>, transform_indices = @transform_10, window_bounds = array<i64: 3, 32, 32>}, {pipeline_mode = #tpu.pipeline_mode<synchronous>, transform_indices = @transform_11, window_bounds = array<i64: 1, 32>}, {pipeline_mode = #tpu.pipeline_mode<synchronous>, transform_indices = @transform_12, window_bounds = array<i64: 3, 32, 16>}, {pipeline_mode = #tpu.pipeline_mode<synchronous>, transform_indices = @transform_13, window_bounds = array<i64: 1, 16>}, {pipeline_mode = #tpu.pipeline_mode<synchronous>, transform_indices = @transform_14, window_bounds = array<i64: 3, 16, 16>}, {pipeline_mode = #tpu.pipeline_mode<synchronous>, transform_indices = @transform_15, window_bounds = array<i64: 1, 16>}, {transform_indices = @transform_16, window_bounds = array<i64: 1, 8, 16>}]} {
    %c8_i32 = arith.constant 8 : i32
    %0 = arith.muli %arg1, %c8_i32 : i32
    %c8_i32_0 = arith.constant 8 : i32
    %1 = arith.subi %0, %c8_i32_0 : i32
    %c0 = arith.constant 0 : index
    %c0_1 = arith.constant 0 : index
    %c0_2 = arith.constant 0 : index
    %c0_3 = arith.constant 0 : index
    %2 = vector.load %arg3[%c0, %c0_1, %c0_2, %c0_3] : memref<1x1x16x32xf32, #tpu.memory_space<vmem>>, vector<1x1x8x32xf32>
    %3 = vector.shape_cast %2 : vector<1x1x8x32xf32> to vector<8x32xf32>
    %c0_4 = arith.constant 0 : index
    %c0_5 = arith.constant 0 : index
    %4 = vector.load %arg19[%c0_4, %c0_5] : memref<24x32xf32, #tpu.memory_space<vmem>>, vector<8x32xf32>
    tpu.vector_store %arg19[%c0_4, %c0_5], %3 {strides = array<i32>} : memref<24x32xf32, #tpu.memory_space<vmem>>, vector<8x32xf32>,
    %c0_6 = arith.constant 0 : index
    %c0_7 = arith.constant 0 : index
    %c0_8 = arith.constant 0 : index
    %5 = vector.load %arg2[%c0_6, %c0_7, %c0_8] : memref<1x8x32xf32, #tpu.memory_space<vmem>>, vector<1x8x32xf32>
    %6 = vector.shape_cast %5 : vector<1x8x32xf32> to vector<8x32xf32>
    %c8 = arith.constant 8 : index
    %c0_9 = arith.constant 0 : index
    %7 = vector.load %arg19[%c8, %c0_9] : memref<24x32xf32, #tpu.memory_space<vmem>>, vector<8x32xf32>
    tpu.vector_store %arg19[%c8, %c0_9], %6 {strides = array<i32>} : memref<24x32xf32, #tpu.memory_space<vmem>>, vector<8x32xf32>,
    %c0_10 = arith.constant 0 : index
    %c0_11 = arith.constant 0 : index
    %c8_12 = arith.constant 8 : index
    %c0_13 = arith.constant 0 : index
    %8 = vector.load %arg3[%c0_10, %c0_11, %c8_12, %c0_13] : memref<1x1x16x32xf32, #tpu.memory_space<vmem>>, vector<1x1x8x32xf32>
    %9 = vector.shape_cast %8 : vector<1x1x8x32xf32> to vector<8x32xf32>
    %c16 = arith.constant 16 : index
    %c0_14 = arith.constant 0 : index
    %10 = vector.load %arg19[%c16, %c0_14] : memref<24x32xf32, #tpu.memory_space<vmem>>, vector<8x32xf32>
    tpu.vector_store %arg19[%c16, %c0_14], %9 {strides = array<i32>} : memref<24x32xf32, #tpu.memory_space<vmem>>, vector<8x32xf32>,
    %c0_15 = arith.constant 0 : index
    %c0_16 = arith.constant 0 : index
    %11 = vector.load %arg19[%c0_15, %c0_16] : memref<24x32xf32, #tpu.memory_space<vmem>>, vector<24x32xf32>
    %12 = vector.extract_strided_slice %11 {offsets = [0, 0], sizes = [22, 32], strides = [1, 1]} : vector<24x32xf32> to vector<22x32xf32>
    %c0_17 = arith.constant 0 : index
    %c0_18 = arith.constant 0 : index
    %c0_19 = arith.constant 0 : index
    %13 = vector.load %arg4[%c0_17, %c0_18, %c0_19] : memref<3x32x32xf32, #tpu.memory_space<vmem>>, vector<1x32x32xf32>
    %14 = vector.shape_cast %13 : vector<1x32x32xf32> to vector<32x32xf32>
    %cst = arith.constant dense<0.000000e+00> : vector<22x32xf32>
    %15 = tpu.matmul %12, %14, %cst {dimension_numbers = #tpu.dot_dimension_numbers<[1], [0], [0], [1], [0, 0, 1, 1], [], []>} : vector<22x32xf32>, vector<32x32xf32>, vector<22x32xf32> -> vector<22x32xf32>
    %16 = vector.extract_strided_slice %11 {offsets = [1, 0], sizes = [22, 32], strides = [1, 1]} : vector<24x32xf32> to vector<22x32xf32>
    %c1 = arith.constant 1 : index
    %c0_20 = arith.constant 0 : index
    %c0_21 = arith.constant 0 : index
    %17 = vector.load %arg4[%c1, %c0_20, %c0_21] : memref<3x32x32xf32, #tpu.memory_space<vmem>>, vector<1x32x32xf32>
    %18 = vector.shape_cast %17 : vector<1x32x32xf32> to vector<32x32xf32>
    %cst_22 = arith.constant dense<0.000000e+00> : vector<22x32xf32>
    %19 = tpu.matmul %16, %18, %cst_22 {dimension_numbers = #tpu.dot_dimension_numbers<[1], [0], [0], [1], [0, 0, 1, 1], [], []>} : vector<22x32xf32>, vector<32x32xf32>, vector<22x32xf32> -> vector<22x32xf32>
    %20 = arith.addf %15, %19 : vector<22x32xf32>
    %21 = vector.extract_strided_slice %11 {offsets = [2, 0], sizes = [22, 32], strides = [1, 1]} : vector<24x32xf32> to vector<22x32xf32>
    %c2 = arith.constant 2 : index
    %c0_23 = arith.constant 0 : index
    %c0_24 = arith.constant 0 : index
    %22 = vector.load %arg4[%c2, %c0_23, %c0_24] : memref<3x32x32xf32, #tpu.memory_space<vmem>>, vector<1x32x32xf32>
    %23 = vector.shape_cast %22 : vector<1x32x32xf32> to vector<32x32xf32>
    %cst_25 = arith.constant dense<0.000000e+00> : vector<22x32xf32>
    %24 = tpu.matmul %21, %23, %cst_25 {dimension_numbers = #tpu.dot_dimension_numbers<[1], [0], [0], [1], [0, 0, 1, 1], [], []>} : vector<22x32xf32>, vector<32x32xf32>, vector<22x32xf32> -> vector<22x32xf32>
    %25 = arith.addf %20, %24 : vector<22x32xf32>
    %c0_26 = arith.constant 0 : index
    %c0_27 = arith.constant 0 : index
    %26 = vector.load %arg5[%c0_26, %c0_27] : memref<1x32xf32, #tpu.memory_space<vmem>>, vector<1x32xf32>
    %27 = vector.broadcast %26 : vector<1x32xf32> to vector<22x32xf32>
    %28 = arith.addf %25, %27 : vector<22x32xf32>
    %cst_28 = arith.constant 0.000000e+00 : f32
    %29 = vector.broadcast %cst_28 : f32 to vector<22x32xf32>
    %30 = arith.cmpf ogt, %28, %29 : vector<22x32xf32>
    %cst_29 = arith.constant 2.000000e-01 : f32
    %31 = vector.broadcast %cst_29 : f32 to vector<22x32xf32>
    %32 = arith.mulf %31, %28 : vector<22x32xf32>
    %33 = arith.select %30, %28, %32 : vector<22x32xi1>, vector<22x32xf32>
    %c1_i32 = arith.constant 1 : i32
    %34 = arith.addi %1, %c1_i32 : i32
    %35 = tpu.iota {dimensions = array<i32: 0>} : vector<22x1xi32>
    %36 = vector.broadcast %34 : i32 to vector<22x1xi32>
    %37 = arith.addi %36, %35 : vector<22x1xi32>
    %c0_i32 = arith.constant 0 : i32
    %38 = vector.broadcast %c0_i32 : i32 to vector<22x1xi32>
    %39 = arith.cmpi sge, %37, %38 : vector<22x1xi32>
    %c8_i32_30 = arith.constant 8 : i32
    %40 = vector.broadcast %c8_i32_30 : i32 to vector<22x1xi32>
    %41 = arith.cmpi slt, %37, %40 : vector<22x1xi32>
    %42 = arith.andi %39, %41 : vector<22x1xi1>
    %cst_31 = arith.constant 0.000000e+00 : f32
    %43 = vector.broadcast %cst_31 : f32 to vector<22x32xf32>
    %44 = vector.shape_cast %42 : vector<22x1xi1> to vector<22x1xi1>
    %45 = vector.broadcast %44 : vector<22x1xi1> to vector<22x32xi1>
    %46 = arith.select %45, %33, %43 : vector<22x32xi1>, vector<22x32xf32>
    %47 = vector.extract_strided_slice %46 {offsets = [0, 0], sizes = [20, 32], strides = [1, 1]} : vector<22x32xf32> to vector<20x32xf32>
    %c0_32 = arith.constant 0 : index
    %c0_33 = arith.constant 0 : index
    %c0_34 = arith.constant 0 : index
    %48 = vector.load %arg6[%c0_32, %c0_33, %c0_34] : memref<3x32x32xf32, #tpu.memory_space<vmem>>, vector<1x32x32xf32>
    %49 = vector.shape_cast %48 : vector<1x32x32xf32> to vector<32x32xf32>
    %cst_35 = arith.constant dense<0.000000e+00> : vector<20x32xf32>
    %50 = tpu.matmul %47, %49, %cst_35 {dimension_numbers = #tpu.dot_dimension_numbers<[1], [0], [0], [1], [0, 0, 1, 1], [], []>} : vector<20x32xf32>, vector<32x32xf32>, vector<20x32xf32> -> vector<20x32xf32>
    %51 = vector.extract_strided_slice %46 {offsets = [1, 0], sizes = [20, 32], strides = [1, 1]} : vector<22x32xf32> to vector<20x32xf32>
    %c1_36 = arith.constant 1 : index
    %c0_37 = arith.constant 0 : index
    %c0_38 = arith.constant 0 : index
    %52 = vector.load %arg6[%c1_36, %c0_37, %c0_38] : memref<3x32x32xf32, #tpu.memory_space<vmem>>, vector<1x32x32xf32>
    %53 = vector.shape_cast %52 : vector<1x32x32xf32> to vector<32x32xf32>
    %cst_39 = arith.constant dense<0.000000e+00> : vector<20x32xf32>
    %54 = tpu.matmul %51, %53, %cst_39 {dimension_numbers = #tpu.dot_dimension_numbers<[1], [0], [0], [1], [0, 0, 1, 1], [], []>} : vector<20x32xf32>, vector<32x32xf32>, vector<20x32xf32> -> vector<20x32xf32>
    %55 = arith.addf %50, %54 : vector<20x32xf32>
    %56 = vector.extract_strided_slice %46 {offsets = [2, 0], sizes = [20, 32], strides = [1, 1]} : vector<22x32xf32> to vector<20x32xf32>
    %c2_40 = arith.constant 2 : index
    %c0_41 = arith.constant 0 : index
    %c0_42 = arith.constant 0 : index
    %57 = vector.load %arg6[%c2_40, %c0_41, %c0_42] : memref<3x32x32xf32, #tpu.memory_space<vmem>>, vector<1x32x32xf32>
    %58 = vector.shape_cast %57 : vector<1x32x32xf32> to vector<32x32xf32>
    %cst_43 = arith.constant dense<0.000000e+00> : vector<20x32xf32>
    %59 = tpu.matmul %56, %58, %cst_43 {dimension_numbers = #tpu.dot_dimension_numbers<[1], [0], [0], [1], [0, 0, 1, 1], [], []>} : vector<20x32xf32>, vector<32x32xf32>, vector<20x32xf32> -> vector<20x32xf32>
    %60 = arith.addf %55, %59 : vector<20x32xf32>
    %c0_44 = arith.constant 0 : index
    %c0_45 = arith.constant 0 : index
    %61 = vector.load %arg7[%c0_44, %c0_45] : memref<1x32xf32, #tpu.memory_space<vmem>>, vector<1x32xf32>
    %62 = vector.broadcast %61 : vector<1x32xf32> to vector<20x32xf32>
    %63 = arith.addf %60, %62 : vector<20x32xf32>
    %64 = vector.extract_strided_slice %11 {offsets = [2, 0], sizes = [20, 32], strides = [1, 1]} : vector<24x32xf32> to vector<20x32xf32>
    %65 = arith.addf %63, %64 : vector<20x32xf32>
    %c2_i32 = arith.constant 2 : i32
    %66 = arith.addi %1, %c2_i32 : i32
    %67 = tpu.iota {dimensions = array<i32: 0>} : vector<20x1xi32>
    %68 = vector.broadcast %66 : i32 to vector<20x1xi32>
    %69 = arith.addi %68, %67 : vector<20x1xi32>
    %c0_i32_46 = arith.constant 0 : i32
    %70 = vector.broadcast %c0_i32_46 : i32 to vector<20x1xi32>
    %71 = arith.cmpi sge, %69, %70 : vector<20x1xi32>
    %c8_i32_47 = arith.constant 8 : i32
    %72 = vector.broadcast %c8_i32_47 : i32 to vector<20x1xi32>
    %73 = arith.cmpi slt, %69, %72 : vector<20x1xi32>
    %74 = arith.andi %71, %73 : vector<20x1xi1>
    %cst_48 = arith.constant 0.000000e+00 : f32
    %75 = vector.broadcast %cst_48 : f32 to vector<20x32xf32>
    %76 = vector.shape_cast %74 : vector<20x1xi1> to vector<20x1xi1>
    %77 = vector.broadcast %76 : vector<20x1xi1> to vector<20x32xi1>
    %78 = arith.select %77, %65, %75 : vector<20x32xi1>, vector<20x32xf32>
    %79 = vector.extract_strided_slice %78 {offsets = [0, 0], sizes = [18, 32], strides = [1, 1]} : vector<20x32xf32> to vector<18x32xf32>
    %c0_49 = arith.constant 0 : index
    %c0_50 = arith.constant 0 : index
    %c0_51 = arith.constant 0 : index
    %80 = vector.load %arg8[%c0_49, %c0_50, %c0_51] : memref<3x32x32xf32, #tpu.memory_space<vmem>>, vector<1x32x32xf32>
    %81 = vector.shape_cast %80 : vector<1x32x32xf32> to vector<32x32xf32>
    %cst_52 = arith.constant dense<0.000000e+00> : vector<18x32xf32>
    %82 = tpu.matmul %79, %81, %cst_52 {dimension_numbers = #tpu.dot_dimension_numbers<[1], [0], [0], [1], [0, 0, 1, 1], [], []>} : vector<18x32xf32>, vector<32x32xf32>, vector<18x32xf32> -> vector<18x32xf32>
    %83 = vector.extract_strided_slice %78 {offsets = [1, 0], sizes = [18, 32], strides = [1, 1]} : vector<20x32xf32> to vector<18x32xf32>
    %c1_53 = arith.constant 1 : index
    %c0_54 = arith.constant 0 : index
    %c0_55 = arith.constant 0 : index
    %84 = vector.load %arg8[%c1_53, %c0_54, %c0_55] : memref<3x32x32xf32, #tpu.memory_space<vmem>>, vector<1x32x32xf32>
    %85 = vector.shape_cast %84 : vector<1x32x32xf32> to vector<32x32xf32>
    %cst_56 = arith.constant dense<0.000000e+00> : vector<18x32xf32>
    %86 = tpu.matmul %83, %85, %cst_56 {dimension_numbers = #tpu.dot_dimension_numbers<[1], [0], [0], [1], [0, 0, 1, 1], [], []>} : vector<18x32xf32>, vector<32x32xf32>, vector<18x32xf32> -> vector<18x32xf32>
    %87 = arith.addf %82, %86 : vector<18x32xf32>
    %88 = vector.extract_strided_slice %78 {offsets = [2, 0], sizes = [18, 32], strides = [1, 1]} : vector<20x32xf32> to vector<18x32xf32>
    %c2_57 = arith.constant 2 : index
    %c0_58 = arith.constant 0 : index
    %c0_59 = arith.constant 0 : index
    %89 = vector.load %arg8[%c2_57, %c0_58, %c0_59] : memref<3x32x32xf32, #tpu.memory_space<vmem>>, vector<1x32x32xf32>
    %90 = vector.shape_cast %89 : vector<1x32x32xf32> to vector<32x32xf32>
    %cst_60 = arith.constant dense<0.000000e+00> : vector<18x32xf32>
    %91 = tpu.matmul %88, %90, %cst_60 {dimension_numbers = #tpu.dot_dimension_numbers<[1], [0], [0], [1], [0, 0, 1, 1], [], []>} : vector<18x32xf32>, vector<32x32xf32>, vector<18x32xf32> -> vector<18x32xf32>
    %92 = arith.addf %87, %91 : vector<18x32xf32>
    %c0_61 = arith.constant 0 : index
    %c0_62 = arith.constant 0 : index
    %93 = vector.load %arg9[%c0_61, %c0_62] : memref<1x32xf32, #tpu.memory_space<vmem>>, vector<1x32xf32>
    %94 = vector.broadcast %93 : vector<1x32xf32> to vector<18x32xf32>
    %95 = arith.addf %92, %94 : vector<18x32xf32>
    %cst_63 = arith.constant 0.000000e+00 : f32
    %96 = vector.broadcast %cst_63 : f32 to vector<18x32xf32>
    %97 = arith.cmpf ogt, %95, %96 : vector<18x32xf32>
    %cst_64 = arith.constant 2.000000e-01 : f32
    %98 = vector.broadcast %cst_64 : f32 to vector<18x32xf32>
    %99 = arith.mulf %98, %95 : vector<18x32xf32>
    %100 = arith.select %97, %95, %99 : vector<18x32xi1>, vector<18x32xf32>
    %c3_i32 = arith.constant 3 : i32
    %101 = arith.addi %1, %c3_i32 : i32
    %102 = tpu.iota {dimensions = array<i32: 0>} : vector<18x1xi32>
    %103 = vector.broadcast %101 : i32 to vector<18x1xi32>
    %104 = arith.addi %103, %102 : vector<18x1xi32>
    %c0_i32_65 = arith.constant 0 : i32
    %105 = vector.broadcast %c0_i32_65 : i32 to vector<18x1xi32>
    %106 = arith.cmpi sge, %104, %105 : vector<18x1xi32>
    %c8_i32_66 = arith.constant 8 : i32
    %107 = vector.broadcast %c8_i32_66 : i32 to vector<18x1xi32>
    %108 = arith.cmpi slt, %104, %107 : vector<18x1xi32>
    %109 = arith.andi %106, %108 : vector<18x1xi1>
    %cst_67 = arith.constant 0.000000e+00 : f32
    %110 = vector.broadcast %cst_67 : f32 to vector<18x32xf32>
    %111 = vector.shape_cast %109 : vector<18x1xi1> to vector<18x1xi1>
    %112 = vector.broadcast %111 : vector<18x1xi1> to vector<18x32xi1>
    %113 = arith.select %112, %100, %110 : vector<18x32xi1>, vector<18x32xf32>
    %114 = vector.extract_strided_slice %113 {offsets = [0, 0], sizes = [16, 32], strides = [1, 1]} : vector<18x32xf32> to vector<16x32xf32>
    %c0_68 = arith.constant 0 : index
    %c0_69 = arith.constant 0 : index
    %c0_70 = arith.constant 0 : index
    %115 = vector.load %arg10[%c0_68, %c0_69, %c0_70] : memref<3x32x32xf32, #tpu.memory_space<vmem>>, vector<1x32x32xf32>
    %116 = vector.shape_cast %115 : vector<1x32x32xf32> to vector<32x32xf32>
    %cst_71 = arith.constant dense<0.000000e+00> : vector<16x32xf32>
    %117 = tpu.matmul %114, %116, %cst_71 {dimension_numbers = #tpu.dot_dimension_numbers<[1], [0], [0], [1], [0, 0, 1, 1], [], []>} : vector<16x32xf32>, vector<32x32xf32>, vector<16x32xf32> -> vector<16x32xf32>
    %118 = vector.extract_strided_slice %113 {offsets = [1, 0], sizes = [16, 32], strides = [1, 1]} : vector<18x32xf32> to vector<16x32xf32>
    %c1_72 = arith.constant 1 : index
    %c0_73 = arith.constant 0 : index
    %c0_74 = arith.constant 0 : index
    %119 = vector.load %arg10[%c1_72, %c0_73, %c0_74] : memref<3x32x32xf32, #tpu.memory_space<vmem>>, vector<1x32x32xf32>
    %120 = vector.shape_cast %119 : vector<1x32x32xf32> to vector<32x32xf32>
    %cst_75 = arith.constant dense<0.000000e+00> : vector<16x32xf32>
    %121 = tpu.matmul %118, %120, %cst_75 {dimension_numbers = #tpu.dot_dimension_numbers<[1], [0], [0], [1], [0, 0, 1, 1], [], []>} : vector<16x32xf32>, vector<32x32xf32>, vector<16x32xf32> -> vector<16x32xf32>
    %122 = arith.addf %117, %121 : vector<16x32xf32>
    %123 = vector.extract_strided_slice %113 {offsets = [2, 0], sizes = [16, 32], strides = [1, 1]} : vector<18x32xf32> to vector<16x32xf32>
    %c2_76 = arith.constant 2 : index
    %c0_77 = arith.constant 0 : index
    %c0_78 = arith.constant 0 : index
    %124 = vector.load %arg10[%c2_76, %c0_77, %c0_78] : memref<3x32x32xf32, #tpu.memory_space<vmem>>, vector<1x32x32xf32>
    %125 = vector.shape_cast %124 : vector<1x32x32xf32> to vector<32x32xf32>
    %cst_79 = arith.constant dense<0.000000e+00> : vector<16x32xf32>
    %126 = tpu.matmul %123, %125, %cst_79 {dimension_numbers = #tpu.dot_dimension_numbers<[1], [0], [0], [1], [0, 0, 1, 1], [], []>} : vector<16x32xf32>, vector<32x32xf32>, vector<16x32xf32> -> vector<16x32xf32>
    %127 = arith.addf %122, %126 : vector<16x32xf32>
    %c0_80 = arith.constant 0 : index
    %c0_81 = arith.constant 0 : index
    %128 = vector.load %arg11[%c0_80, %c0_81] : memref<1x32xf32, #tpu.memory_space<vmem>>, vector<1x32xf32>
    %129 = vector.broadcast %128 : vector<1x32xf32> to vector<16x32xf32>
    %130 = arith.addf %127, %129 : vector<16x32xf32>
    %131 = vector.extract_strided_slice %78 {offsets = [2, 0], sizes = [16, 32], strides = [1, 1]} : vector<20x32xf32> to vector<16x32xf32>
    %132 = arith.addf %130, %131 : vector<16x32xf32>
    %c4_i32 = arith.constant 4 : i32
    %133 = arith.addi %1, %c4_i32 : i32
    %134 = tpu.iota {dimensions = array<i32: 0>} : vector<16x1xi32>
    %135 = vector.broadcast %133 : i32 to vector<16x1xi32>
    %136 = arith.addi %135, %134 : vector<16x1xi32>
    %c0_i32_82 = arith.constant 0 : i32
    %137 = vector.broadcast %c0_i32_82 : i32 to vector<16x1xi32>
    %138 = arith.cmpi sge, %136, %137 : vector<16x1xi32>
    %c8_i32_83 = arith.constant 8 : i32
    %139 = vector.broadcast %c8_i32_83 : i32 to vector<16x1xi32>
    %140 = arith.cmpi slt, %136, %139 : vector<16x1xi32>
    %141 = arith.andi %138, %140 : vector<16x1xi1>
    %cst_84 = arith.constant 0.000000e+00 : f32
    %142 = vector.broadcast %cst_84 : f32 to vector<16x32xf32>
    %143 = vector.shape_cast %141 : vector<16x1xi1> to vector<16x1xi1>
    %144 = vector.broadcast %143 : vector<16x1xi1> to vector<16x32xi1>
    %145 = arith.select %144, %132, %142 : vector<16x32xi1>, vector<16x32xf32>
    %146 = vector.extract_strided_slice %145 {offsets = [0, 0], sizes = [14, 32], strides = [1, 1]} : vector<16x32xf32> to vector<14x32xf32>
    %c0_85 = arith.constant 0 : index
    %c0_86 = arith.constant 0 : index
    %c0_87 = arith.constant 0 : index
    %147 = vector.load %arg12[%c0_85, %c0_86, %c0_87] : memref<3x32x32xf32, #tpu.memory_space<vmem>>, vector<1x32x32xf32>
    %148 = vector.shape_cast %147 : vector<1x32x32xf32> to vector<32x32xf32>
    %cst_88 = arith.constant dense<0.000000e+00> : vector<14x32xf32>
    %149 = tpu.matmul %146, %148, %cst_88 {dimension_numbers = #tpu.dot_dimension_numbers<[1], [0], [0], [1], [0, 0, 1, 1], [], []>} : vector<14x32xf32>, vector<32x32xf32>, vector<14x32xf32> -> vector<14x32xf32>
    %150 = vector.extract_strided_slice %145 {offsets = [1, 0], sizes = [14, 32], strides = [1, 1]} : vector<16x32xf32> to vector<14x32xf32>
    %c1_89 = arith.constant 1 : index
    %c0_90 = arith.constant 0 : index
    %c0_91 = arith.constant 0 : index
    %151 = vector.load %arg12[%c1_89, %c0_90, %c0_91] : memref<3x32x32xf32, #tpu.memory_space<vmem>>, vector<1x32x32xf32>
    %152 = vector.shape_cast %151 : vector<1x32x32xf32> to vector<32x32xf32>
    %cst_92 = arith.constant dense<0.000000e+00> : vector<14x32xf32>
    %153 = tpu.matmul %150, %152, %cst_92 {dimension_numbers = #tpu.dot_dimension_numbers<[1], [0], [0], [1], [0, 0, 1, 1], [], []>} : vector<14x32xf32>, vector<32x32xf32>, vector<14x32xf32> -> vector<14x32xf32>
    %154 = arith.addf %149, %153 : vector<14x32xf32>
    %155 = vector.extract_strided_slice %145 {offsets = [2, 0], sizes = [14, 32], strides = [1, 1]} : vector<16x32xf32> to vector<14x32xf32>
    %c2_93 = arith.constant 2 : index
    %c0_94 = arith.constant 0 : index
    %c0_95 = arith.constant 0 : index
    %156 = vector.load %arg12[%c2_93, %c0_94, %c0_95] : memref<3x32x32xf32, #tpu.memory_space<vmem>>, vector<1x32x32xf32>
    %157 = vector.shape_cast %156 : vector<1x32x32xf32> to vector<32x32xf32>
    %cst_96 = arith.constant dense<0.000000e+00> : vector<14x32xf32>
    %158 = tpu.matmul %155, %157, %cst_96 {dimension_numbers = #tpu.dot_dimension_numbers<[1], [0], [0], [1], [0, 0, 1, 1], [], []>} : vector<14x32xf32>, vector<32x32xf32>, vector<14x32xf32> -> vector<14x32xf32>
    %159 = arith.addf %154, %158 : vector<14x32xf32>
    %c0_97 = arith.constant 0 : index
    %c0_98 = arith.constant 0 : index
    %160 = vector.load %arg13[%c0_97, %c0_98] : memref<1x32xf32, #tpu.memory_space<vmem>>, vector<1x32xf32>
    %161 = vector.broadcast %160 : vector<1x32xf32> to vector<14x32xf32>
    %162 = arith.addf %159, %161 : vector<14x32xf32>
    %cst_99 = arith.constant 0.000000e+00 : f32
    %163 = vector.broadcast %cst_99 : f32 to vector<14x32xf32>
    %164 = arith.cmpf ogt, %162, %163 : vector<14x32xf32>
    %cst_100 = arith.constant 2.000000e-01 : f32
    %165 = vector.broadcast %cst_100 : f32 to vector<14x32xf32>
    %166 = arith.mulf %165, %162 : vector<14x32xf32>
    %167 = arith.select %164, %162, %166 : vector<14x32xi1>, vector<14x32xf32>
    %c5_i32 = arith.constant 5 : i32
    %168 = arith.addi %1, %c5_i32 : i32
    %169 = tpu.iota {dimensions = array<i32: 0>} : vector<14x1xi32>
    %170 = vector.broadcast %168 : i32 to vector<14x1xi32>
    %171 = arith.addi %170, %169 : vector<14x1xi32>
    %c0_i32_101 = arith.constant 0 : i32
    %172 = vector.broadcast %c0_i32_101 : i32 to vector<14x1xi32>
    %173 = arith.cmpi sge, %171, %172 : vector<14x1xi32>
    %c8_i32_102 = arith.constant 8 : i32
    %174 = vector.broadcast %c8_i32_102 : i32 to vector<14x1xi32>
    %175 = arith.cmpi slt, %171, %174 : vector<14x1xi32>
    %176 = arith.andi %173, %175 : vector<14x1xi1>
    %cst_103 = arith.constant 0.000000e+00 : f32
    %177 = vector.broadcast %cst_103 : f32 to vector<14x32xf32>
    %178 = vector.shape_cast %176 : vector<14x1xi1> to vector<14x1xi1>
    %179 = vector.broadcast %178 : vector<14x1xi1> to vector<14x32xi1>
    %180 = arith.select %179, %167, %177 : vector<14x32xi1>, vector<14x32xf32>
    %181 = vector.extract_strided_slice %180 {offsets = [0, 0], sizes = [12, 32], strides = [1, 1]} : vector<14x32xf32> to vector<12x32xf32>
    %c0_104 = arith.constant 0 : index
    %c0_105 = arith.constant 0 : index
    %c0_106 = arith.constant 0 : index
    %182 = vector.load %arg14[%c0_104, %c0_105, %c0_106] : memref<3x32x16xf32, #tpu.memory_space<vmem>>, vector<1x32x16xf32>
    %183 = vector.shape_cast %182 : vector<1x32x16xf32> to vector<32x16xf32>
    %cst_107 = arith.constant dense<0.000000e+00> : vector<12x16xf32>
    %184 = tpu.matmul %181, %183, %cst_107 {dimension_numbers = #tpu.dot_dimension_numbers<[1], [0], [0], [1], [0, 0, 1, 1], [], []>} : vector<12x32xf32>, vector<32x16xf32>, vector<12x16xf32> -> vector<12x16xf32>
    %185 = vector.extract_strided_slice %180 {offsets = [1, 0], sizes = [12, 32], strides = [1, 1]} : vector<14x32xf32> to vector<12x32xf32>
    %c1_108 = arith.constant 1 : index
    %c0_109 = arith.constant 0 : index
    %c0_110 = arith.constant 0 : index
    %186 = vector.load %arg14[%c1_108, %c0_109, %c0_110] : memref<3x32x16xf32, #tpu.memory_space<vmem>>, vector<1x32x16xf32>
    %187 = vector.shape_cast %186 : vector<1x32x16xf32> to vector<32x16xf32>
    %cst_111 = arith.constant dense<0.000000e+00> : vector<12x16xf32>
    %188 = tpu.matmul %185, %187, %cst_111 {dimension_numbers = #tpu.dot_dimension_numbers<[1], [0], [0], [1], [0, 0, 1, 1], [], []>} : vector<12x32xf32>, vector<32x16xf32>, vector<12x16xf32> -> vector<12x16xf32>
    %189 = arith.addf %184, %188 : vector<12x16xf32>
    %190 = vector.extract_strided_slice %180 {offsets = [2, 0], sizes = [12, 32], strides = [1, 1]} : vector<14x32xf32> to vector<12x32xf32>
    %c2_112 = arith.constant 2 : index
    %c0_113 = arith.constant 0 : index
    %c0_114 = arith.constant 0 : index
    %191 = vector.load %arg14[%c2_112, %c0_113, %c0_114] : memref<3x32x16xf32, #tpu.memory_space<vmem>>, vector<1x32x16xf32>
    %192 = vector.shape_cast %191 : vector<1x32x16xf32> to vector<32x16xf32>
    %cst_115 = arith.constant dense<0.000000e+00> : vector<12x16xf32>
    %193 = tpu.matmul %190, %192, %cst_115 {dimension_numbers = #tpu.dot_dimension_numbers<[1], [0], [0], [1], [0, 0, 1, 1], [], []>} : vector<12x32xf32>, vector<32x16xf32>, vector<12x16xf32> -> vector<12x16xf32>
    %194 = arith.addf %189, %193 : vector<12x16xf32>
    %c0_116 = arith.constant 0 : index
    %c0_117 = arith.constant 0 : index
    %195 = vector.load %arg15[%c0_116, %c0_117] : memref<1x16xf32, #tpu.memory_space<vmem>>, vector<1x16xf32>
    %196 = vector.broadcast %195 : vector<1x16xf32> to vector<12x16xf32>
    %197 = arith.addf %194, %196 : vector<12x16xf32>
    %cst_118 = arith.constant 0.000000e+00 : f32
    %198 = vector.broadcast %cst_118 : f32 to vector<12x16xf32>
    %199 = arith.cmpf ogt, %197, %198 : vector<12x16xf32>
    %cst_119 = arith.constant 2.000000e-01 : f32
    %200 = vector.broadcast %cst_119 : f32 to vector<12x16xf32>
    %201 = arith.mulf %200, %197 : vector<12x16xf32>
    %202 = arith.select %199, %197, %201 : vector<12x16xi1>, vector<12x16xf32>
    %c6_i32 = arith.constant 6 : i32
    %203 = arith.addi %1, %c6_i32 : i32
    %204 = tpu.iota {dimensions = array<i32: 0>} : vector<12x1xi32>
    %205 = vector.broadcast %203 : i32 to vector<12x1xi32>
    %206 = arith.addi %205, %204 : vector<12x1xi32>
    %c0_i32_120 = arith.constant 0 : i32
    %207 = vector.broadcast %c0_i32_120 : i32 to vector<12x1xi32>
    %208 = arith.cmpi sge, %206, %207 : vector<12x1xi32>
    %c8_i32_121 = arith.constant 8 : i32
    %209 = vector.broadcast %c8_i32_121 : i32 to vector<12x1xi32>
    %210 = arith.cmpi slt, %206, %209 : vector<12x1xi32>
    %211 = arith.andi %208, %210 : vector<12x1xi1>
    %cst_122 = arith.constant 0.000000e+00 : f32
    %212 = vector.broadcast %cst_122 : f32 to vector<12x16xf32>
    %213 = vector.shape_cast %211 : vector<12x1xi1> to vector<12x1xi1>
    %214 = vector.broadcast %213 : vector<12x1xi1> to vector<12x16xi1>
    %215 = arith.select %214, %202, %212 : vector<12x16xi1>, vector<12x16xf32>
    %216 = vector.extract_strided_slice %215 {offsets = [0, 0], sizes = [10, 16], strides = [1, 1]} : vector<12x16xf32> to vector<10x16xf32>
    %c0_123 = arith.constant 0 : index
    %c0_124 = arith.constant 0 : index
    %c0_125 = arith.constant 0 : index
    %217 = vector.load %arg16[%c0_123, %c0_124, %c0_125] : memref<3x16x16xf32, #tpu.memory_space<vmem>>, vector<1x16x16xf32>
    %218 = vector.shape_cast %217 : vector<1x16x16xf32> to vector<16x16xf32>
    %cst_126 = arith.constant dense<0.000000e+00> : vector<10x16xf32>
    %219 = tpu.matmul %216, %218, %cst_126 {dimension_numbers = #tpu.dot_dimension_numbers<[1], [0], [0], [1], [0, 0, 1, 1], [], []>} : vector<10x16xf32>, vector<16x16xf32>, vector<10x16xf32> -> vector<10x16xf32>
    %220 = vector.extract_strided_slice %215 {offsets = [1, 0], sizes = [10, 16], strides = [1, 1]} : vector<12x16xf32> to vector<10x16xf32>
    %c1_127 = arith.constant 1 : index
    %c0_128 = arith.constant 0 : index
    %c0_129 = arith.constant 0 : index
    %221 = vector.load %arg16[%c1_127, %c0_128, %c0_129] : memref<3x16x16xf32, #tpu.memory_space<vmem>>, vector<1x16x16xf32>
    %222 = vector.shape_cast %221 : vector<1x16x16xf32> to vector<16x16xf32>
    %cst_130 = arith.constant dense<0.000000e+00> : vector<10x16xf32>
    %223 = tpu.matmul %220, %222, %cst_130 {dimension_numbers = #tpu.dot_dimension_numbers<[1], [0], [0], [1], [0, 0, 1, 1], [], []>} : vector<10x16xf32>, vector<16x16xf32>, vector<10x16xf32> -> vector<10x16xf32>
    %224 = arith.addf %219, %223 : vector<10x16xf32>
    %225 = vector.extract_strided_slice %215 {offsets = [2, 0], sizes = [10, 16], strides = [1, 1]} : vector<12x16xf32> to vector<10x16xf32>
    %c2_131 = arith.constant 2 : index
    %c0_132 = arith.constant 0 : index
    %c0_133 = arith.constant 0 : index
    %226 = vector.load %arg16[%c2_131, %c0_132, %c0_133] : memref<3x16x16xf32, #tpu.memory_space<vmem>>, vector<1x16x16xf32>
    %227 = vector.shape_cast %226 : vector<1x16x16xf32> to vector<16x16xf32>
    %cst_134 = arith.constant dense<0.000000e+00> : vector<10x16xf32>
    %228 = tpu.matmul %225, %227, %cst_134 {dimension_numbers = #tpu.dot_dimension_numbers<[1], [0], [0], [1], [0, 0, 1, 1], [], []>} : vector<10x16xf32>, vector<16x16xf32>, vector<10x16xf32> -> vector<10x16xf32>
    %229 = arith.addf %224, %228 : vector<10x16xf32>
    %c0_135 = arith.constant 0 : index
    %c0_136 = arith.constant 0 : index
    %230 = vector.load %arg17[%c0_135, %c0_136] : memref<1x16xf32, #tpu.memory_space<vmem>>, vector<1x16xf32>
    %231 = vector.broadcast %230 : vector<1x16xf32> to vector<10x16xf32>
    %232 = arith.addf %229, %231 : vector<10x16xf32>
    %233 = vector.extract_strided_slice %232 {offsets = [1, 0], sizes = [8, 16], strides = [1, 1]} : vector<10x16xf32> to vector<8x16xf32>
    %c0_137 = arith.constant 0 : index
    %c0_138 = arith.constant 0 : index
    %c0_139 = arith.constant 0 : index
    %234 = vector.load %arg18[%c0_137, %c0_138, %c0_139] : memref<1x8x16xf32, #tpu.memory_space<vmem>>, vector<1x8x16xf32>
    %235 = vector.shape_cast %234 : vector<1x8x16xf32> to vector<8x16xf32>
    %236 = vector.shape_cast %233 : vector<8x16xf32> to vector<1x8x16xf32>
    tpu.vector_store %arg18[%c0_137, %c0_138, %c0_139], %236 {strides = array<i32>} : memref<1x8x16xf32, #tpu.memory_space<vmem>>, vector<1x8x16xf32>,
    return
  }
  func.func @transform_0(%arg0: i32, %arg1: i32) -> (i32, i32, i32) {
    %c0_i32 = arith.constant 0 : i32
    %c0_i32_0 = arith.constant 0 : i32
    return %arg0, %arg1, %c0_i32 : i32, i32, i32
  }
  func.func @transform_1(%arg0: i32, %arg1: i32) -> (i32, i32, i32, i32) {
    %c0_i32 = arith.constant 0 : i32
    %c0_i32_0 = arith.constant 0 : i32
    %c0_i32_1 = arith.constant 0 : i32
    return %arg0, %arg1, %c0_i32, %c0_i32_0 : i32, i32, i32, i32
  }
  func.func @transform_2(%arg0: i32, %arg1: i32) -> (i32, i32, i32) {
    %c0_i32 = arith.constant 0 : i32
    %c0_i32_0 = arith.constant 0 : i32
    %c0_i32_1 = arith.constant 0 : i32
    %c0_i32_2 = arith.constant 0 : i32
    return %c0_i32, %c0_i32_0, %c0_i32_1 : i32, i32, i32
  }
  func.func @transform_3(%arg0: i32, %arg1: i32) -> (i32, i32) {
    %c0_i32 = arith.constant 0 : i32
    %c0_i32_0 = arith.constant 0 : i32
    %c0_i32_1 = arith.constant 0 : i32
    return %c0_i32, %c0_i32_0 : i32, i32
  }
  func.func @transform_4(%arg0: i32, %arg1: i32) -> (i32, i32, i32) {
    %c0_i32 = arith.constant 0 : i32
    %c0_i32_0 = arith.constant 0 : i32
    %c0_i32_1 = arith.constant 0 : i32
    %c0_i32_2 = arith.constant 0 : i32
    return %c0_i32, %c0_i32_0, %c0_i32_1 : i32, i32, i32
  }
  func.func @transform_5(%arg0: i32, %arg1: i32) -> (i32, i32) {
    %c0_i32 = arith.constant 0 : i32
    %c0_i32_0 = arith.constant 0 : i32
    %c0_i32_1 = arith.constant 0 : i32
    return %c0_i32, %c0_i32_0 : i32, i32
  }
  func.func @transform_6(%arg0: i32, %arg1: i32) -> (i32, i32, i32) {
    %c0_i32 = arith.constant 0 : i32
    %c0_i32_0 = arith.constant 0 : i32
    %c0_i32_1 = arith.constant 0 : i32
    %c0_i32_2 = arith.constant 0 : i32
    return %c0_i32, %c0_i32_0, %c0_i32_1 : i32, i32, i32
  }
  func.func @transform_7(%arg0: i32, %arg1: i32) -> (i32, i32) {
    %c0_i32 = arith.constant 0 : i32
    %c0_i32_0 = arith.constant 0 : i32
    %c0_i32_1 = arith.constant 0 : i32
    return %c0_i32, %c0_i32_0 : i32, i32
  }
  func.func @transform_8(%arg0: i32, %arg1: i32) -> (i32, i32, i32) {
    %c0_i32 = arith.constant 0 : i32
    %c0_i32_0 = arith.constant 0 : i32
    %c0_i32_1 = arith.constant 0 : i32
    %c0_i32_2 = arith.constant 0 : i32
    return %c0_i32, %c0_i32_0, %c0_i32_1 : i32, i32, i32
  }
  func.func @transform_9(%arg0: i32, %arg1: i32) -> (i32, i32) {
    %c0_i32 = arith.constant 0 : i32
    %c0_i32_0 = arith.constant 0 : i32
    %c0_i32_1 = arith.constant 0 : i32
    return %c0_i32, %c0_i32_0 : i32, i32
  }
  func.func @transform_10(%arg0: i32, %arg1: i32) -> (i32, i32, i32) {
    %c0_i32 = arith.constant 0 : i32
    %c0_i32_0 = arith.constant 0 : i32
    %c0_i32_1 = arith.constant 0 : i32
    %c0_i32_2 = arith.constant 0 : i32
    return %c0_i32, %c0_i32_0, %c0_i32_1 : i32, i32, i32
  }
  func.func @transform_11(%arg0: i32, %arg1: i32) -> (i32, i32) {
    %c0_i32 = arith.constant 0 : i32
    %c0_i32_0 = arith.constant 0 : i32
    %c0_i32_1 = arith.constant 0 : i32
    return %c0_i32, %c0_i32_0 : i32, i32
  }
  func.func @transform_12(%arg0: i32, %arg1: i32) -> (i32, i32, i32) {
    %c0_i32 = arith.constant 0 : i32
    %c0_i32_0 = arith.constant 0 : i32
    %c0_i32_1 = arith.constant 0 : i32
    %c0_i32_2 = arith.constant 0 : i32
    return %c0_i32, %c0_i32_0, %c0_i32_1 : i32, i32, i32
  }
  func.func @transform_13(%arg0: i32, %arg1: i32) -> (i32, i32) {
    %c0_i32 = arith.constant 0 : i32
    %c0_i32_0 = arith.constant 0 : i32
    %c0_i32_1 = arith.constant 0 : i32
    return %c0_i32, %c0_i32_0 : i32, i32
  }
  func.func @transform_14(%arg0: i32, %arg1: i32) -> (i32, i32, i32) {
    %c0_i32 = arith.constant 0 : i32
    %c0_i32_0 = arith.constant 0 : i32
    %c0_i32_1 = arith.constant 0 : i32
    %c0_i32_2 = arith.constant 0 : i32
    return %c0_i32, %c0_i32_0, %c0_i32_1 : i32, i32, i32
  }
  func.func @transform_15(%arg0: i32, %arg1: i32) -> (i32, i32) {
    %c0_i32 = arith.constant 0 : i32
    %c0_i32_0 = arith.constant 0 : i32
    %c0_i32_1 = arith.constant 0 : i32
    return %c0_i32, %c0_i32_0 : i32, i32
  }
  func.func @transform_16(%arg0: i32, %arg1: i32) -> (i32, i32, i32) {
    %c0_i32 = arith.constant 0 : i32
    %c0_i32_0 = arith.constant 0 : i32
    return %arg0, %arg1, %c0_i32 : i32, i32, i32
  }
}

</mosaic_0001>

<llo_original>
// kernel: tpu_custom_call.1
$region0: #{tpu_custom_call.1}
  #allocation0 [shape = 'u32[]', space=smem, size = 0x4, offset = 0x4, fixed_abs, tag = 'smem constant byte address 0x4 - core index']
  #allocation1 [shape = 'u32[144,128]{1,0:T(1,128)}', space=vmem, size = 0x12000, scoped, tag = 'internal scratch']
  #allocation2 [shape = 'f32[24,32]{1,0:T(8,128)}', space=vmem, size = 0x3000, scoped, tag = 'scratch operand']
  %s0 = inlined_call_operand.hbm [shape: f32[2,8,32], index: 0, kind: input, shape index: {}]
  %s1 = inlined_call_operand.hbm [shape: f32[2,1,16,32], index: 1, kind: input, shape index: {}]
  %s2 = inlined_call_operand.vmem [shape: f32[3,32,32], index: 2, kind: input, shape index: {}]
  %s3 = inlined_call_operand.vmem [shape: f32[1,32], index: 3, kind: input, shape index: {}]
  %s4 = inlined_call_operand.hbm [shape: f32[3,32,32], index: 4, kind: input, shape index: {}]
  %s5 = inlined_call_operand.vmem [shape: f32[1,32], index: 5, kind: input, shape index: {}]
  %s6 = inlined_call_operand.hbm [shape: f32[3,32,32], index: 6, kind: input, shape index: {}]
  %s7 = inlined_call_operand.vmem [shape: f32[1,32], index: 7, kind: input, shape index: {}]
  %s8 = inlined_call_operand.hbm [shape: f32[3,32,32], index: 8, kind: input, shape index: {}]
  %s9 = inlined_call_operand.vmem [shape: f32[1,32], index: 9, kind: input, shape index: {}]
  %s10 = inlined_call_operand.hbm [shape: f32[3,32,32], index: 10, kind: input, shape index: {}]
  %s11 = inlined_call_operand.vmem [shape: f32[1,32], index: 11, kind: input, shape index: {}]
  %s12 = inlined_call_operand.vmem [shape: f32[3,32,16], index: 12, kind: input, shape index: {}]
  %s13 = inlined_call_operand.vmem [shape: f32[1,16], index: 13, kind: input, shape index: {}]
  %s14 = inlined_call_operand.vmem [shape: f32[3,16,16], index: 14, kind: input, shape index: {}]
  %s15 = inlined_call_operand.vmem [shape: f32[1,16], index: 15, kind: input, shape index: {}]
  %s16 = inlined_call_operand.hbm [shape: f32[2,8,16], index: 16, kind: output, shape index: {}]
  %s17 = sld [smem:[#allocation0]]
  $region121: #{tpu_custom_call.1} parent=0
    _
  %s19 = ssub.s32 1, %s17
  %s20 = scalar_select 0, %s19, %s17
  $region1: #{tpu_custom_call.1} parent=0
    #allocation3 [shape = 'u8[8192]{0}', space=vmem, size = 0x2000, scoped, tag = 'input window, operand 0']
    #allocation4 [shape = 's32[2]{0}', space=sflag, size = 0x8, scoped, tag = 'scoped memory for tpu_custom_call.1']
    #allocation5 [shape = 's32[2]{0}', space=sflag, size = 0x8, scoped, tag = 'scoped memory for tpu_custom_call.1']
    #allocation6 [shape = 'u8[16384]{0}', space=vmem, size = 0x4000, scoped, tag = 'input window, operand 1']
    #allocation7 [shape = 's32[2]{0}', space=sflag, size = 0x8, scoped, tag = 'scoped memory for tpu_custom_call.1']
    #allocation8 [shape = 'u8[49152]{0}', space=vmem, size = 0xc000, scoped, tag = 'input window, operand 4, single buffered']
    #allocation9 [shape = 'u8[49152]{0}', space=vmem, size = 0xc000, scoped, tag = 'input window, operand 6, single buffered']
    #allocation10 [shape = 's32[1]{0}', space=sflag, size = 0x4, scoped, tag = 'scoped memory for tpu_custom_call.1']
    #allocation11 [shape = 'u8[49152]{0}', space=vmem, size = 0xc000, scoped, tag = 'input window, operand 8, single buffered']
    #allocation12 [shape = 'u8[49152]{0}', space=vmem, size = 0xc000, scoped, tag = 'input window, operand 10, single buffered']
    #allocation13 [shape = 's32[1]{0}', space=sflag, size = 0x4, scoped, tag = 'scoped memory for tpu_custom_call.1']
    #allocation14 [shape = 'u8[8192]{0}', space=vmem, size = 0x2000, scoped, tag = 'output window, operand 0']
    %21 = vsyncpa [#allocation4], 0
    %s22 = scalar_lea.sflag [#allocation4], 1
    %23 = vsyncpa %s22, 0
    %24 = vsyncpa [#allocation7], 0
    %s25 = scalar_lea.sflag [#allocation7], 1
    %26 = vsyncpa %s25, 0
    %27 = vsyncpa [#allocation10], 0
    %28 = vsyncpa [#allocation13], 0
    %29 = vsyncpa [#allocation5], 0
    %s30 = scalar_lea.sflag [#allocation5], 1
    %31 = vsyncpa %s30, 0
    loop: start=0, step=1, limit=4
    $region2: #{tpu_custom_call.1} parent=1 // loop_pre_header
      _
    $region3: #{tpu_custom_call.1} parent=1 // loop_header
      %s33 = sphi 0, %s37
      %p34 = scmp.ge.s32.totalorder %s33, 4
      %s40 = sphi 0, %s52
      %s41 = sphi 0, %s48
      %s42 = sphi 0, %s40
      %s43 = sphi 0, %s41
      %s44 = sphi 0, %s42
      %s45 = sphi 0, %s43
      %s57 = sphi 0, %s59
      %s60 = sphi 0, %s57
      %s61 = sphi 0, %s60
      %s77 = sphi 0, %s61
      %s85 = sphi 0, %s87
      %s88 = sphi 0, %s85
      %s89 = sphi 0, %s88
      %s105 = sphi 0, %s89
      %s109 = sphi 0, %s109
      %s111 = sphi 0, %s109
      %s112 = sphi 0, %s111
      %s126 = sphi 0, %s112
      %s130 = sphi 0, %s130
      %s132 = sphi 0, %s130
      %s133 = sphi 0, %s132
      %s147 = sphi 0, %s133
      %s151 = sphi 0, %s151
      %s153 = sphi 0, %s151
      %s154 = sphi 0, %s153
      %s168 = sphi 0, %s154
      %s172 = sphi 0, %s172
      %s174 = sphi 0, %s172
      %s175 = sphi 0, %s174
      %s189 = sphi 0, %s175
      %s193 = sphi 0, %s193
      %s195 = sphi 0, %s193
      %s196 = sphi 0, %s195
      %s210 = sphi 0, %s196
      %s214 = sphi 0, %s214
      %s216 = sphi 0, %s214
      %s217 = sphi 0, %s216
      %s231 = sphi 0, %s217
      %s235 = sphi 0, %s235
      %s237 = sphi 0, %s235
      %s238 = sphi 0, %s237
      %s252 = sphi 0, %s238
      %s256 = sphi 0, %s256
      %s258 = sphi 0, %s256
      %s259 = sphi 0, %s258
      %s273 = sphi 0, %s259
      %s277 = sphi 0, %s277
      %s279 = sphi 0, %s277
      %s280 = sphi 0, %s279
      %s294 = sphi 0, %s280
      %s298 = sphi 0, %s298
      %s300 = sphi 0, %s298
      %s301 = sphi 0, %s300
      %s315 = sphi 0, %s301
      %s319 = sphi 0, %s319
      %s321 = sphi 0, %s319
      %s322 = sphi 0, %s321
      %s336 = sphi 0, %s322
      %s340 = sphi 0, %s340
      %s342 = sphi 0, %s340
      %s343 = sphi 0, %s342
      %s357 = sphi 0, %s343
      %s361 = sphi 0, %s361
      %s363 = sphi 0, %s361
      %s364 = sphi 0, %s363
      %s378 = sphi 0, %s364
      %s382 = sphi 0, %s382
      %s384 = sphi 0, %s382
      %s385 = sphi 0, %s384
      %s399 = sphi 0, %s385
      %s407 = sphi 0, %s409
      %s410 = sphi 0, %s407
      %s411 = sphi 0, %s410
      %s427 = sphi 0, %s411
    $region4: #{tpu_custom_call.1} parent=1 // loop_header_branch
      %36 = sbr.rel (%p34) target = $region8
    $region5: #{tpu_custom_call.1} parent=1 // loop_body
      %s38 = ssub.s32 %s33, 1
      %s39 = ssub.s32 %s33, 2
      %s46 = sadd.s32 1, %s41
      %p47 = scmp.ge.s32.totalorder %s46, 1
      %s48 = scalar_select %p47, 0, %s46
      %s49 = sadd.s32 1, %s40
      %s50 = scalar_select %p47, %s49, %s40
      %p51 = scmp.ge.s32.totalorder %s50, 2
      %s52 = scalar_select %p51, 0, %s50
      %s53 = ssub.s32 %s40, %s52
      %s54 = ssub.s32 %s41, %s48
      %s55 = sor.u32 %s53, %s54
      %p56 = scmp.eq.s32.totalorder %s55, 0
      %s58 = sadd.s32 %s57, 1
      %s59 = scalar_select %p56, %s57, %s58
      %p62 = pneg %p56
      %p63 = scmp.eq.s32.totalorder %s33, 1
      %p64 = por %p62, %p63
      %p65 = scmp.ne.s32.totalorder %s57, %s60
      %p66 = scmp.eq.s32.totalorder %s33, 0
      %p67 = por %p65, %p66
      %p68 = scmp.ne.s32.totalorder %s57, %s60
      %p69 = scmp.eq.s32.totalorder %s38, 1
      %p70 = por %p68, %p69
      %p71 = scmp.ne.s32.totalorder %s60, %s61
      %p72 = scmp.eq.s32.totalorder %s38, 0
      %p73 = por %p71, %p72
      %p74 = scmp.ne.s32.totalorder %s60, %s61
      %p75 = scmp.eq.s32.totalorder %s39, 1
      %p76 = por %p74, %p75
      %p78 = scmp.ne.s32.totalorder %s61, %s77
      %p79 = scmp.eq.s32.totalorder %s39, 0
      %p80 = por %p78, %p79
      %s81 = ssub.s32 %s40, %s52
      %s82 = ssub.s32 %s41, %s48
      %s83 = sor.u32 %s81, %s82
      %p84 = scmp.eq.s32.totalorder %s83, 0
      %s86 = sadd.s32 %s85, 1
      %s87 = scalar_select %p84, %s85, %s86
      %p90 = pneg %p84
      %p91 = scmp.eq.s32.totalorder %s33, 1
      %p92 = por %p90, %p91
      %p93 = scmp.ne.s32.totalorder %s85, %s88
      %p94 = scmp.eq.s32.totalorder %s33, 0
      %p95 = por %p93, %p94
      %p96 = scmp.ne.s32.totalorder %s85, %s88
      %p97 = scmp.eq.s32.totalorder %s38, 1
      %p98 = por %p96, %p97
      %p99 = scmp.ne.s32.totalorder %s88, %s89
      %p100 = scmp.eq.s32.totalorder %s38, 0
      %p101 = por %p99, %p100
      %p102 = scmp.ne.s32.totalorder %s88, %s89
      %p103 = scmp.eq.s32.totalorder %s39, 1
      %p104 = por %p102, %p103
      %p106 = scmp.ne.s32.totalorder %s89, %s105
      %p107 = scmp.eq.s32.totalorder %s39, 0
      %p108 = por %p106, %p107
      %s110 = sadd.s32 %s109, 1
      %p113 = scmp.eq.s32.totalorder %s33, 1
      %p114 = scmp.ne.s32.totalorder %s109, %s111
      %p115 = scmp.eq.s32.totalorder %s33, 0
      %p116 = por %p114, %p115
      %p117 = scmp.ne.s32.totalorder %s109, %s111
      %p118 = scmp.eq.s32.totalorder %s38, 1
      %p119 = por %p117, %p118
      %p120 = scmp.ne.s32.totalorder %s111, %s112
      %p121 = scmp.eq.s32.totalorder %s38, 0
      %p122 = por %p120, %p121
      %p123 = scmp.ne.s32.totalorder %s111, %s112
      %p124 = scmp.eq.s32.totalorder %s39, 1
      %p125 = por %p123, %p124
      %p127 = scmp.ne.s32.totalorder %s112, %s126
      %p128 = scmp.eq.s32.totalorder %s39, 0
      %p129 = por %p127, %p128
      %s131 = sadd.s32 %s130, 1
      %p134 = scmp.eq.s32.totalorder %s33, 1
      %p135 = scmp.ne.s32.totalorder %s130, %s132
      %p136 = scmp.eq.s32.totalorder %s33, 0
      %p137 = por %p135, %p136
      %p138 = scmp.ne.s32.totalorder %s130, %s132
      %p139 = scmp.eq.s32.totalorder %s38, 1
      %p140 = por %p138, %p139
      %p141 = scmp.ne.s32.totalorder %s132, %s133
      %p142 = scmp.eq.s32.totalorder %s38, 0
      %p143 = por %p141, %p142
      %p144 = scmp.ne.s32.totalorder %s132, %s133
      %p145 = scmp.eq.s32.totalorder %s39, 1
      %p146 = por %p144, %p145
      %p148 = scmp.ne.s32.totalorder %s133, %s147
      %p149 = scmp.eq.s32.totalorder %s39, 0
      %p150 = por %p148, %p149
      %s152 = sadd.s32 %s151, 1
      %p155 = scmp.eq.s32.totalorder %s33, 1
      %p156 = scmp.ne.s32.totalorder %s151, %s153
      %p157 = scmp.eq.s32.totalorder %s33, 0
      %p158 = por %p156, %p157
      %p159 = scmp.ne.s32.totalorder %s151, %s153
      %p160 = scmp.eq.s32.totalorder %s38, 1
      %p161 = por %p159, %p160
      %p162 = scmp.ne.s32.totalorder %s153, %s154
      %p163 = scmp.eq.s32.totalorder %s38, 0
      %p164 = por %p162, %p163
      %p165 = scmp.ne.s32.totalorder %s153, %s154
      %p166 = scmp.eq.s32.totalorder %s39, 1
      %p167 = por %p165, %p166
      %p169 = scmp.ne.s32.totalorder %s154, %s168
      %p170 = scmp.eq.s32.totalorder %s39, 0
      %p171 = por %p169, %p170
      %s173 = sadd.s32 %s172, 1
      %p176 = scmp.eq.s32.totalorder %s33, 1
      %p177 = scmp.ne.s32.totalorder %s172, %s174
      %p178 = scmp.eq.s32.totalorder %s33, 0
      %p179 = por %p177, %p178
      %p180 = scmp.ne.s32.totalorder %s172, %s174
      %p181 = scmp.eq.s32.totalorder %s38, 1
      %p182 = por %p180, %p181
      %p183 = scmp.ne.s32.totalorder %s174, %s175
      %p184 = scmp.eq.s32.totalorder %s38, 0
      %p185 = por %p183, %p184
      %p186 = scmp.ne.s32.totalorder %s174, %s175
      %p187 = scmp.eq.s32.totalorder %s39, 1
      %p188 = por %p186, %p187
      %p190 = scmp.ne.s32.totalorder %s175, %s189
      %p191 = scmp.eq.s32.totalorder %s39, 0
      %p192 = por %p190, %p191
      %s194 = sadd.s32 %s193, 1
      %p197 = scmp.eq.s32.totalorder %s33, 1
      %p198 = scmp.ne.s32.totalorder %s193, %s195
      %p199 = scmp.eq.s32.totalorder %s33, 0
      %p200 = por %p198, %p199
      %p201 = scmp.ne.s32.totalorder %s193, %s195
      %p202 = scmp.eq.s32.totalorder %s38, 1
      %p203 = por %p201, %p202
      %p204 = scmp.ne.s32.totalorder %s195, %s196
      %p205 = scmp.eq.s32.totalorder %s38, 0
      %p206 = por %p204, %p205
      %p207 = scmp.ne.s32.totalorder %s195, %s196
      %p208 = scmp.eq.s32.totalorder %s39, 1
      %p209 = por %p207, %p208
      %p211 = scmp.ne.s32.totalorder %s196, %s210
      %p212 = scmp.eq.s32.totalorder %s39, 0
      %p213 = por %p211, %p212
      %s215 = sadd.s32 %s214, 1
      %p218 = scmp.eq.s32.totalorder %s33, 1
      %p219 = scmp.ne.s32.totalorder %s214, %s216
      %p220 = scmp.eq.s32.totalorder %s33, 0
      %p221 = por %p219, %p220
      %p222 = scmp.ne.s32.totalorder %s214, %s216
      %p223 = scmp.eq.s32.totalorder %s38, 1
      %p224 = por %p222, %p223
      %p225 = scmp.ne.s32.totalorder %s216, %s217
      %p226 = scmp.eq.s32.totalorder %s38, 0
      %p227 = por %p225, %p226
      %p228 = scmp.ne.s32.totalorder %s216, %s217
      %p229 = scmp.eq.s32.totalorder %s39, 1
      %p230 = por %p228, %p229
      %p232 = scmp.ne.s32.totalorder %s217, %s231
      %p233 = scmp.eq.s32.totalorder %s39, 0
      %p234 = por %p232, %p233
      %s236 = sadd.s32 %s235, 1
      %p239 = scmp.eq.s32.totalorder %s33, 1
      %p240 = scmp.ne.s32.totalorder %s235, %s237
      %p241 = scmp.eq.s32.totalorder %s33, 0
      %p242 = por %p240, %p241
      %p243 = scmp.ne.s32.totalorder %s235, %s237
      %p244 = scmp.eq.s32.totalorder %s38, 1
      %p245 = por %p243, %p244
      %p246 = scmp.ne.s32.totalorder %s237, %s238
      %p247 = scmp.eq.s32.totalorder %s38, 0
      %p248 = por %p246, %p247
      %p249 = scmp.ne.s32.totalorder %s237, %s238
      %p250 = scmp.eq.s32.totalorder %s39, 1
      %p251 = por %p249, %p250
      %p253 = scmp.ne.s32.totalorder %s238, %s252
      %p254 = scmp.eq.s32.totalorder %s39, 0
      %p255 = por %p253, %p254
      %s257 = sadd.s32 %s256, 1
      %p260 = scmp.eq.s32.totalorder %s33, 1
      %p261 = scmp.ne.s32.totalorder %s256, %s258
      %p262 = scmp.eq.s32.totalorder %s33, 0
      %p263 = por %p261, %p262
      %p264 = scmp.ne.s32.totalorder %s256, %s258
      %p265 = scmp.eq.s32.totalorder %s38, 1
      %p266 = por %p264, %p265
      %p267 = scmp.ne.s32.totalorder %s258, %s259
      %p268 = scmp.eq.s32.totalorder %s38, 0
      %p269 = por %p267, %p268
      %p270 = scmp.ne.s32.totalorder %s258, %s259
      %p271 = scmp.eq.s32.totalorder %s39, 1
      %p272 = por %p270, %p271
      %p274 = scmp.ne.s32.totalorder %s259, %s273
      %p275 = scmp.eq.s32.totalorder %s39, 0
      %p276 = por %p274, %p275
      %s278 = sadd.s32 %s277, 1
      %p281 = scmp.eq.s32.totalorder %s33, 1
      %p282 = scmp.ne.s32.totalorder %s277, %s279
      %p283 = scmp.eq.s32.totalorder %s33, 0
      %p284 = por %p282, %p283
      %p285 = scmp.ne.s32.totalorder %s277, %s279
      %p286 = scmp.eq.s32.totalorder %s38, 1
      %p287 = por %p285, %p286
      %p288 = scmp.ne.s32.totalorder %s279, %s280
      %p289 = scmp.eq.s32.totalorder %s38, 0
      %p290 = por %p288, %p289
      %p291 = scmp.ne.s32.totalorder %s279, %s280
      %p292 = scmp.eq.s32.totalorder %s39, 1
      %p293 = por %p291, %p292
      %p295 = scmp.ne.s32.totalorder %s280, %s294
      %p296 = scmp.eq.s32.totalorder %s39, 0
      %p297 = por %p295, %p296
      %s299 = sadd.s32 %s298, 1
      %p302 = scmp.eq.s32.totalorder %s33, 1
      %p303 = scmp.ne.s32.totalorder %s298, %s300
      %p304 = scmp.eq.s32.totalorder %s33, 0
      %p305 = por %p303, %p304
      %p306 = scmp.ne.s32.totalorder %s298, %s300
      %p307 = scmp.eq.s32.totalorder %s38, 1
      %p308 = por %p306, %p307
      %p309 = scmp.ne.s32.totalorder %s300, %s301
      %p310 = scmp.eq.s32.totalorder %s38, 0
      %p311 = por %p309, %p310
      %p312 = scmp.ne.s32.totalorder %s300, %s301
      %p313 = scmp.eq.s32.totalorder %s39, 1
      %p314 = por %p312, %p313
      %p316 = scmp.ne.s32.totalorder %s301, %s315
      %p317 = scmp.eq.s32.totalorder %s39, 0
      %p318 = por %p316, %p317
      %s320 = sadd.s32 %s319, 1
      %p323 = scmp.eq.s32.totalorder %s33, 1
      %p324 = scmp.ne.s32.totalorder %s319, %s321
      %p325 = scmp.eq.s32.totalorder %s33, 0
      %p326 = por %p324, %p325
      %p327 = scmp.ne.s32.totalorder %s319, %s321
      %p328 = scmp.eq.s32.totalorder %s38, 1
      %p329 = por %p327, %p328
      %p330 = scmp.ne.s32.totalorder %s321, %s322
      %p331 = scmp.eq.s32.totalorder %s38, 0
      %p332 = por %p330, %p331
      %p333 = scmp.ne.s32.totalorder %s321, %s322
      %p334 = scmp.eq.s32.totalorder %s39, 1
      %p335 = por %p333, %p334
      %p337 = scmp.ne.s32.totalorder %s322, %s336
      %p338 = scmp.eq.s32.totalorder %s39, 0
      %p339 = por %p337, %p338
      %s341 = sadd.s32 %s340, 1
      %p344 = scmp.eq.s32.totalorder %s33, 1
      %p345 = scmp.ne.s32.totalorder %s340, %s342
      %p346 = scmp.eq.s32.totalorder %s33, 0
      %p347 = por %p345, %p346
      %p348 = scmp.ne.s32.totalorder %s340, %s342
      %p349 = scmp.eq.s32.totalorder %s38, 1
      %p350 = por %p348, %p349
      %p351 = scmp.ne.s32.totalorder %s342, %s343
      %p352 = scmp.eq.s32.totalorder %s38, 0
      %p353 = por %p351, %p352
      %p354 = scmp.ne.s32.totalorder %s342, %s343
      %p355 = scmp.eq.s32.totalorder %s39, 1
      %p356 = por %p354, %p355
      %p358 = scmp.ne.s32.totalorder %s343, %s357
      %p359 = scmp.eq.s32.totalorder %s39, 0
      %p360 = por %p358, %p359
      %s362 = sadd.s32 %s361, 1
      %p365 = scmp.eq.s32.totalorder %s33, 1
      %p366 = scmp.ne.s32.totalorder %s361, %s363
      %p367 = scmp.eq.s32.totalorder %s33, 0
      %p368 = por %p366, %p367
      %p369 = scmp.ne.s32.totalorder %s361, %s363
      %p370 = scmp.eq.s32.totalorder %s38, 1
      %p371 = por %p369, %p370
      %p372 = scmp.ne.s32.totalorder %s363, %s364
      %p373 = scmp.eq.s32.totalorder %s38, 0
      %p374 = por %p372, %p373
      %p375 = scmp.ne.s32.totalorder %s363, %s364
      %p376 = scmp.eq.s32.totalorder %s39, 1
      %p377 = por %p375, %p376
      %p379 = scmp.ne.s32.totalorder %s364, %s378
      %p380 = scmp.eq.s32.totalorder %s39, 0
      %p381 = por %p379, %p380
      %s383 = sadd.s32 %s382, 1
      %p386 = scmp.eq.s32.totalorder %s33, 1
      %p387 = scmp.ne.s32.totalorder %s382, %s384
      %p388 = scmp.eq.s32.totalorder %s33, 0
      %p389 = por %p387, %p388
      %p390 = scmp.ne.s32.totalorder %s382, %s384
      %p391 = scmp.eq.s32.totalorder %s38, 1
      %p392 = por %p390, %p391
      %p393 = scmp.ne.s32.totalorder %s384, %s385
      %p394 = scmp.eq.s32.totalorder %s38, 0
      %p395 = por %p393, %p394
      %p396 = scmp.ne.s32.totalorder %s384, %s385
      %p397 = scmp.eq.s32.totalorder %s39, 1
      %p398 = por %p396, %p397
      %p400 = scmp.ne.s32.totalorder %s385, %s399
      %p401 = scmp.eq.s32.totalorder %s39, 0
      %p402 = por %p400, %p401
      %s403 = ssub.s32 %s40, %s52
      %s404 = ssub.s32 %s41, %s48
      %s405 = sor.u32 %s403, %s404
      %p406 = scmp.eq.s32.totalorder %s405, 0
      %s408 = sadd.s32 %s407, 1
      %s409 = scalar_select %p406, %s407, %s408
      %p412 = pneg %p406
      %p413 = scmp.eq.s32.totalorder %s33, 1
      %p414 = por %p412, %p413
      %p415 = scmp.ne.s32.totalorder %s407, %s410
      %p416 = scmp.eq.s32.totalorder %s33, 0
      %p417 = por %p415, %p416
      %p418 = scmp.ne.s32.totalorder %s407, %s410
      %p419 = scmp.eq.s32.totalorder %s38, 1
      %p420 = por %p418, %p419
      %p421 = scmp.ne.s32.totalorder %s410, %s411
      %p422 = scmp.eq.s32.totalorder %s38, 0
      %p423 = por %p421, %p422
      %p424 = scmp.ne.s32.totalorder %s410, %s411
      %p425 = scmp.eq.s32.totalorder %s39, 1
      %p426 = por %p424, %p425
      %p428 = scmp.ne.s32.totalorder %s411, %s427
      %p429 = scmp.eq.s32.totalorder %s39, 0
      %p430 = por %p428, %p429
      %p431 = scmp.le.s32.totalorder 1, %s33
      %p432 = scmp.lt.s32.totalorder %s33, 3
      %p433 = pnand %p431, %p432
      %p434 = pneg %p433
      // Predicated region
      $region9: #{tpu_custom_call.1} parent=5 // pred_check
        _
      $region10: #{tpu_custom_call.1} parent=5 // pred_check_branch
        %436 = sbr.rel (%p433) target = $region12
      $region11: #{tpu_custom_call.1} parent=5 // pred_region
        %s437 = ssub.s32 %s33, 1
        // Predicated region
        $region13: #{tpu_custom_call.1} parent=11 // pred_check
          %p438 = pneg %p122
        $region14: #{tpu_custom_call.1} parent=11 // pred_check_branch
          %440 = sbr.rel (%p438) target = $region16
        $region15: #{tpu_custom_call.1} parent=11 // pred_region
          _
        $region16: #{tpu_custom_call.1} parent=11 // pred_fallthru
          _
        // Predicated region
        $region17: #{tpu_custom_call.1} parent=11 // pred_check
          %p441 = pneg %p143
        $region18: #{tpu_custom_call.1} parent=11 // pred_check_branch
          %443 = sbr.rel (%p441) target = $region20
        $region19: #{tpu_custom_call.1} parent=11 // pred_region
          _
        $region20: #{tpu_custom_call.1} parent=11 // pred_fallthru
          _
        // Predicated region
        $region21: #{tpu_custom_call.1} parent=11 // pred_check
          %p444 = pneg %p164
        $region22: #{tpu_custom_call.1} parent=11 // pred_check_branch
          %446 = sbr.rel (%p444) target = $region24
        $region23: #{tpu_custom_call.1} parent=11 // pred_region
          %s448 = ssub.s32 1536, 1536
          %449 = vsyncadd [#allocation7], %s448
          %s450 = sshll.u32 [#allocation8], 4
          %s451 = int_to_ptr.vmem [resolvable:$true] %s450
          %456 = dma.hbm_to_vmem [thread:$0]  %s4, 1536, %s451, [#allocation7], 128, 128, 8
        $region24: #{tpu_custom_call.1} parent=11 // pred_fallthru
          _
        // Predicated region
        $region25: #{tpu_custom_call.1} parent=11 // pred_check
          %p457 = pneg %p185
        $region26: #{tpu_custom_call.1} parent=11 // pred_check_branch
          %459 = sbr.rel (%p457) target = $region28
        $region27: #{tpu_custom_call.1} parent=11 // pred_region
          _
        $region28: #{tpu_custom_call.1} parent=11 // pred_fallthru
          _
        // Predicated region
        $region29: #{tpu_custom_call.1} parent=11 // pred_check
          %p460 = pneg %p206
        $region30: #{tpu_custom_call.1} parent=11 // pred_check_branch
          %462 = sbr.rel (%p460) target = $region32
        $region31: #{tpu_custom_call.1} parent=11 // pred_region
          %s464 = ssub.s32 1536, 1536
          %465 = vsyncadd [#allocation10], %s464
          %s466 = sshll.u32 [#allocation9], 4
          %s467 = int_to_ptr.vmem [resolvable:$true] %s466
          %472 = dma.hbm_to_vmem [thread:$0]  %s6, 1536, %s467, [#allocation10], 128, 128, 8
        $region32: #{tpu_custom_call.1} parent=11 // pred_fallthru
          _
        // Predicated region
        $region33: #{tpu_custom_call.1} parent=11 // pred_check
          %p473 = pneg %p227
        $region34: #{tpu_custom_call.1} parent=11 // pred_check_branch
          %475 = sbr.rel (%p473) target = $region36
        $region35: #{tpu_custom_call.1} parent=11 // pred_region
          _
        $region36: #{tpu_custom_call.1} parent=11 // pred_fallthru
          _
        // Predicated region
        $region37: #{tpu_custom_call.1} parent=11 // pred_check
          %p476 = pneg %p248
        $region38: #{tpu_custom_call.1} parent=11 // pred_check_branch
          %478 = sbr.rel (%p476) target = $region40
        $region39: #{tpu_custom_call.1} parent=11 // pred_region
          %s480 = ssub.s32 1536, 1536
          %481 = vsyncadd [#allocation10], %s480
          %s482 = sshll.u32 [#allocation11], 4
          %s483 = int_to_ptr.vmem [resolvable:$true] %s482
          %488 = dma.hbm_to_vmem [thread:$0]  %s8, 1536, %s483, [#allocation10], 128, 128, 8
        $region40: #{tpu_custom_call.1} parent=11 // pred_fallthru
          _
        // Predicated region
        $region41: #{tpu_custom_call.1} parent=11 // pred_check
          %p489 = pneg %p269
        $region42: #{tpu_custom_call.1} parent=11 // pred_check_branch
          %491 = sbr.rel (%p489) target = $region44
        $region43: #{tpu_custom_call.1} parent=11 // pred_region
          _
        $region44: #{tpu_custom_call.1} parent=11 // pred_fallthru
          _
        // Predicated region
        $region45: #{tpu_custom_call.1} parent=11 // pred_check
          %p492 = pneg %p290
        $region46: #{tpu_custom_call.1} parent=11 // pred_check_branch
          %494 = sbr.rel (%p492) target = $region48
        $region47: #{tpu_custom_call.1} parent=11 // pred_region
          %s496 = ssub.s32 1536, 1536
          %497 = vsyncadd [#allocation13], %s496
          %s498 = sshll.u32 [#allocation12], 4
          %s499 = int_to_ptr.vmem [resolvable:$true] %s498
          %504 = dma.hbm_to_vmem [thread:$0]  %s10, 1536, %s499, [#allocation13], 128, 128, 8
        $region48: #{tpu_custom_call.1} parent=11 // pred_fallthru
          _
        // Predicated region
        $region49: #{tpu_custom_call.1} parent=11 // pred_check
          %p505 = pneg %p311
        $region50: #{tpu_custom_call.1} parent=11 // pred_check_branch
          %507 = sbr.rel (%p505) target = $region52
        $region51: #{tpu_custom_call.1} parent=11 // pred_region
          _
        $region52: #{tpu_custom_call.1} parent=11 // pred_fallthru
          _
        // Predicated region
        $region53: #{tpu_custom_call.1} parent=11 // pred_check
          %p508 = pneg %p332
        $region54: #{tpu_custom_call.1} parent=11 // pred_check_branch
          %510 = sbr.rel (%p508) target = $region56
        $region55: #{tpu_custom_call.1} parent=11 // pred_region
          _
        $region56: #{tpu_custom_call.1} parent=11 // pred_fallthru
          _
        // Predicated region
        $region57: #{tpu_custom_call.1} parent=11 // pred_check
          %p511 = pneg %p353
        $region58: #{tpu_custom_call.1} parent=11 // pred_check_branch
          %513 = sbr.rel (%p511) target = $region60
        $region59: #{tpu_custom_call.1} parent=11 // pred_region
          _
        $region60: #{tpu_custom_call.1} parent=11 // pred_fallthru
          _
        // Predicated region
        $region61: #{tpu_custom_call.1} parent=11 // pred_check
          %p514 = pneg %p374
        $region62: #{tpu_custom_call.1} parent=11 // pred_check_branch
          %516 = sbr.rel (%p514) target = $region64
        $region63: #{tpu_custom_call.1} parent=11 // pred_region
          _
        $region64: #{tpu_custom_call.1} parent=11 // pred_fallthru
          _
        // Predicated region
        $region65: #{tpu_custom_call.1} parent=11 // pred_check
          %p517 = pneg %p395
        $region66: #{tpu_custom_call.1} parent=11 // pred_check_branch
          %519 = sbr.rel (%p517) target = $region68
        $region67: #{tpu_custom_call.1} parent=11 // pred_region
          _
        $region68: #{tpu_custom_call.1} parent=11 // pred_fallthru
          _
      $region12: #{tpu_custom_call.1} parent=5 // pred_fallthru
        _
      %p520 = scmp.lt.s32.totalorder %s33, 2
      // Predicated region
      $region69: #{tpu_custom_call.1} parent=5 // pred_check
        %p521 = pneg %p520
      $region70: #{tpu_custom_call.1} parent=5 // pred_check_branch
        %523 = sbr.rel (%p521) target = $region72
      $region71: #{tpu_custom_call.1} parent=5 // pred_region
        // Predicated region
        $region73: #{tpu_custom_call.1} parent=71 // pred_check
          %p524 = pneg %p67
        $region74: #{tpu_custom_call.1} parent=71 // pred_check_branch
          %526 = sbr.rel (%p524) target = $region76
        $region75: #{tpu_custom_call.1} parent=71 // pred_region
          %s527 = sand.u32 %s57, 1
          %s528 = scalar_lea.sflag [#allocation4], %s527
          %s529 = sand.u32 %s57, 1
          %s530 = smul.addr %s529, 8
          %s531 = scalar_lea.vmem [#allocation3], %s530
          %s533 = ssub.s32 128, 128
          %534 = vsyncadd %s528, %s533
          %s535 = sadd.s32 %s41, %s40
          %s536 = smul.addr %s535, 128
          %s537 = scalar_lea.hbm %s0, %s536
          %s539 = sshll.u32 %s531, 4
          %s540 = int_to_ptr.vmem [resolvable:$true] %s539
          %542 = dma.hbm_to_vmem [thread:$0]  %s537, 128, %s540, %s528
        $region76: #{tpu_custom_call.1} parent=71 // pred_fallthru
          _
        // Predicated region
        $region77: #{tpu_custom_call.1} parent=71 // pred_check
          %p543 = pneg %p95
        $region78: #{tpu_custom_call.1} parent=71 // pred_check_branch
          %545 = sbr.rel (%p543) target = $region80
        $region79: #{tpu_custom_call.1} parent=71 // pred_region
          %s546 = sand.u32 %s33, 1
          %s547 = scalar_lea.sflag [#allocation7], %s546
          %s548 = sand.u32 %s85, 1
          %s549 = smul.addr %s548, 16
          %s550 = scalar_lea.vmem [#allocation6], %s549
          %s552 = ssub.s32 256, 256
          %553 = vsyncadd %s547, %s552
          %s554 = smul.addr %s41, 2
          %s555 = smul.addr %s40, 2
          %s556 = sadd.s32 %s554, %s555
          %s557 = smul.addr %s556, 128
          %s558 = scalar_lea.hbm %s1, %s557
          %s559 = sshll.u32 %s550, 4
          %s560 = int_to_ptr.vmem [resolvable:$true] %s559
          %565 = dma.hbm_to_vmem [thread:$0]  %s558, 256, %s560, %s547, 128, 128, 8
        $region80: #{tpu_custom_call.1} parent=71 // pred_fallthru
          _
      $region72: #{tpu_custom_call.1} parent=5 // pred_fallthru
        _
      %p566 = scmp.le.s32.totalorder 1, %s33
      %p567 = scmp.lt.s32.totalorder %s33, 3
      %p568 = pnand %p566, %p567
      %p569 = pneg %p568
      // Predicated region
      $region81: #{tpu_custom_call.1} parent=5 // pred_check
        _
      $region82: #{tpu_custom_call.1} parent=5 // pred_check_branch
        %571 = sbr.rel (%p568) target = $region84
      $region83: #{tpu_custom_call.1} parent=5 // pred_region
        %s572 = ssub.s32 %s33, 1
        %s573 = sand.u32 %s60, 1
        %s574 = scalar_lea.sflag [#allocation4], %s573
        %s575 = sand.u32 %s60, 1
        %s576 = smul.addr %s575, 8
        %s577 = scalar_lea.vmem [#allocation3], %s576
        // Predicated region
        $region85: #{tpu_custom_call.1} parent=83 // pred_check
          %p578 = pneg %p73
        $region86: #{tpu_custom_call.1} parent=83 // pred_check_branch
          %580 = sbr.rel (%p578) target = $region88
        $region87: #{tpu_custom_call.1} parent=83 // pred_region
          %581 = dma.done %s574, 128
        $region88: #{tpu_custom_call.1} parent=83 // pred_fallthru
          _
        %s582 = sand.u32 %s38, 1
        %s583 = scalar_lea.sflag [#allocation7], %s582
        %s584 = sand.u32 %s88, 1
        %s585 = smul.addr %s584, 16
        %s586 = scalar_lea.vmem [#allocation6], %s585
        // Predicated region
        $region89: #{tpu_custom_call.1} parent=83 // pred_check
          %p587 = pneg %p101
        $region90: #{tpu_custom_call.1} parent=83 // pred_check_branch
          %589 = sbr.rel (%p587) target = $region92
        $region91: #{tpu_custom_call.1} parent=83 // pred_region
          %590 = dma.done %s583, 256
        $region92: #{tpu_custom_call.1} parent=83 // pred_fallthru
          _
        // Predicated region
        $region93: #{tpu_custom_call.1} parent=83 // pred_check
          %p591 = pneg %p164
        $region94: #{tpu_custom_call.1} parent=83 // pred_check_branch
          %593 = sbr.rel (%p591) target = $region96
        $region95: #{tpu_custom_call.1} parent=83 // pred_region
          %594 = dma.done [#allocation7], 1536
        $region96: #{tpu_custom_call.1} parent=83 // pred_fallthru
          _
        // Predicated region
        $region97: #{tpu_custom_call.1} parent=83 // pred_check
          %p595 = pneg %p206
        $region98: #{tpu_custom_call.1} parent=83 // pred_check_branch
          %597 = sbr.rel (%p595) target = $region100
        $region99: #{tpu_custom_call.1} parent=83 // pred_region
          %598 = dma.done [#allocation10], 1536
        $region100: #{tpu_custom_call.1} parent=83 // pred_fallthru
          _
        // Predicated region
        $region101: #{tpu_custom_call.1} parent=83 // pred_check
          %p599 = pneg %p248
        $region102: #{tpu_custom_call.1} parent=83 // pred_check_branch
          %601 = sbr.rel (%p599) target = $region104
        $region103: #{tpu_custom_call.1} parent=83 // pred_region
          %602 = dma.done [#allocation10], 1536
        $region104: #{tpu_custom_call.1} parent=83 // pred_fallthru
          _
        // Predicated region
        $region105: #{tpu_custom_call.1} parent=83 // pred_check
          %p603 = pneg %p290
        $region106: #{tpu_custom_call.1} parent=83 // pred_check_branch
          %605 = sbr.rel (%p603) target = $region108
        $region107: #{tpu_custom_call.1} parent=83 // pred_region
          %606 = dma.done [#allocation13], 1536
        $region108: #{tpu_custom_call.1} parent=83 // pred_fallthru
          _
        %s607 = sand.u32 %s60, 1
        %s608 = scalar_lea.sflag [#allocation4], %s607
        %s609 = sand.u32 %s60, 1
        %s610 = smul.addr %s609, 8
        %s611 = scalar_lea.vmem [#allocation3], %s610
        %p612 = pneg %p73
        %p613 = pneg %p70
        %s614 = sand.u32 %s38, 1
        %s615 = scalar_lea.sflag [#allocation7], %s614
        %s616 = sand.u32 %s88, 1
        %s617 = smul.addr %s616, 16
        %s618 = scalar_lea.vmem [#allocation6], %s617
        %p619 = pneg %p101
        %p620 = pneg %p98
        %p621 = pneg %p122
        %p622 = pneg %p119
        %p623 = pneg %p143
        %p624 = pneg %p140
        %p625 = pneg %p164
        %p626 = pneg %p161
        %p627 = pneg %p185
        %p628 = pneg %p182
        %p629 = pneg %p206
        %p630 = pneg %p203
        %p631 = pneg %p227
        %p632 = pneg %p224
        %p633 = pneg %p248
        %p634 = pneg %p245
        %p635 = pneg %p269
        %p636 = pneg %p266
        %p637 = pneg %p290
        %p638 = pneg %p287
        %p639 = pneg %p311
        %p640 = pneg %p308
        %p641 = pneg %p332
        %p642 = pneg %p329
        %p643 = pneg %p353
        %p644 = pneg %p350
        %p645 = pneg %p374
        %p646 = pneg %p371
        %p647 = pneg %p395
        %p648 = pneg %p392
        %p649 = pneg %p423
        %p650 = pneg %p420
        %s651 = sand.u32 %s410, 1
        %s652 = scalar_lea.sflag [#allocation5], %s651
        %s653 = sand.u32 %s410, 1
        %s654 = smul.addr %s653, 8
        %s655 = scalar_lea.vmem [#allocation14], %s654
        %s656 = smul.u32 %s43, 8
        %v657 = vld [vmem:[%s586] sm:$0xff]
        %vm658 = vcmask 261120
        %659 = vst.msk [vmem:[#allocation2] sm:$0xff] %vm658, %v657
        %v660 = vld [vmem:[%s577] sm:$0xff]
        %661 = vst.msk [vmem:[#allocation2 + $0x8] sm:$0xff] %vm658, %v660
        %v662 = vld [vmem:[%s586 + $0x8] sm:$0xff]
        %663 = vst.msk [vmem:[#allocation2 + $0x10] sm:$0xff] %vm658, %v662
        %v664 = vld [vmem:[#allocation2] sm:$0xff]
        %v665 = vld [vmem:[#allocation2 + $0x8] sm:$0xff]
        %v666 = vld [vmem:[#allocation2 + $0x10] sm:$0xff]
        %v667 = vld [vmem:[%s2] sm:$0xff]
        %v668 = vld [vmem:[%s2 + $0x8] sm:$0xff]
        %v669 = vld [vmem:[%s2 + $0x10] sm:$0xff]
        %v670 = vld [vmem:[%s2 + $0x18] sm:$0xff]
        %s671 = scalar_lea.vmem %s2, 32
        %v672 = vld [vmem:[%s671] sm:$0xff]
        %v673 = vld [vmem:[%s671 + $0x8] sm:$0xff]
        %v674 = vld [vmem:[%s671 + $0x10] sm:$0xff]
        %v675 = vld [vmem:[%s671 + $0x18] sm:$0xff]
        %vm679 = vcmask 1046528
        %v680 = vrot.slane %v664, 1
        %v681 = vrot.slane %v665, 1
        %v682 = vsel %vm679, %v680, %v681
        %v683 = vrot.slane %v666, 1
        %v684 = vsel %vm679, %v681, %v683
        %v685 = vsel %vm658, %v682, 0
        %v687 = vsel %vm658, %v684, 0
        %v689 = vsel %vm658, %v683, 0
        %691 = vmatprep.subr.mxu0 0.0
        %692 = vmatpush1.msra.mxu0 %v672
        %693 = vmatprep.subr.mxu0 0.0
        %694 = vmatpush1.msra.mxu0 %v673
        %695 = vmatprep.subr.mxu0 0.0
        %696 = vmatpush1.msra.mxu0 %v674
        %697 = vmatprep.subr.mxu0 0.0
        %698 = vmatpush1.msra.mxu0 %v675
        %699 = vmatprep.subr.mxu0 0.0
        %700 = vmatpush1.msra.mxu0 0.0
        %701 = vmatprep.subr.mxu0 0.0
        %702 = vmatpush1.msra.mxu0 0.0
        %703 = vmatprep.subr.mxu0 0.0
        %704 = vmatpush1.msra.mxu0 0.0
        %705 = vmatprep.subr.mxu0 0.0
        %706 = vmatpush1.msra.mxu0 0.0
        %707 = vmatprep.subr.mxu0 0.0
        %708 = vmatpush1.msra.mxu0 0.0
        %709 = vmatprep.subr.mxu0 0.0
        %710 = vmatpush1.msra.mxu0 0.0
        %711 = vmatprep.subr.mxu0 0.0
        %712 = vmatpush1.msra.mxu0 0.0
        %713 = vmatprep.subr.mxu0 0.0
        %714 = vmatpush1.msra.mxu0 0.0
        %715 = vmatprep.subr.mxu0 0.0
        %716 = vmatpush1.msra.mxu0 0.0
        %717 = vmatprep.subr.mxu0 0.0
        %718 = vmatpush1.msra.mxu0 0.0
        %719 = vmatprep.subr.mxu0 0.0
        %720 = vmatpush1.msra.mxu0 0.0
        %721 = vmatprep.subr.mxu0 0.0
        %722 = vmatpush1.msra.mxu0 0.0
        %723 = vmatprep.subr.mxu0 0.0
        %724 = vmatpush1.msra.mxu0 0.0
        %725 = vmatprep.subr.mxu0 0.0
        %726 = vmatpush1.msra.mxu0 0.0
        %727 = vmatprep.subr.mxu0 0.0
        %728 = vmatpush1.msra.mxu0 0.0
        %729 = vmatprep.subr.mxu0 0.0
        %730 = vmatpush1.msra.mxu0 0.0
        %731 = vmatprep.subr.mxu0 0.0
        %732 = vmatpush1.msra.mxu0 0.0
        %733 = vmatprep.subr.mxu0 0.0
        %734 = vmatpush1.msra.mxu0 0.0
        %735 = vmatprep.subr.mxu0 0.0
        %736 = vmatpush1.msra.mxu0 0.0
        %737 = vmatprep.subr.mxu0 0.0
        %738 = vmatpush1.msra.mxu0 0.0
        %739 = vmatprep.subr.mxu0 0.0
        %740 = vmatpush1.msra.mxu0 0.0
        %741 = vmatprep.subr.mxu0 0.0
        %742 = vmatpush1.msra.mxu0 0.0
        %743 = vmatprep.subr.mxu0 0.0
        %744 = vmatpush1.msra.mxu0 0.0
        %745 = vmatprep.subr.mxu0 0.0
        %746 = vmatpush1.msra.mxu0 0.0
        %747 = vmatprep.subr.mxu0 0.0
        %748 = vmatpush1.msra.mxu0 0.0
        %749 = vmatprep.subr.mxu0 0.0
        %750 = vmatpush1.msra.mxu0 0.0
        %751 = vmatprep.subr.mxu0 0.0
        %752 = vmatpush1.msra.mxu0 0.0
        %753 = vmatprep.subr.mxu0 0.0
        %754 = vmatpush1.msra.mxu0 0.0
        %755 = vmatprep.mubr.f32.mxu0 0.0
        %756 = vmatmul.mubr.f32.gmra.mrb[0].mxu0 %v685
        %v757 = vpop.f32.mrb[0].mxu0
        %v758 = vadd.f32 0.0, %v757
        %v759 = vpop.f32.mrb[0].mxu0
        %760 = vmatprep.mubr.f32.mxu0 0.0
        %761 = vmatmul.mubr.f32.gmra.mrb[0].mxu0 %v687
        %v762 = vpop.f32.mrb[0].mxu0
        %v763 = vadd.f32 0.0, %v762
        %v764 = vpop.f32.mrb[0].mxu0
        %765 = vmatprep.mubr.f32.mxu0 0.0
        %766 = vmatmul.mubr.f32.gmra.mrb[0].mxu0 %v689
        %v767 = vpop.f32.mrb[0].mxu0
        %v768 = vadd.f32 0.0, %v767
        %v769 = vpop.f32.mrb[0].mxu0
        %770 = vdwg.mxu0
        %v771 = vsel %vm658, %v664, 0
        %v773 = vsel %vm658, %v665, 0
        %v775 = vsel %vm658, %v666, 0
        %777 = vmatprep.subr.mxu0 0.0
        %778 = vmatpush1.msra.mxu0 %v667
        %779 = vmatprep.subr.mxu0 0.0
        %780 = vmatpush1.msra.mxu0 %v668
        %781 = vmatprep.subr.mxu0 0.0
        %782 = vmatpush1.msra.mxu0 %v669
        %783 = vmatprep.subr.mxu0 0.0
        %784 = vmatpush1.msra.mxu0 %v670
        %785 = vmatprep.subr.mxu0 0.0
        %786 = vmatpush1.msra.mxu0 0.0
        %787 = vmatprep.subr.mxu0 0.0
        %788 = vmatpush1.msra.mxu0 0.0
        %789 = vmatprep.subr.mxu0 0.0
        %790 = vmatpush1.msra.mxu0 0.0
        %791 = vmatprep.subr.mxu0 0.0
        %792 = vmatpush1.msra.mxu0 0.0
        %793 = vmatprep.subr.mxu0 0.0
        %794 = vmatpush1.msra.mxu0 0.0
        %795 = vmatprep.subr.mxu0 0.0
        %796 = vmatpush1.msra.mxu0 0.0
        %797 = vmatprep.subr.mxu0 0.0
        %798 = vmatpush1.msra.mxu0 0.0
        %799 = vmatprep.subr.mxu0 0.0
        %800 = vmatpush1.msra.mxu0 0.0
        %801 = vmatprep.subr.mxu0 0.0
        %802 = vmatpush1.msra.mxu0 0.0
        %803 = vmatprep.subr.mxu0 0.0
        %804 = vmatpush1.msra.mxu0 0.0
        %805 = vmatprep.subr.mxu0 0.0
        %806 = vmatpush1.msra.mxu0 0.0
        %807 = vmatprep.subr.mxu0 0.0
        %808 = vmatpush1.msra.mxu0 0.0
        %809 = vmatprep.subr.mxu0 0.0
        %810 = vmatpush1.msra.mxu0 0.0
        %811 = vmatprep.subr.mxu0 0.0
        %812 = vmatpush1.msra.mxu0 0.0
        %813 = vmatprep.subr.mxu0 0.0
        %814 = vmatpush1.msra.mxu0 0.0
        %815 = vmatprep.subr.mxu0 0.0
        %816 = vmatpush1.msra.mxu0 0.0
        %817 = vmatprep.subr.mxu0 0.0
        %818 = vmatpush1.msra.mxu0 0.0
        %819 = vmatprep.subr.mxu0 0.0
        %820 = vmatpush1.msra.mxu0 0.0
        %821 = vmatprep.subr.mxu0 0.0
        %822 = vmatpush1.msra.mxu0 0.0
        %823 = vmatprep.subr.mxu0 0.0
        %824 = vmatpush1.msra.mxu0 0.0
        %825 = vmatprep.subr.mxu0 0.0
        %826 = vmatpush1.msra.mxu0 0.0
        %827 = vmatprep.subr.mxu0 0.0
        %828 = vmatpush1.msra.mxu0 0.0
        %829 = vmatprep.subr.mxu0 0.0
        %830 = vmatpush1.msra.mxu0 0.0
        %831 = vmatprep.subr.mxu0 0.0
        %832 = vmatpush1.msra.mxu0 0.0
        %833 = vmatprep.subr.mxu0 0.0
        %834 = vmatpush1.msra.mxu0 0.0
        %835 = vmatprep.subr.mxu0 0.0
        %836 = vmatpush1.msra.mxu0 0.0
        %837 = vmatprep.subr.mxu0 0.0
        %838 = vmatpush1.msra.mxu0 0.0
        %839 = vmatprep.subr.mxu0 0.0
        %840 = vmatpush1.msra.mxu0 0.0
        %841 = vmatprep.mubr.f32.mxu0 0.0
        %842 = vmatmul.mubr.f32.gmra.mrb[0].mxu0 %v771
        %v843 = vpop.f32.mrb[0].mxu0
        %v844 = vadd.f32 %v758, %v843
        %v845 = vpop.f32.mrb[0].mxu0
        %846 = vmatprep.mubr.f32.mxu0 0.0
        %847 = vmatmul.mubr.f32.gmra.mrb[0].mxu0 %v773
        %v848 = vpop.f32.mrb[0].mxu0
        %v849 = vadd.f32 %v763, %v848
        %v850 = vpop.f32.mrb[0].mxu0
        %851 = vmatprep.mubr.f32.mxu0 0.0
        %852 = vmatmul.mubr.f32.gmra.mrb[0].mxu0 %v775
        %v853 = vpop.f32.mrb[0].mxu0
        %v854 = vadd.f32 %v768, %v853
        %v855 = vpop.f32.mrb[0].mxu0
        %856 = vdwg.mxu0
        %s857 = scalar_lea.vmem %s2, 64
        %v858 = vld [vmem:[%s857] sm:$0xff]
        %v859 = vld [vmem:[%s857 + $0x8] sm:$0xff]
        %v860 = vld [vmem:[%s857 + $0x10] sm:$0xff]
        %v861 = vld [vmem:[%s857 + $0x18] sm:$0xff]
        %vm862 = vcmask 1045504
        %v863 = vrot.slane %v664, 2
        %v864 = vrot.slane %v665, 2
        %v865 = vsel %vm862, %v863, %v864
        %v866 = vrot.slane %v666, 2
        %v867 = vsel %vm862, %v864, %v866
        %v868 = vsel %vm658, %v865, 0
        %v870 = vsel %vm658, %v867, 0
        %v872 = vsel %vm658, %v866, 0
        %874 = vmatprep.subr.mxu0 0.0
        %875 = vmatpush1.msra.mxu0 %v858
        %876 = vmatprep.subr.mxu0 0.0
        %877 = vmatpush1.msra.mxu0 %v859
        %878 = vmatprep.subr.mxu0 0.0
        %879 = vmatpush1.msra.mxu0 %v860
        %880 = vmatprep.subr.mxu0 0.0
        %881 = vmatpush1.msra.mxu0 %v861
        %882 = vmatprep.subr.mxu0 0.0
        %883 = vmatpush1.msra.mxu0 0.0
        %884 = vmatprep.subr.mxu0 0.0
        %885 = vmatpush1.msra.mxu0 0.0
        %886 = vmatprep.subr.mxu0 0.0
        %887 = vmatpush1.msra.mxu0 0.0
        %888 = vmatprep.subr.mxu0 0.0
        %889 = vmatpush1.msra.mxu0 0.0
        %890 = vmatprep.subr.mxu0 0.0
        %891 = vmatpush1.msra.mxu0 0.0
        %892 = vmatprep.subr.mxu0 0.0
        %893 = vmatpush1.msra.mxu0 0.0
        %894 = vmatprep.subr.mxu0 0.0
        %895 = vmatpush1.msra.mxu0 0.0
        %896 = vmatprep.subr.mxu0 0.0
        %897 = vmatpush1.msra.mxu0 0.0
        %898 = vmatprep.subr.mxu0 0.0
        %899 = vmatpush1.msra.mxu0 0.0
        %900 = vmatprep.subr.mxu0 0.0
        %901 = vmatpush1.msra.mxu0 0.0
        %902 = vmatprep.subr.mxu0 0.0
        %903 = vmatpush1.msra.mxu0 0.0
        %904 = vmatprep.subr.mxu0 0.0
        %905 = vmatpush1.msra.mxu0 0.0
        %906 = vmatprep.subr.mxu0 0.0
        %907 = vmatpush1.msra.mxu0 0.0
        %908 = vmatprep.subr.mxu0 0.0
        %909 = vmatpush1.msra.mxu0 0.0
        %910 = vmatprep.subr.mxu0 0.0
        %911 = vmatpush1.msra.mxu0 0.0
        %912 = vmatprep.subr.mxu0 0.0
        %913 = vmatpush1.msra.mxu0 0.0
        %914 = vmatprep.subr.mxu0 0.0
        %915 = vmatpush1.msra.mxu0 0.0
        %916 = vmatprep.subr.mxu0 0.0
        %917 = vmatpush1.msra.mxu0 0.0
        %918 = vmatprep.subr.mxu0 0.0
        %919 = vmatpush1.msra.mxu0 0.0
        %920 = vmatprep.subr.mxu0 0.0
        %921 = vmatpush1.msra.mxu0 0.0
        %922 = vmatprep.subr.mxu0 0.0
        %923 = vmatpush1.msra.mxu0 0.0
        %924 = vmatprep.subr.mxu0 0.0
        %925 = vmatpush1.msra.mxu0 0.0
        %926 = vmatprep.subr.mxu0 0.0
        %927 = vmatpush1.msra.mxu0 0.0
        %928 = vmatprep.subr.mxu0 0.0
        %929 = vmatpush1.msra.mxu0 0.0
        %930 = vmatprep.subr.mxu0 0.0
        %931 = vmatpush1.msra.mxu0 0.0
        %932 = vmatprep.subr.mxu0 0.0
        %933 = vmatpush1.msra.mxu0 0.0
        %934 = vmatprep.subr.mxu0 0.0
        %935 = vmatpush1.msra.mxu0 0.0
        %936 = vmatprep.subr.mxu0 0.0
        %937 = vmatpush1.msra.mxu0 0.0
        %938 = vmatprep.mubr.f32.mxu0 0.0
        %939 = vmatmul.mubr.f32.gmra.mrb[0].mxu0 %v868
        %v940 = vpop.f32.mrb[0].mxu0
        %v941 = vadd.f32 0.0, %v940
        %v942 = vpop.f32.mrb[0].mxu0
        %943 = vmatprep.mubr.f32.mxu0 0.0
        %944 = vmatmul.mubr.f32.gmra.mrb[0].mxu0 %v870
        %v945 = vpop.f32.mrb[0].mxu0
        %v946 = vadd.f32 0.0, %v945
        %v947 = vpop.f32.mrb[0].mxu0
        %948 = vmatprep.mubr.f32.mxu0 0.0
        %949 = vmatmul.mubr.f32.gmra.mrb[0].mxu0 %v872
        %v950 = vpop.f32.mrb[0].mxu0
        %v951 = vadd.f32 0.0, %v950
        %v952 = vpop.f32.mrb[0].mxu0
        %953 = vdwg.mxu0
        %v954 = vadd.f32 %v844, %v941
        %v955 = vadd.f32 %v849, %v946
        %v956 = vadd.f32 %v854, %v951
        %v957 = vld [vmem:[%s3] sm:$0x1]
        %v959 = vlaneseq
        %v960 = vshrl.u32 %v959, 7
        %v961 = vsub.s32 0, %v960
        %v962 = vrot.slane %v957, %v961
        %v964 = vadd.f32 %v954, %v962
        %v965 = vadd.f32 %v955, %v962
        %v966 = vadd.f32 %v956, %v962
        %vm967 = vcmp.gt.f32.partialorder %v964, 0.0
        %vm968 = vcmp.gt.f32.partialorder %v965, 0.0
        %vm969 = vcmp.gt.f32.partialorder %v966, 0.0
        %v970 = vmul.f32 %v964, 0.2
        %v971 = vmul.f32 %v965, 0.2
        %v972 = vmul.f32 %v966, 0.2
        %v973 = vsel %vm967, %v964, %v970
        %v974 = vsel %vm968, %v965, %v971
        %v975 = vsel %vm969, %v966, %v972
        %s976 = sadd.s32 %s656, 4294967289
        %v977 = vlaneseq
        %v978 = vshrl.u32 %v977, 7
        %v979 = vadd.s32 %v978, 8
        %v980 = vadd.s32 %v978, 16
        %v981 = vstv %s976
        %v982 = vadd.s32 %v981, %v978
        %v983 = vadd.s32 %v981, %v979
        %v984 = vadd.s32 %v981, %v980
        %vm985 = vcmp.ge.s32.totalorder %v982, 0
        %vm986 = vcmp.ge.s32.totalorder %v983, 0
        %vm987 = vcmp.ge.s32.totalorder %v984, 0
        %vm988 = vcmp.lt.s32.totalorder %v982, 8
        %vm989 = vcmp.lt.s32.totalorder %v983, 8
        %vm990 = vcmp.lt.s32.totalorder %v984, 8
        %vm991 = vmand %vm985, %vm988
        %vm992 = vmand %vm986, %vm989
        %vm993 = vmand %vm987, %vm990
        %v994 = vsel %vm991, 1, 0
        %v995 = vsel %vm992, 1, 0
        %v996 = vsel %vm993, 1, 0
        %vm997 = vcmp.eq.s32.totalorder %v994, 1
        %vm998 = vcmp.eq.s32.totalorder %v995, 1
        %vm999 = vcmp.eq.s32.totalorder %v996, 1
        %v1000 = vsel %vm997, %v973, 0.0
        %v1001 = vsel %vm998, %v974, 0.0
        %v1002 = vsel %vm999, %v975, 0.0
        %v1003 = vld [vmem:[#allocation8] sm:$0xff]
        %v1004 = vld [vmem:[#allocation8 + $0x8] sm:$0xff]
        %v1005 = vld [vmem:[#allocation8 + $0x10] sm:$0xff]
        %v1006 = vld [vmem:[#allocation8 + $0x18] sm:$0xff]
        %s1007 = scalar_lea.vmem [#allocation8], 32
        %v1008 = vld [vmem:[%s1007] sm:$0xff]
        %v1009 = vld [vmem:[%s1007 + $0x8] sm:$0xff]
        %v1010 = vld [vmem:[%s1007 + $0x10] sm:$0xff]
        %v1011 = vld [vmem:[%s1007 + $0x18] sm:$0xff]
        %v1015 = vrot.slane %v1000, 1
        %v1016 = vrot.slane %v1001, 1
        %v1017 = vsel %vm679, %v1015, %v1016
        %v1018 = vrot.slane %v1002, 1
        %v1019 = vsel %vm679, %v1016, %v1018
        %v1020 = vsel %vm658, %v1017, 0
        %v1022 = vsel %vm658, %v1019, 0
        %v1024 = vsel %vm658, %v1018, 0
        %1026 = vmatprep.subr.mxu0 0.0
        %1027 = vmatpush1.msra.mxu0 %v1008
        %1028 = vmatprep.subr.mxu0 0.0
        %1029 = vmatpush1.msra.mxu0 %v1009
        %1030 = vmatprep.subr.mxu0 0.0
        %1031 = vmatpush1.msra.mxu0 %v1010
        %1032 = vmatprep.subr.mxu0 0.0
        %1033 = vmatpush1.msra.mxu0 %v1011
        %1034 = vmatprep.subr.mxu0 0.0
        %1035 = vmatpush1.msra.mxu0 0.0
        %1036 = vmatprep.subr.mxu0 0.0
        %1037 = vmatpush1.msra.mxu0 0.0
        %1038 = vmatprep.subr.mxu0 0.0
        %1039 = vmatpush1.msra.mxu0 0.0
        %1040 = vmatprep.subr.mxu0 0.0
        %1041 = vmatpush1.msra.mxu0 0.0
        %1042 = vmatprep.subr.mxu0 0.0
        %1043 = vmatpush1.msra.mxu0 0.0
        %1044 = vmatprep.subr.mxu0 0.0
        %1045 = vmatpush1.msra.mxu0 0.0
        %1046 = vmatprep.subr.mxu0 0.0
        %1047 = vmatpush1.msra.mxu0 0.0
        %1048 = vmatprep.subr.mxu0 0.0
        %1049 = vmatpush1.msra.mxu0 0.0
        %1050 = vmatprep.subr.mxu0 0.0
        %1051 = vmatpush1.msra.mxu0 0.0
        %1052 = vmatprep.subr.mxu0 0.0
        %1053 = vmatpush1.msra.mxu0 0.0
        %1054 = vmatprep.subr.mxu0 0.0
        %1055 = vmatpush1.msra.mxu0 0.0
        %1056 = vmatprep.subr.mxu0 0.0
        %1057 = vmatpush1.msra.mxu0 0.0
        %1058 = vmatprep.subr.mxu0 0.0
        %1059 = vmatpush1.msra.mxu0 0.0
        %1060 = vmatprep.subr.mxu0 0.0
        %1061 = vmatpush1.msra.mxu0 0.0
        %1062 = vmatprep.subr.mxu0 0.0
        %1063 = vmatpush1.msra.mxu0 0.0
        %1064 = vmatprep.subr.mxu0 0.0
        %1065 = vmatpush1.msra.mxu0 0.0
        %1066 = vmatprep.subr.mxu0 0.0
        %1067 = vmatpush1.msra.mxu0 0.0
        %1068 = vmatprep.subr.mxu0 0.0
        %1069 = vmatpush1.msra.mxu0 0.0
        %1070 = vmatprep.subr.mxu0 0.0
        %1071 = vmatpush1.msra.mxu0 0.0
        %1072 = vmatprep.subr.mxu0 0.0
        %1073 = vmatpush1.msra.mxu0 0.0
        %1074 = vmatprep.subr.mxu0 0.0
        %1075 = vmatpush1.msra.mxu0 0.0
        %1076 = vmatprep.subr.mxu0 0.0
        %1077 = vmatpush1.msra.mxu0 0.0
        %1078 = vmatprep.subr.mxu0 0.0
        %1079 = vmatpush1.msra.mxu0 0.0
        %1080 = vmatprep.subr.mxu0 0.0
        %1081 = vmatpush1.msra.mxu0 0.0
        %1082 = vmatprep.subr.mxu0 0.0
        %1083 = vmatpush1.msra.mxu0 0.0
        %1084 = vmatprep.subr.mxu0 0.0
        %1085 = vmatpush1.msra.mxu0 0.0
        %1086 = vmatprep.subr.mxu0 0.0
        %1087 = vmatpush1.msra.mxu0 0.0
        %1088 = vmatprep.subr.mxu0 0.0
        %1089 = vmatpush1.msra.mxu0 0.0
        %1090 = vmatprep.mubr.f32.mxu0 0.0
        %1091 = vmatmul.mubr.f32.gmra.mrb[0].mxu0 %v1020
        %v1092 = vpop.f32.mrb[0].mxu0
        %v1093 = vadd.f32 0.0, %v1092
        %v1094 = vpop.f32.mrb[0].mxu0
        %1095 = vmatprep.mubr.f32.mxu0 0.0
        %1096 = vmatmul.mubr.f32.gmra.mrb[0].mxu0 %v1022
        %v1097 = vpop.f32.mrb[0].mxu0
        %v1098 = vadd.f32 0.0, %v1097
        %v1099 = vpop.f32.mrb[0].mxu0
        %1100 = vmatprep.mubr.f32.mxu0 0.0
        %1101 = vmatmul.mubr.f32.gmra.mrb[0].mxu0 %v1024
        %v1102 = vpop.f32.mrb[0].mxu0
        %v1103 = vadd.f32 0.0, %v1102
        %v1104 = vpop.f32.mrb[0].mxu0
        %1105 = vdwg.mxu0
        %v1106 = vsel %vm658, %v1000, 0
        %v1108 = vsel %vm658, %v1001, 0
        %v1110 = vsel %vm658, %v1002, 0
        %1112 = vmatprep.subr.mxu0 0.0
        %1113 = vmatpush1.msra.mxu0 %v1003
        %1114 = vmatprep.subr.mxu0 0.0
        %1115 = vmatpush1.msra.mxu0 %v1004
        %1116 = vmatprep.subr.mxu0 0.0
        %1117 = vmatpush1.msra.mxu0 %v1005
        %1118 = vmatprep.subr.mxu0 0.0
        %1119 = vmatpush1.msra.mxu0 %v1006
        %1120 = vmatprep.subr.mxu0 0.0
        %1121 = vmatpush1.msra.mxu0 0.0
        %1122 = vmatprep.subr.mxu0 0.0
        %1123 = vmatpush1.msra.mxu0 0.0
        %1124 = vmatprep.subr.mxu0 0.0
        %1125 = vmatpush1.msra.mxu0 0.0
        %1126 = vmatprep.subr.mxu0 0.0
        %1127 = vmatpush1.msra.mxu0 0.0
        %1128 = vmatprep.subr.mxu0 0.0
        %1129 = vmatpush1.msra.mxu0 0.0
        %1130 = vmatprep.subr.mxu0 0.0
        %1131 = vmatpush1.msra.mxu0 0.0
        %1132 = vmatprep.subr.mxu0 0.0
        %1133 = vmatpush1.msra.mxu0 0.0
        %1134 = vmatprep.subr.mxu0 0.0
        %1135 = vmatpush1.msra.mxu0 0.0
        %1136 = vmatprep.subr.mxu0 0.0
        %1137 = vmatpush1.msra.mxu0 0.0
        %1138 = vmatprep.subr.mxu0 0.0
        %1139 = vmatpush1.msra.mxu0 0.0
        %1140 = vmatprep.subr.mxu0 0.0
        %1141 = vmatpush1.msra.mxu0 0.0
        %1142 = vmatprep.subr.mxu0 0.0
        %1143 = vmatpush1.msra.mxu0 0.0
        %1144 = vmatprep.subr.mxu0 0.0
        %1145 = vmatpush1.msra.mxu0 0.0
        %1146 = vmatprep.subr.mxu0 0.0
        %1147 = vmatpush1.msra.mxu0 0.0
        %1148 = vmatprep.subr.mxu0 0.0
        %1149 = vmatpush1.msra.mxu0 0.0
        %1150 = vmatprep.subr.mxu0 0.0
        %1151 = vmatpush1.msra.mxu0 0.0
        %1152 = vmatprep.subr.mxu0 0.0
        %1153 = vmatpush1.msra.mxu0 0.0
        %1154 = vmatprep.subr.mxu0 0.0
        %1155 = vmatpush1.msra.mxu0 0.0
        %1156 = vmatprep.subr.mxu0 0.0
        %1157 = vmatpush1.msra.mxu0 0.0
        %1158 = vmatprep.subr.mxu0 0.0
        %1159 = vmatpush1.msra.mxu0 0.0
        %1160 = vmatprep.subr.mxu0 0.0
        %1161 = vmatpush1.msra.mxu0 0.0
        %1162 = vmatprep.subr.mxu0 0.0
        %1163 = vmatpush1.msra.mxu0 0.0
        %1164 = vmatprep.subr.mxu0 0.0
        %1165 = vmatpush1.msra.mxu0 0.0
        %1166 = vmatprep.subr.mxu0 0.0
        %1167 = vmatpush1.msra.mxu0 0.0
        %1168 = vmatprep.subr.mxu0 0.0
        %1169 = vmatpush1.msra.mxu0 0.0
        %1170 = vmatprep.subr.mxu0 0.0
        %1171 = vmatpush1.msra.mxu0 0.0
        %1172 = vmatprep.subr.mxu0 0.0
        %1173 = vmatpush1.msra.mxu0 0.0
        %1174 = vmatprep.subr.mxu0 0.0
        %1175 = vmatpush1.msra.mxu0 0.0
        %1176 = vmatprep.mubr.f32.mxu0 0.0
        %1177 = vmatmul.mubr.f32.gmra.mrb[0].mxu0 %v1106
        %v1178 = vpop.f32.mrb[0].mxu0
        %v1179 = vadd.f32 %v1093, %v1178
        %v1180 = vpop.f32.mrb[0].mxu0
        %1181 = vmatprep.mubr.f32.mxu0 0.0
        %1182 = vmatmul.mubr.f32.gmra.mrb[0].mxu0 %v1108
        %v1183 = vpop.f32.mrb[0].mxu0
        %v1184 = vadd.f32 %v1098, %v1183
        %v1185 = vpop.f32.mrb[0].mxu0
        %1186 = vmatprep.mubr.f32.mxu0 0.0
        %1187 = vmatmul.mubr.f32.gmra.mrb[0].mxu0 %v1110
        %v1188 = vpop.f32.mrb[0].mxu0
        %v1189 = vadd.f32 %v1103, %v1188
        %v1190 = vpop.f32.mrb[0].mxu0
        %1191 = vdwg.mxu0
        %s1192 = scalar_lea.vmem [#allocation8], 64
        %v1193 = vld [vmem:[%s1192] sm:$0xff]
        %v1194 = vld [vmem:[%s1192 + $0x8] sm:$0xff]
        %v1195 = vld [vmem:[%s1192 + $0x10] sm:$0xff]
        %v1196 = vld [vmem:[%s1192 + $0x18] sm:$0xff]
        %v1197 = vrot.slane %v1000, 2
        %v1198 = vrot.slane %v1001, 2
        %v1199 = vsel %vm862, %v1197, %v1198
        %v1200 = vrot.slane %v1002, 2
        %v1201 = vsel %vm862, %v1198, %v1200
        %v1202 = vsel %vm658, %v1199, 0
        %v1204 = vsel %vm658, %v1201, 0
        %v1206 = vsel %vm658, %v1200, 0
        %1208 = vmatprep.subr.mxu0 0.0
        %1209 = vmatpush1.msra.mxu0 %v1193
        %1210 = vmatprep.subr.mxu0 0.0
        %1211 = vmatpush1.msra.mxu0 %v1194
        %1212 = vmatprep.subr.mxu0 0.0
        %1213 = vmatpush1.msra.mxu0 %v1195
        %1214 = vmatprep.subr.mxu0 0.0
        %1215 = vmatpush1.msra.mxu0 %v1196
        %1216 = vmatprep.subr.mxu0 0.0
        %1217 = vmatpush1.msra.mxu0 0.0
        %1218 = vmatprep.subr.mxu0 0.0
        %1219 = vmatpush1.msra.mxu0 0.0
        %1220 = vmatprep.subr.mxu0 0.0
        %1221 = vmatpush1.msra.mxu0 0.0
        %1222 = vmatprep.subr.mxu0 0.0
        %1223 = vmatpush1.msra.mxu0 0.0
        %1224 = vmatprep.subr.mxu0 0.0
        %1225 = vmatpush1.msra.mxu0 0.0
        %1226 = vmatprep.subr.mxu0 0.0
        %1227 = vmatpush1.msra.mxu0 0.0
        %1228 = vmatprep.subr.mxu0 0.0
        %1229 = vmatpush1.msra.mxu0 0.0
        %1230 = vmatprep.subr.mxu0 0.0
        %1231 = vmatpush1.msra.mxu0 0.0
        %1232 = vmatprep.subr.mxu0 0.0
        %1233 = vmatpush1.msra.mxu0 0.0
        %1234 = vmatprep.subr.mxu0 0.0
        %1235 = vmatpush1.msra.mxu0 0.0
        %1236 = vmatprep.subr.mxu0 0.0
        %1237 = vmatpush1.msra.mxu0 0.0
        %1238 = vmatprep.subr.mxu0 0.0
        %1239 = vmatpush1.msra.mxu0 0.0
        %1240 = vmatprep.subr.mxu0 0.0
        %1241 = vmatpush1.msra.mxu0 0.0
        %1242 = vmatprep.subr.mxu0 0.0
        %1243 = vmatpush1.msra.mxu0 0.0
        %1244 = vmatprep.subr.mxu0 0.0
        %1245 = vmatpush1.msra.mxu0 0.0
        %1246 = vmatprep.subr.mxu0 0.0
        %1247 = vmatpush1.msra.mxu0 0.0
        %1248 = vmatprep.subr.mxu0 0.0
        %1249 = vmatpush1.msra.mxu0 0.0
        %1250 = vmatprep.subr.mxu0 0.0
        %1251 = vmatpush1.msra.mxu0 0.0
        %1252 = vmatprep.subr.mxu0 0.0
        %1253 = vmatpush1.msra.mxu0 0.0
        %1254 = vmatprep.subr.mxu0 0.0
        %1255 = vmatpush1.msra.mxu0 0.0
        %1256 = vmatprep.subr.mxu0 0.0
        %1257 = vmatpush1.msra.mxu0 0.0
        %1258 = vmatprep.subr.mxu0 0.0
        %1259 = vmatpush1.msra.mxu0 0.0
        %1260 = vmatprep.subr.mxu0 0.0
        %1261 = vmatpush1.msra.mxu0 0.0
        %1262 = vmatprep.subr.mxu0 0.0
        %1263 = vmatpush1.msra.mxu0 0.0
        %1264 = vmatprep.subr.mxu0 0.0
        %1265 = vmatpush1.msra.mxu0 0.0
        %1266 = vmatprep.subr.mxu0 0.0
        %1267 = vmatpush1.msra.mxu0 0.0
        %1268 = vmatprep.subr.mxu0 0.0
        %1269 = vmatpush1.msra.mxu0 0.0
        %1270 = vmatprep.subr.mxu0 0.0
        %1271 = vmatpush1.msra.mxu0 0.0
        %1272 = vmatprep.mubr.f32.mxu0 0.0
        %1273 = vmatmul.mubr.f32.gmra.mrb[0].mxu0 %v1202
        %v1274 = vpop.f32.mrb[0].mxu0
        %v1275 = vadd.f32 0.0, %v1274
        %v1276 = vpop.f32.mrb[0].mxu0
        %1277 = vmatprep.mubr.f32.mxu0 0.0
        %1278 = vmatmul.mubr.f32.gmra.mrb[0].mxu0 %v1204
        %v1279 = vpop.f32.mrb[0].mxu0
        %v1280 = vadd.f32 0.0, %v1279
        %v1281 = vpop.f32.mrb[0].mxu0
        %1282 = vmatprep.mubr.f32.mxu0 0.0
        %1283 = vmatmul.mubr.f32.gmra.mrb[0].mxu0 %v1206
        %v1284 = vpop.f32.mrb[0].mxu0
        %v1285 = vadd.f32 0.0, %v1284
        %v1286 = vpop.f32.mrb[0].mxu0
        %1287 = vdwg.mxu0
        %v1288 = vadd.f32 %v1179, %v1275
        %v1289 = vadd.f32 %v1184, %v1280
        %v1290 = vadd.f32 %v1189, %v1285
        %v1291 = vld [vmem:[%s5] sm:$0x1]
        %v1293 = vlaneseq
        %v1294 = vshrl.u32 %v1293, 7
        %v1295 = vsub.s32 0, %v1294
        %v1296 = vrot.slane %v1291, %v1295
        %v1298 = vadd.f32 %v1288, %v1296
        %v1299 = vadd.f32 %v1289, %v1296
        %v1300 = vadd.f32 %v1290, %v1296
        %v1304 = vadd.f32 %v1298, %v865
        %v1305 = vadd.f32 %v1299, %v867
        %v1306 = vadd.f32 %v1300, %v866
        %s1307 = sadd.s32 %s656, 4294967290
        %v1308 = vstv %s1307
        %v1309 = vadd.s32 %v1308, %v978
        %v1310 = vadd.s32 %v1308, %v979
        %v1311 = vadd.s32 %v1308, %v980
        %vm1312 = vcmp.ge.s32.totalorder %v1309, 0
        %vm1313 = vcmp.ge.s32.totalorder %v1310, 0
        %vm1314 = vcmp.ge.s32.totalorder %v1311, 0
        %vm1315 = vcmp.lt.s32.totalorder %v1309, 8
        %vm1316 = vcmp.lt.s32.totalorder %v1310, 8
        %vm1317 = vcmp.lt.s32.totalorder %v1311, 8
        %vm1318 = vmand %vm1312, %vm1315
        %vm1319 = vmand %vm1313, %vm1316
        %vm1320 = vmand %vm1314, %vm1317
        %v1321 = vsel %vm1318, 1, 0
        %v1322 = vsel %vm1319, 1, 0
        %v1323 = vsel %vm1320, 1, 0
        %vm1324 = vcmp.eq.s32.totalorder %v1321, 1
        %vm1325 = vcmp.eq.s32.totalorder %v1322, 1
        %vm1326 = vcmp.eq.s32.totalorder %v1323, 1
        %v1327 = vsel %vm1324, %v1304, 0.0
        %v1328 = vsel %vm1325, %v1305, 0.0
        %v1329 = vsel %vm1326, %v1306, 0.0
        %v1330 = vld [vmem:[#allocation9] sm:$0xff]
        %v1331 = vld [vmem:[#allocation9 + $0x8] sm:$0xff]
        %v1332 = vld [vmem:[#allocation9 + $0x10] sm:$0xff]
        %v1333 = vld [vmem:[#allocation9 + $0x18] sm:$0xff]
        %s1334 = scalar_lea.vmem [#allocation9], 32
        %v1335 = vld [vmem:[%s1334] sm:$0xff]
        %v1336 = vld [vmem:[%s1334 + $0x8] sm:$0xff]
        %v1337 = vld [vmem:[%s1334 + $0x10] sm:$0xff]
        %v1338 = vld [vmem:[%s1334 + $0x18] sm:$0xff]
        %v1342 = vrot.slane %v1327, 1
        %v1343 = vrot.slane %v1328, 1
        %v1344 = vsel %vm679, %v1342, %v1343
        %v1345 = vrot.slane %v1329, 1
        %v1346 = vsel %vm679, %v1343, %v1345
        %v1347 = vsel %vm658, %v1344, 0
        %v1349 = vsel %vm658, %v1346, 0
        %v1351 = vsel %vm658, %v1345, 0
        %1353 = vmatprep.subr.mxu0 0.0
        %1354 = vmatpush1.msra.mxu0 %v1335
        %1355 = vmatprep.subr.mxu0 0.0
        %1356 = vmatpush1.msra.mxu0 %v1336
        %1357 = vmatprep.subr.mxu0 0.0
        %1358 = vmatpush1.msra.mxu0 %v1337
        %1359 = vmatprep.subr.mxu0 0.0
        %1360 = vmatpush1.msra.mxu0 %v1338
        %1361 = vmatprep.subr.mxu0 0.0
        %1362 = vmatpush1.msra.mxu0 0.0
        %1363 = vmatprep.subr.mxu0 0.0
        %1364 = vmatpush1.msra.mxu0 0.0
        %1365 = vmatprep.subr.mxu0 0.0
        %1366 = vmatpush1.msra.mxu0 0.0
        %1367 = vmatprep.subr.mxu0 0.0
        %1368 = vmatpush1.msra.mxu0 0.0
        %1369 = vmatprep.subr.mxu0 0.0
        %1370 = vmatpush1.msra.mxu0 0.0
        %1371 = vmatprep.subr.mxu0 0.0
        %1372 = vmatpush1.msra.mxu0 0.0
        %1373 = vmatprep.subr.mxu0 0.0
        %1374 = vmatpush1.msra.mxu0 0.0
        %1375 = vmatprep.subr.mxu0 0.0
        %1376 = vmatpush1.msra.mxu0 0.0
        %1377 = vmatprep.subr.mxu0 0.0
        %1378 = vmatpush1.msra.mxu0 0.0
        %1379 = vmatprep.subr.mxu0 0.0
        %1380 = vmatpush1.msra.mxu0 0.0
        %1381 = vmatprep.subr.mxu0 0.0
        %1382 = vmatpush1.msra.mxu0 0.0
        %1383 = vmatprep.subr.mxu0 0.0
        %1384 = vmatpush1.msra.mxu0 0.0
        %1385 = vmatprep.subr.mxu0 0.0
        %1386 = vmatpush1.msra.mxu0 0.0
        %1387 = vmatprep.subr.mxu0 0.0
        %1388 = vmatpush1.msra.mxu0 0.0
        %1389 = vmatprep.subr.mxu0 0.0
        %1390 = vmatpush1.msra.mxu0 0.0
        %1391 = vmatprep.subr.mxu0 0.0
        %1392 = vmatpush1.msra.mxu0 0.0
        %1393 = vmatprep.subr.mxu0 0.0
        %1394 = vmatpush1.msra.mxu0 0.0
        %1395 = vmatprep.subr.mxu0 0.0
        %1396 = vmatpush1.msra.mxu0 0.0
        %1397 = vmatprep.subr.mxu0 0.0
        %1398 = vmatpush1.msra.mxu0 0.0
        %1399 = vmatprep.subr.mxu0 0.0
        %1400 = vmatpush1.msra.mxu0 0.0
        %1401 = vmatprep.subr.mxu0 0.0
        %1402 = vmatpush1.msra.mxu0 0.0
        %1403 = vmatprep.subr.mxu0 0.0
        %1404 = vmatpush1.msra.mxu0 0.0
        %1405 = vmatprep.subr.mxu0 0.0
        %1406 = vmatpush1.msra.mxu0 0.0
        %1407 = vmatprep.subr.mxu0 0.0
        %1408 = vmatpush1.msra.mxu0 0.0
        %1409 = vmatprep.subr.mxu0 0.0
        %1410 = vmatpush1.msra.mxu0 0.0
        %1411 = vmatprep.subr.mxu0 0.0
        %1412 = vmatpush1.msra.mxu0 0.0
        %1413 = vmatprep.subr.mxu0 0.0
        %1414 = vmatpush1.msra.mxu0 0.0
        %1415 = vmatprep.subr.mxu0 0.0
        %1416 = vmatpush1.msra.mxu0 0.0
        %1417 = vmatprep.mubr.f32.mxu0 0.0
        %1418 = vmatmul.mubr.f32.gmra.mrb[0].mxu0 %v1347
        %v1419 = vpop.f32.mrb[0].mxu0
        %v1420 = vadd.f32 0.0, %v1419
        %v1421 = vpop.f32.mrb[0].mxu0
        %1422 = vmatprep.mubr.f32.mxu0 0.0
        %1423 = vmatmul.mubr.f32.gmra.mrb[0].mxu0 %v1349
        %v1424 = vpop.f32.mrb[0].mxu0
        %v1425 = vadd.f32 0.0, %v1424
        %v1426 = vpop.f32.mrb[0].mxu0
        %1427 = vmatprep.mubr.f32.mxu0 0.0
        %1428 = vmatmul.mubr.f32.gmra.mrb[0].mxu0 %v1351
        %v1429 = vpop.f32.mrb[0].mxu0
        %v1430 = vadd.f32 0.0, %v1429
        %v1431 = vpop.f32.mrb[0].mxu0
        %1432 = vdwg.mxu0
        %v1433 = vsel %vm658, %v1327, 0
        %v1435 = vsel %vm658, %v1328, 0
        %v1437 = vsel %vm658, %v1329, 0
        %1439 = vmatprep.subr.mxu0 0.0
        %1440 = vmatpush1.msra.mxu0 %v1330
        %1441 = vmatprep.subr.mxu0 0.0
        %1442 = vmatpush1.msra.mxu0 %v1331
        %1443 = vmatprep.subr.mxu0 0.0
        %1444 = vmatpush1.msra.mxu0 %v1332
        %1445 = vmatprep.subr.mxu0 0.0
        %1446 = vmatpush1.msra.mxu0 %v1333
        %1447 = vmatprep.subr.mxu0 0.0
        %1448 = vmatpush1.msra.mxu0 0.0
        %1449 = vmatprep.subr.mxu0 0.0
        %1450 = vmatpush1.msra.mxu0 0.0
        %1451 = vmatprep.subr.mxu0 0.0
        %1452 = vmatpush1.msra.mxu0 0.0
        %1453 = vmatprep.subr.mxu0 0.0
        %1454 = vmatpush1.msra.mxu0 0.0
        %1455 = vmatprep.subr.mxu0 0.0
        %1456 = vmatpush1.msra.mxu0 0.0
        %1457 = vmatprep.subr.mxu0 0.0
        %1458 = vmatpush1.msra.mxu0 0.0
        %1459 = vmatprep.subr.mxu0 0.0
        %1460 = vmatpush1.msra.mxu0 0.0
        %1461 = vmatprep.subr.mxu0 0.0
        %1462 = vmatpush1.msra.mxu0 0.0
        %1463 = vmatprep.subr.mxu0 0.0
        %1464 = vmatpush1.msra.mxu0 0.0
        %1465 = vmatprep.subr.mxu0 0.0
        %1466 = vmatpush1.msra.mxu0 0.0
        %1467 = vmatprep.subr.mxu0 0.0
        %1468 = vmatpush1.msra.mxu0 0.0
        %1469 = vmatprep.subr.mxu0 0.0
        %1470 = vmatpush1.msra.mxu0 0.0
        %1471 = vmatprep.subr.mxu0 0.0
        %1472 = vmatpush1.msra.mxu0 0.0
        %1473 = vmatprep.subr.mxu0 0.0
        %1474 = vmatpush1.msra.mxu0 0.0
        %1475 = vmatprep.subr.mxu0 0.0
        %1476 = vmatpush1.msra.mxu0 0.0
        %1477 = vmatprep.subr.mxu0 0.0
        %1478 = vmatpush1.msra.mxu0 0.0
        %1479 = vmatprep.subr.mxu0 0.0
        %1480 = vmatpush1.msra.mxu0 0.0
        %1481 = vmatprep.subr.mxu0 0.0
        %1482 = vmatpush1.msra.mxu0 0.0
        %1483 = vmatprep.subr.mxu0 0.0
        %1484 = vmatpush1.msra.mxu0 0.0
        %1485 = vmatprep.subr.mxu0 0.0
        %1486 = vmatpush1.msra.mxu0 0.0
        %1487 = vmatprep.subr.mxu0 0.0
        %1488 = vmatpush1.msra.mxu0 0.0
        %1489 = vmatprep.subr.mxu0 0.0
        %1490 = vmatpush1.msra.mxu0 0.0
        %1491 = vmatprep.subr.mxu0 0.0
        %1492 = vmatpush1.msra.mxu0 0.0
        %1493 = vmatprep.subr.mxu0 0.0
        %1494 = vmatpush1.msra.mxu0 0.0
        %1495 = vmatprep.subr.mxu0 0.0
        %1496 = vmatpush1.msra.mxu0 0.0
        %1497 = vmatprep.subr.mxu0 0.0
        %1498 = vmatpush1.msra.mxu0 0.0
        %1499 = vmatprep.subr.mxu0 0.0
        %1500 = vmatpush1.msra.mxu0 0.0
        %1501 = vmatprep.subr.mxu0 0.0
        %1502 = vmatpush1.msra.mxu0 0.0
        %1503 = vmatprep.mubr.f32.mxu0 0.0
        %1504 = vmatmul.mubr.f32.gmra.mrb[0].mxu0 %v1433
        %v1505 = vpop.f32.mrb[0].mxu0
        %v1506 = vadd.f32 %v1420, %v1505
        %v1507 = vpop.f32.mrb[0].mxu0
        %1508 = vmatprep.mubr.f32.mxu0 0.0
        %1509 = vmatmul.mubr.f32.gmra.mrb[0].mxu0 %v1435
        %v1510 = vpop.f32.mrb[0].mxu0
        %v1511 = vadd.f32 %v1425, %v1510
        %v1512 = vpop.f32.mrb[0].mxu0
        %1513 = vmatprep.mubr.f32.mxu0 0.0
        %1514 = vmatmul.mubr.f32.gmra.mrb[0].mxu0 %v1437
        %v1515 = vpop.f32.mrb[0].mxu0
        %v1516 = vadd.f32 %v1430, %v1515
        %v1517 = vpop.f32.mrb[0].mxu0
        %1518 = vdwg.mxu0
        %s1519 = scalar_lea.vmem [#allocation9], 64
        %v1520 = vld [vmem:[%s1519] sm:$0xff]
        %v1521 = vld [vmem:[%s1519 + $0x8] sm:$0xff]
        %v1522 = vld [vmem:[%s1519 + $0x10] sm:$0xff]
        %v1523 = vld [vmem:[%s1519 + $0x18] sm:$0xff]
        %v1524 = vrot.slane %v1327, 2
        %v1525 = vrot.slane %v1328, 2
        %v1526 = vsel %vm862, %v1524, %v1525
        %v1527 = vrot.slane %v1329, 2
        %v1528 = vsel %vm862, %v1525, %v1527
        %v1529 = vsel %vm658, %v1526, 0
        %v1531 = vsel %vm658, %v1528, 0
        %v1533 = vsel %vm658, %v1527, 0
        %1535 = vmatprep.subr.mxu0 0.0
        %1536 = vmatpush1.msra.mxu0 %v1520
        %1537 = vmatprep.subr.mxu0 0.0
        %1538 = vmatpush1.msra.mxu0 %v1521
        %1539 = vmatprep.subr.mxu0 0.0
        %1540 = vmatpush1.msra.mxu0 %v1522
        %1541 = vmatprep.subr.mxu0 0.0
        %1542 = vmatpush1.msra.mxu0 %v1523
        %1543 = vmatprep.subr.mxu0 0.0
        %1544 = vmatpush1.msra.mxu0 0.0
        %1545 = vmatprep.subr.mxu0 0.0
        %1546 = vmatpush1.msra.mxu0 0.0
        %1547 = vmatprep.subr.mxu0 0.0
        %1548 = vmatpush1.msra.mxu0 0.0
        %1549 = vmatprep.subr.mxu0 0.0
        %1550 = vmatpush1.msra.mxu0 0.0
        %1551 = vmatprep.subr.mxu0 0.0
        %1552 = vmatpush1.msra.mxu0 0.0
        %1553 = vmatprep.subr.mxu0 0.0
        %1554 = vmatpush1.msra.mxu0 0.0
        %1555 = vmatprep.subr.mxu0 0.0
        %1556 = vmatpush1.msra.mxu0 0.0
        %1557 = vmatprep.subr.mxu0 0.0
        %1558 = vmatpush1.msra.mxu0 0.0
        %1559 = vmatprep.subr.mxu0 0.0
        %1560 = vmatpush1.msra.mxu0 0.0
        %1561 = vmatprep.subr.mxu0 0.0
        %1562 = vmatpush1.msra.mxu0 0.0
        %1563 = vmatprep.subr.mxu0 0.0
        %1564 = vmatpush1.msra.mxu0 0.0
        %1565 = vmatprep.subr.mxu0 0.0
        %1566 = vmatpush1.msra.mxu0 0.0
        %1567 = vmatprep.subr.mxu0 0.0
        %1568 = vmatpush1.msra.mxu0 0.0
        %1569 = vmatprep.subr.mxu0 0.0
        %1570 = vmatpush1.msra.mxu0 0.0
        %1571 = vmatprep.subr.mxu0 0.0
        %1572 = vmatpush1.msra.mxu0 0.0
        %1573 = vmatprep.subr.mxu0 0.0
        %1574 = vmatpush1.msra.mxu0 0.0
        %1575 = vmatprep.subr.mxu0 0.0
        %1576 = vmatpush1.msra.mxu0 0.0
        %1577 = vmatprep.subr.mxu0 0.0
        %1578 = vmatpush1.msra.mxu0 0.0
        %1579 = vmatprep.subr.mxu0 0.0
        %1580 = vmatpush1.msra.mxu0 0.0
        %1581 = vmatprep.subr.mxu0 0.0
        %1582 = vmatpush1.msra.mxu0 0.0
        %1583 = vmatprep.subr.mxu0 0.0
        %1584 = vmatpush1.msra.mxu0 0.0
        %1585 = vmatprep.subr.mxu0 0.0
        %1586 = vmatpush1.msra.mxu0 0.0
        %1587 = vmatprep.subr.mxu0 0.0
        %1588 = vmatpush1.msra.mxu0 0.0
        %1589 = vmatprep.subr.mxu0 0.0
        %1590 = vmatpush1.msra.mxu0 0.0
        %1591 = vmatprep.subr.mxu0 0.0
        %1592 = vmatpush1.msra.mxu0 0.0
        %1593 = vmatprep.subr.mxu0 0.0
        %1594 = vmatpush1.msra.mxu0 0.0
        %1595 = vmatprep.subr.mxu0 0.0
        %1596 = vmatpush1.msra.mxu0 0.0
        %1597 = vmatprep.subr.mxu0 0.0
        %1598 = vmatpush1.msra.mxu0 0.0
        %1599 = vmatprep.mubr.f32.mxu0 0.0
        %1600 = vmatmul.mubr.f32.gmra.mrb[0].mxu0 %v1529
        %v1601 = vpop.f32.mrb[0].mxu0
        %v1602 = vadd.f32 0.0, %v1601
        %v1603 = vpop.f32.mrb[0].mxu0
        %1604 = vmatprep.mubr.f32.mxu0 0.0
        %1605 = vmatmul.mubr.f32.gmra.mrb[0].mxu0 %v1531
        %v1606 = vpop.f32.mrb[0].mxu0
        %v1607 = vadd.f32 0.0, %v1606
        %v1608 = vpop.f32.mrb[0].mxu0
        %1609 = vmatprep.mubr.f32.mxu0 0.0
        %1610 = vmatmul.mubr.f32.gmra.mrb[0].mxu0 %v1533
        %v1611 = vpop.f32.mrb[0].mxu0
        %v1612 = vadd.f32 0.0, %v1611
        %v1613 = vpop.f32.mrb[0].mxu0
        %1614 = vdwg.mxu0
        %v1615 = vadd.f32 %v1506, %v1602
        %v1616 = vadd.f32 %v1511, %v1607
        %v1617 = vadd.f32 %v1516, %v1612
        %v1618 = vld [vmem:[%s7] sm:$0x1]
        %v1620 = vlaneseq
        %v1621 = vshrl.u32 %v1620, 7
        %v1622 = vsub.s32 0, %v1621
        %v1623 = vrot.slane %v1618, %v1622
        %v1625 = vadd.f32 %v1615, %v1623
        %v1626 = vadd.f32 %v1616, %v1623
        %v1627 = vadd.f32 %v1617, %v1623
        %vm1628 = vcmp.gt.f32.partialorder %v1625, 0.0
        %vm1629 = vcmp.gt.f32.partialorder %v1626, 0.0
        %vm1630 = vcmp.gt.f32.partialorder %v1627, 0.0
        %v1631 = vmul.f32 %v1625, 0.2
        %v1632 = vmul.f32 %v1626, 0.2
        %v1633 = vmul.f32 %v1627, 0.2
        %v1634 = vsel %vm1628, %v1625, %v1631
        %v1635 = vsel %vm1629, %v1626, %v1632
        %v1636 = vsel %vm1630, %v1627, %v1633
        %s1637 = sadd.s32 %s656, 4294967291
        %v1638 = vstv %s1637
        %v1639 = vadd.s32 %v1638, %v978
        %v1640 = vadd.s32 %v1638, %v979
        %v1641 = vadd.s32 %v1638, %v980
        %vm1642 = vcmp.ge.s32.totalorder %v1639, 0
        %vm1643 = vcmp.ge.s32.totalorder %v1640, 0
        %vm1644 = vcmp.ge.s32.totalorder %v1641, 0
        %vm1645 = vcmp.lt.s32.totalorder %v1639, 8
        %vm1646 = vcmp.lt.s32.totalorder %v1640, 8
        %vm1647 = vcmp.lt.s32.totalorder %v1641, 8
        %vm1648 = vmand %vm1642, %vm1645
        %vm1649 = vmand %vm1643, %vm1646
        %vm1650 = vmand %vm1644, %vm1647
        %v1651 = vsel %vm1648, 1, 0
        %v1652 = vsel %vm1649, 1, 0
        %v1653 = vsel %vm1650, 1, 0
        %vm1654 = vcmp.eq.s32.totalorder %v1651, 1
        %vm1655 = vcmp.eq.s32.totalorder %v1652, 1
        %vm1656 = vcmp.eq.s32.totalorder %v1653, 1
        %v1657 = vsel %vm1654, %v1634, 0.0
        %v1658 = vsel %vm1655, %v1635, 0.0
        %v1659 = vsel %vm1656, %v1636, 0.0
        %v1660 = vld [vmem:[#allocation11] sm:$0xff]
        %v1661 = vld [vmem:[#allocation11 + $0x8] sm:$0xff]
        %v1662 = vld [vmem:[#allocation11 + $0x10] sm:$0xff]
        %v1663 = vld [vmem:[#allocation11 + $0x18] sm:$0xff]
        %s1664 = scalar_lea.vmem [#allocation11], 32
        %v1665 = vld [vmem:[%s1664] sm:$0xff]
        %v1666 = vld [vmem:[%s1664 + $0x8] sm:$0xff]
        %v1667 = vld [vmem:[%s1664 + $0x10] sm:$0xff]
        %v1668 = vld [vmem:[%s1664 + $0x18] sm:$0xff]
        %v1672 = vrot.slane %v1657, 1
        %v1673 = vrot.slane %v1658, 1
        %v1674 = vsel %vm679, %v1672, %v1673
        %v1675 = vrot.slane %v1659, 1
        %v1676 = vsel %vm679, %v1673, %v1675
        %v1677 = vsel %vm658, %v1674, 0
        %v1679 = vsel %vm658, %v1676, 0
        %1681 = vmatprep.subr.mxu0 0.0
        %1682 = vmatpush1.msra.mxu0 %v1665
        %1683 = vmatprep.subr.mxu0 0.0
        %1684 = vmatpush1.msra.mxu0 %v1666
        %1685 = vmatprep.subr.mxu0 0.0
        %1686 = vmatpush1.msra.mxu0 %v1667
        %1687 = vmatprep.subr.mxu0 0.0
        %1688 = vmatpush1.msra.mxu0 %v1668
        %1689 = vmatprep.subr.mxu0 0.0
        %1690 = vmatpush1.msra.mxu0 0.0
        %1691 = vmatprep.subr.mxu0 0.0
        %1692 = vmatpush1.msra.mxu0 0.0
        %1693 = vmatprep.subr.mxu0 0.0
        %1694 = vmatpush1.msra.mxu0 0.0
        %1695 = vmatprep.subr.mxu0 0.0
        %1696 = vmatpush1.msra.mxu0 0.0
        %1697 = vmatprep.subr.mxu0 0.0
        %1698 = vmatpush1.msra.mxu0 0.0
        %1699 = vmatprep.subr.mxu0 0.0
        %1700 = vmatpush1.msra.mxu0 0.0
        %1701 = vmatprep.subr.mxu0 0.0
        %1702 = vmatpush1.msra.mxu0 0.0
        %1703 = vmatprep.subr.mxu0 0.0
        %1704 = vmatpush1.msra.mxu0 0.0
        %1705 = vmatprep.subr.mxu0 0.0
        %1706 = vmatpush1.msra.mxu0 0.0
        %1707 = vmatprep.subr.mxu0 0.0
        %1708 = vmatpush1.msra.mxu0 0.0
        %1709 = vmatprep.subr.mxu0 0.0
        %1710 = vmatpush1.msra.mxu0 0.0
        %1711 = vmatprep.subr.mxu0 0.0
        %1712 = vmatpush1.msra.mxu0 0.0
        %1713 = vmatprep.subr.mxu0 0.0
        %1714 = vmatpush1.msra.mxu0 0.0
        %1715 = vmatprep.subr.mxu0 0.0
        %1716 = vmatpush1.msra.mxu0 0.0
        %1717 = vmatprep.subr.mxu0 0.0
        %1718 = vmatpush1.msra.mxu0 0.0
        %1719 = vmatprep.subr.mxu0 0.0
        %1720 = vmatpush1.msra.mxu0 0.0
        %1721 = vmatprep.subr.mxu0 0.0
        %1722 = vmatpush1.msra.mxu0 0.0
        %1723 = vmatprep.subr.mxu0 0.0
        %1724 = vmatpush1.msra.mxu0 0.0
        %1725 = vmatprep.subr.mxu0 0.0
        %1726 = vmatpush1.msra.mxu0 0.0
        %1727 = vmatprep.subr.mxu0 0.0
        %1728 = vmatpush1.msra.mxu0 0.0
        %1729 = vmatprep.subr.mxu0 0.0
        %1730 = vmatpush1.msra.mxu0 0.0
        %1731 = vmatprep.subr.mxu0 0.0
        %1732 = vmatpush1.msra.mxu0 0.0
        %1733 = vmatprep.subr.mxu0 0.0
        %1734 = vmatpush1.msra.mxu0 0.0
        %1735 = vmatprep.subr.mxu0 0.0
        %1736 = vmatpush1.msra.mxu0 0.0
        %1737 = vmatprep.subr.mxu0 0.0
        %1738 = vmatpush1.msra.mxu0 0.0
        %1739 = vmatprep.subr.mxu0 0.0
        %1740 = vmatpush1.msra.mxu0 0.0
        %1741 = vmatprep.subr.mxu0 0.0
        %1742 = vmatpush1.msra.mxu0 0.0
        %1743 = vmatprep.subr.mxu0 0.0
        %1744 = vmatpush1.msra.mxu0 0.0
        %1745 = vmatprep.mubr.f32.mxu0 0.0
        %1746 = vmatmul.mubr.f32.gmra.mrb[0].mxu0 %v1677
        %v1747 = vpop.f32.mrb[0].mxu0
        %v1748 = vadd.f32 0.0, %v1747
        %v1749 = vpop.f32.mrb[0].mxu0
        %1750 = vmatprep.mubr.f32.mxu0 0.0
        %1751 = vmatmul.mubr.f32.gmra.mrb[0].mxu0 %v1679
        %v1752 = vpop.f32.mrb[0].mxu0
        %v1753 = vadd.f32 0.0, %v1752
        %v1754 = vpop.f32.mrb[0].mxu0
        %1755 = vdwg.mxu0
        %v1756 = vsel %vm658, %v1657, 0
        %v1758 = vsel %vm658, %v1658, 0
        %1760 = vmatprep.subr.mxu0 0.0
        %1761 = vmatpush1.msra.mxu0 %v1660
        %1762 = vmatprep.subr.mxu0 0.0
        %1763 = vmatpush1.msra.mxu0 %v1661
        %1764 = vmatprep.subr.mxu0 0.0
        %1765 = vmatpush1.msra.mxu0 %v1662
        %1766 = vmatprep.subr.mxu0 0.0
        %1767 = vmatpush1.msra.mxu0 %v1663
        %1768 = vmatprep.subr.mxu0 0.0
        %1769 = vmatpush1.msra.mxu0 0.0
        %1770 = vmatprep.subr.mxu0 0.0
        %1771 = vmatpush1.msra.mxu0 0.0
        %1772 = vmatprep.subr.mxu0 0.0
        %1773 = vmatpush1.msra.mxu0 0.0
        %1774 = vmatprep.subr.mxu0 0.0
        %1775 = vmatpush1.msra.mxu0 0.0
        %1776 = vmatprep.subr.mxu0 0.0
        %1777 = vmatpush1.msra.mxu0 0.0
        %1778 = vmatprep.subr.mxu0 0.0
        %1779 = vmatpush1.msra.mxu0 0.0
        %1780 = vmatprep.subr.mxu0 0.0
        %1781 = vmatpush1.msra.mxu0 0.0
        %1782 = vmatprep.subr.mxu0 0.0
        %1783 = vmatpush1.msra.mxu0 0.0
        %1784 = vmatprep.subr.mxu0 0.0
        %1785 = vmatpush1.msra.mxu0 0.0
        %1786 = vmatprep.subr.mxu0 0.0
        %1787 = vmatpush1.msra.mxu0 0.0
        %1788 = vmatprep.subr.mxu0 0.0
        %1789 = vmatpush1.msra.mxu0 0.0
        %1790 = vmatprep.subr.mxu0 0.0
        %1791 = vmatpush1.msra.mxu0 0.0
        %1792 = vmatprep.subr.mxu0 0.0
        %1793 = vmatpush1.msra.mxu0 0.0
        %1794 = vmatprep.subr.mxu0 0.0
        %1795 = vmatpush1.msra.mxu0 0.0
        %1796 = vmatprep.subr.mxu0 0.0
        %1797 = vmatpush1.msra.mxu0 0.0
        %1798 = vmatprep.subr.mxu0 0.0
        %1799 = vmatpush1.msra.mxu0 0.0
        %1800 = vmatprep.subr.mxu0 0.0
        %1801 = vmatpush1.msra.mxu0 0.0
        %1802 = vmatprep.subr.mxu0 0.0
        %1803 = vmatpush1.msra.mxu0 0.0
        %1804 = vmatprep.subr.mxu0 0.0
        %1805 = vmatpush1.msra.mxu0 0.0
        %1806 = vmatprep.subr.mxu0 0.0
        %1807 = vmatpush1.msra.mxu0 0.0
        %1808 = vmatprep.subr.mxu0 0.0
        %1809 = vmatpush1.msra.mxu0 0.0
        %1810 = vmatprep.subr.mxu0 0.0
        %1811 = vmatpush1.msra.mxu0 0.0
        %1812 = vmatprep.subr.mxu0 0.0
        %1813 = vmatpush1.msra.mxu0 0.0
        %1814 = vmatprep.subr.mxu0 0.0
        %1815 = vmatpush1.msra.mxu0 0.0
        %1816 = vmatprep.subr.mxu0 0.0
        %1817 = vmatpush1.msra.mxu0 0.0
        %1818 = vmatprep.subr.mxu0 0.0
        %1819 = vmatpush1.msra.mxu0 0.0
        %1820 = vmatprep.subr.mxu0 0.0
        %1821 = vmatpush1.msra.mxu0 0.0
        %1822 = vmatprep.subr.mxu0 0.0
        %1823 = vmatpush1.msra.mxu0 0.0
        %1824 = vmatprep.mubr.f32.mxu0 0.0
        %1825 = vmatmul.mubr.f32.gmra.mrb[0].mxu0 %v1756
        %v1826 = vpop.f32.mrb[0].mxu0
        %v1827 = vadd.f32 %v1748, %v1826
        %v1828 = vpop.f32.mrb[0].mxu0
        %1829 = vmatprep.mubr.f32.mxu0 0.0
        %1830 = vmatmul.mubr.f32.gmra.mrb[0].mxu0 %v1758
        %v1831 = vpop.f32.mrb[0].mxu0
        %v1832 = vadd.f32 %v1753, %v1831
        %v1833 = vpop.f32.mrb[0].mxu0
        %1834 = vdwg.mxu0
        %s1835 = scalar_lea.vmem [#allocation11], 64
        %v1836 = vld [vmem:[%s1835] sm:$0xff]
        %v1837 = vld [vmem:[%s1835 + $0x8] sm:$0xff]
        %v1838 = vld [vmem:[%s1835 + $0x10] sm:$0xff]
        %v1839 = vld [vmem:[%s1835 + $0x18] sm:$0xff]
        %v1840 = vrot.slane %v1657, 2
        %v1841 = vrot.slane %v1658, 2
        %v1842 = vsel %vm862, %v1840, %v1841
        %v1843 = vrot.slane %v1659, 2
        %v1844 = vsel %vm862, %v1841, %v1843
        %v1845 = vsel %vm658, %v1842, 0
        %v1847 = vsel %vm658, %v1844, 0
        %1849 = vmatprep.subr.mxu0 0.0
        %1850 = vmatpush1.msra.mxu0 %v1836
        %1851 = vmatprep.subr.mxu0 0.0
        %1852 = vmatpush1.msra.mxu0 %v1837
        %1853 = vmatprep.subr.mxu0 0.0
        %1854 = vmatpush1.msra.mxu0 %v1838
        %1855 = vmatprep.subr.mxu0 0.0
        %1856 = vmatpush1.msra.mxu0 %v1839
        %1857 = vmatprep.subr.mxu0 0.0
        %1858 = vmatpush1.msra.mxu0 0.0
        %1859 = vmatprep.subr.mxu0 0.0
        %1860 = vmatpush1.msra.mxu0 0.0
        %1861 = vmatprep.subr.mxu0 0.0
        %1862 = vmatpush1.msra.mxu0 0.0
        %1863 = vmatprep.subr.mxu0 0.0
        %1864 = vmatpush1.msra.mxu0 0.0
        %1865 = vmatprep.subr.mxu0 0.0
        %1866 = vmatpush1.msra.mxu0 0.0
        %1867 = vmatprep.subr.mxu0 0.0
        %1868 = vmatpush1.msra.mxu0 0.0
        %1869 = vmatprep.subr.mxu0 0.0
        %1870 = vmatpush1.msra.mxu0 0.0
        %1871 = vmatprep.subr.mxu0 0.0
        %1872 = vmatpush1.msra.mxu0 0.0
        %1873 = vmatprep.subr.mxu0 0.0
        %1874 = vmatpush1.msra.mxu0 0.0
        %1875 = vmatprep.subr.mxu0 0.0
        %1876 = vmatpush1.msra.mxu0 0.0
        %1877 = vmatprep.subr.mxu0 0.0
        %1878 = vmatpush1.msra.mxu0 0.0
        %1879 = vmatprep.subr.mxu0 0.0
        %1880 = vmatpush1.msra.mxu0 0.0
        %1881 = vmatprep.subr.mxu0 0.0
        %1882 = vmatpush1.msra.mxu0 0.0
        %1883 = vmatprep.subr.mxu0 0.0
        %1884 = vmatpush1.msra.mxu0 0.0
        %1885 = vmatprep.subr.mxu0 0.0
        %1886 = vmatpush1.msra.mxu0 0.0
        %1887 = vmatprep.subr.mxu0 0.0
        %1888 = vmatpush1.msra.mxu0 0.0
        %1889 = vmatprep.subr.mxu0 0.0
        %1890 = vmatpush1.msra.mxu0 0.0
        %1891 = vmatprep.subr.mxu0 0.0
        %1892 = vmatpush1.msra.mxu0 0.0
        %1893 = vmatprep.subr.mxu0 0.0
        %1894 = vmatpush1.msra.mxu0 0.0
        %1895 = vmatprep.subr.mxu0 0.0
        %1896 = vmatpush1.msra.mxu0 0.0
        %1897 = vmatprep.subr.mxu0 0.0
        %1898 = vmatpush1.msra.mxu0 0.0
        %1899 = vmatprep.subr.mxu0 0.0
        %1900 = vmatpush1.msra.mxu0 0.0
        %1901 = vmatprep.subr.mxu0 0.0
        %1902 = vmatpush1.msra.mxu0 0.0
        %1903 = vmatprep.subr.mxu0 0.0
        %1904 = vmatpush1.msra.mxu0 0.0
        %1905 = vmatprep.subr.mxu0 0.0
        %1906 = vmatpush1.msra.mxu0 0.0
        %1907 = vmatprep.subr.mxu0 0.0
        %1908 = vmatpush1.msra.mxu0 0.0
        %1909 = vmatprep.subr.mxu0 0.0
        %1910 = vmatpush1.msra.mxu0 0.0
        %1911 = vmatprep.subr.mxu0 0.0
        %1912 = vmatpush1.msra.mxu0 0.0
        %1913 = vmatprep.mubr.f32.mxu0 0.0
        %1914 = vmatmul.mubr.f32.gmra.mrb[0].mxu0 %v1845
        %v1915 = vpop.f32.mrb[0].mxu0
        %v1916 = vadd.f32 0.0, %v1915
        %v1917 = vpop.f32.mrb[0].mxu0
        %1918 = vmatprep.mubr.f32.mxu0 0.0
        %1919 = vmatmul.mubr.f32.gmra.mrb[0].mxu0 %v1847
        %v1920 = vpop.f32.mrb[0].mxu0
        %v1921 = vadd.f32 0.0, %v1920
        %v1922 = vpop.f32.mrb[0].mxu0
        %1923 = vdwg.mxu0
        %v1924 = vadd.f32 %v1827, %v1916
        %v1925 = vadd.f32 %v1832, %v1921
        %v1926 = vld [vmem:[%s9] sm:$0x1]
        %v1928 = vlaneseq
        %v1929 = vshrl.u32 %v1928, 7
        %v1930 = vsub.s32 0, %v1929
        %v1931 = vrot.slane %v1926, %v1930
        %v1933 = vadd.f32 %v1924, %v1931
        %v1934 = vadd.f32 %v1925, %v1931
        %v1937 = vadd.f32 %v1933, %v1526
        %v1938 = vadd.f32 %v1934, %v1528
        %s1939 = sadd.s32 %s656, 4294967292
        %v1940 = vstv %s1939
        %v1941 = vadd.s32 %v1940, %v978
        %v1942 = vadd.s32 %v1940, %v979
        %vm1943 = vcmp.ge.s32.totalorder %v1941, 0
        %vm1944 = vcmp.ge.s32.totalorder %v1942, 0
        %vm1945 = vcmp.lt.s32.totalorder %v1941, 8
        %vm1946 = vcmp.lt.s32.totalorder %v1942, 8
        %vm1947 = vmand %vm1943, %vm1945
        %vm1948 = vmand %vm1944, %vm1946
        %v1949 = vsel %vm1947, 1, 0
        %v1950 = vsel %vm1948, 1, 0
        %vm1951 = vcmp.eq.s32.totalorder %v1949, 1
        %vm1952 = vcmp.eq.s32.totalorder %v1950, 1
        %v1953 = vsel %vm1951, %v1937, 0.0
        %v1954 = vsel %vm1952, %v1938, 0.0
        %v1955 = vld [vmem:[#allocation12] sm:$0xff]
        %v1956 = vld [vmem:[#allocation12 + $0x8] sm:$0xff]
        %v1957 = vld [vmem:[#allocation12 + $0x10] sm:$0xff]
        %v1958 = vld [vmem:[#allocation12 + $0x18] sm:$0xff]
        %s1959 = scalar_lea.vmem [#allocation12], 32
        %v1960 = vld [vmem:[%s1959] sm:$0xff]
        %v1961 = vld [vmem:[%s1959 + $0x8] sm:$0xff]
        %v1962 = vld [vmem:[%s1959 + $0x10] sm:$0xff]
        %v1963 = vld [vmem:[%s1959 + $0x18] sm:$0xff]
        %v1966 = vrot.slane %v1953, 1
        %v1967 = vrot.slane %v1954, 1
        %v1968 = vsel %vm679, %v1966, %v1967
        %v1969 = vsel %vm658, %v1968, 0
        %v1971 = vsel %vm658, %v1967, 0
        %1973 = vmatprep.subr.mxu0 0.0
        %1974 = vmatpush1.msra.mxu0 %v1960
        %1975 = vmatprep.subr.mxu0 0.0
        %1976 = vmatpush1.msra.mxu0 %v1961
        %1977 = vmatprep.subr.mxu0 0.0
        %1978 = vmatpush1.msra.mxu0 %v1962
        %1979 = vmatprep.subr.mxu0 0.0
        %1980 = vmatpush1.msra.mxu0 %v1963
        %1981 = vmatprep.subr.mxu0 0.0
        %1982 = vmatpush1.msra.mxu0 0.0
        %1983 = vmatprep.subr.mxu0 0.0
        %1984 = vmatpush1.msra.mxu0 0.0
        %1985 = vmatprep.subr.mxu0 0.0
        %1986 = vmatpush1.msra.mxu0 0.0
        %1987 = vmatprep.subr.mxu0 0.0
        %1988 = vmatpush1.msra.mxu0 0.0
        %1989 = vmatprep.subr.mxu0 0.0
        %1990 = vmatpush1.msra.mxu0 0.0
        %1991 = vmatprep.subr.mxu0 0.0
        %1992 = vmatpush1.msra.mxu0 0.0
        %1993 = vmatprep.subr.mxu0 0.0
        %1994 = vmatpush1.msra.mxu0 0.0
        %1995 = vmatprep.subr.mxu0 0.0
        %1996 = vmatpush1.msra.mxu0 0.0
        %1997 = vmatprep.subr.mxu0 0.0
        %1998 = vmatpush1.msra.mxu0 0.0
        %1999 = vmatprep.subr.mxu0 0.0
        %2000 = vmatpush1.msra.mxu0 0.0
        %2001 = vmatprep.subr.mxu0 0.0
        %2002 = vmatpush1.msra.mxu0 0.0
        %2003 = vmatprep.subr.mxu0 0.0
        %2004 = vmatpush1.msra.mxu0 0.0
        %2005 = vmatprep.subr.mxu0 0.0
        %2006 = vmatpush1.msra.mxu0 0.0
        %2007 = vmatprep.subr.mxu0 0.0
        %2008 = vmatpush1.msra.mxu0 0.0
        %2009 = vmatprep.subr.mxu0 0.0
        %2010 = vmatpush1.msra.mxu0 0.0
        %2011 = vmatprep.subr.mxu0 0.0
        %2012 = vmatpush1.msra.mxu0 0.0
        %2013 = vmatprep.subr.mxu0 0.0
        %2014 = vmatpush1.msra.mxu0 0.0
        %2015 = vmatprep.subr.mxu0 0.0
        %2016 = vmatpush1.msra.mxu0 0.0
        %2017 = vmatprep.subr.mxu0 0.0
        %2018 = vmatpush1.msra.mxu0 0.0
        %2019 = vmatprep.subr.mxu0 0.0
        %2020 = vmatpush1.msra.mxu0 0.0
        %2021 = vmatprep.subr.mxu0 0.0
        %2022 = vmatpush1.msra.mxu0 0.0
        %2023 = vmatprep.subr.mxu0 0.0
        %2024 = vmatpush1.msra.mxu0 0.0
        %2025 = vmatprep.subr.mxu0 0.0
        %2026 = vmatpush1.msra.mxu0 0.0
        %2027 = vmatprep.subr.mxu0 0.0
        %2028 = vmatpush1.msra.mxu0 0.0
        %2029 = vmatprep.subr.mxu0 0.0
        %2030 = vmatpush1.msra.mxu0 0.0
        %2031 = vmatprep.subr.mxu0 0.0
        %2032 = vmatpush1.msra.mxu0 0.0
        %2033 = vmatprep.subr.mxu0 0.0
        %2034 = vmatpush1.msra.mxu0 0.0
        %2035 = vmatprep.subr.mxu0 0.0
        %2036 = vmatpush1.msra.mxu0 0.0
        %2037 = vmatprep.mubr.f32.mxu0 0.0
        %2038 = vmatmul.mubr.f32.gmra.mrb[0].mxu0 %v1969
        %v2039 = vpop.f32.mrb[0].mxu0
        %v2040 = vadd.f32 0.0, %v2039
        %v2041 = vpop.f32.mrb[0].mxu0
        %2042 = vmatprep.mubr.f32.mxu0 0.0
        %2043 = vmatmul.mubr.f32.gmra.mrb[0].mxu0 %v1971
        %v2044 = vpop.f32.mrb[0].mxu0
        %v2045 = vadd.f32 0.0, %v2044
        %v2046 = vpop.f32.mrb[0].mxu0
        %2047 = vdwg.mxu0
        %v2048 = vsel %vm658, %v1953, 0
        %v2050 = vsel %vm658, %v1954, 0
        %2052 = vmatprep.subr.mxu0 0.0
        %2053 = vmatpush1.msra.mxu0 %v1955
        %2054 = vmatprep.subr.mxu0 0.0
        %2055 = vmatpush1.msra.mxu0 %v1956
        %2056 = vmatprep.subr.mxu0 0.0
        %2057 = vmatpush1.msra.mxu0 %v1957
        %2058 = vmatprep.subr.mxu0 0.0
        %2059 = vmatpush1.msra.mxu0 %v1958
        %2060 = vmatprep.subr.mxu0 0.0
        %2061 = vmatpush1.msra.mxu0 0.0
        %2062 = vmatprep.subr.mxu0 0.0
        %2063 = vmatpush1.msra.mxu0 0.0
        %2064 = vmatprep.subr.mxu0 0.0
        %2065 = vmatpush1.msra.mxu0 0.0
        %2066 = vmatprep.subr.mxu0 0.0
        %2067 = vmatpush1.msra.mxu0 0.0
        %2068 = vmatprep.subr.mxu0 0.0
        %2069 = vmatpush1.msra.mxu0 0.0
        %2070 = vmatprep.subr.mxu0 0.0
        %2071 = vmatpush1.msra.mxu0 0.0
        %2072 = vmatprep.subr.mxu0 0.0
        %2073 = vmatpush1.msra.mxu0 0.0
        %2074 = vmatprep.subr.mxu0 0.0
        %2075 = vmatpush1.msra.mxu0 0.0
        %2076 = vmatprep.subr.mxu0 0.0
        %2077 = vmatpush1.msra.mxu0 0.0
        %2078 = vmatprep.subr.mxu0 0.0
        %2079 = vmatpush1.msra.mxu0 0.0
        %2080 = vmatprep.subr.mxu0 0.0
        %2081 = vmatpush1.msra.mxu0 0.0
        %2082 = vmatprep.subr.mxu0 0.0
        %2083 = vmatpush1.msra.mxu0 0.0
        %2084 = vmatprep.subr.mxu0 0.0
        %2085 = vmatpush1.msra.mxu0 0.0
        %2086 = vmatprep.subr.mxu0 0.0
        %2087 = vmatpush1.msra.mxu0 0.0
        %2088 = vmatprep.subr.mxu0 0.0
        %2089 = vmatpush1.msra.mxu0 0.0
        %2090 = vmatprep.subr.mxu0 0.0
        %2091 = vmatpush1.msra.mxu0 0.0
        %2092 = vmatprep.subr.mxu0 0.0
        %2093 = vmatpush1.msra.mxu0 0.0
        %2094 = vmatprep.subr.mxu0 0.0
        %2095 = vmatpush1.msra.mxu0 0.0
        %2096 = vmatprep.subr.mxu0 0.0
        %2097 = vmatpush1.msra.mxu0 0.0
        %2098 = vmatprep.subr.mxu0 0.0
        %2099 = vmatpush1.msra.mxu0 0.0
        %2100 = vmatprep.subr.mxu0 0.0
        %2101 = vmatpush1.msra.mxu0 0.0
        %2102 = vmatprep.subr.mxu0 0.0
        %2103 = vmatpush1.msra.mxu0 0.0
        %2104 = vmatprep.subr.mxu0 0.0
        %2105 = vmatpush1.msra.mxu0 0.0
        %2106 = vmatprep.subr.mxu0 0.0
        %2107 = vmatpush1.msra.mxu0 0.0
        %2108 = vmatprep.subr.mxu0 0.0
        %2109 = vmatpush1.msra.mxu0 0.0
        %2110 = vmatprep.subr.mxu0 0.0
        %2111 = vmatpush1.msra.mxu0 0.0
        %2112 = vmatprep.subr.mxu0 0.0
        %2113 = vmatpush1.msra.mxu0 0.0
        %2114 = vmatprep.subr.mxu0 0.0
        %2115 = vmatpush1.msra.mxu0 0.0
        %2116 = vmatprep.mubr.f32.mxu0 0.0
        %2117 = vmatmul.mubr.f32.gmra.mrb[0].mxu0 %v2048
        %v2118 = vpop.f32.mrb[0].mxu0
        %v2119 = vadd.f32 %v2040, %v2118
        %v2120 = vpop.f32.mrb[0].mxu0
        %2121 = vmatprep.mubr.f32.mxu0 0.0
        %2122 = vmatmul.mubr.f32.gmra.mrb[0].mxu0 %v2050
        %v2123 = vpop.f32.mrb[0].mxu0
        %v2124 = vadd.f32 %v2045, %v2123
        %v2125 = vpop.f32.mrb[0].mxu0
        %2126 = vdwg.mxu0
        %s2127 = scalar_lea.vmem [#allocation12], 64
        %v2128 = vld [vmem:[%s2127] sm:$0xff]
        %v2129 = vld [vmem:[%s2127 + $0x8] sm:$0xff]
        %v2130 = vld [vmem:[%s2127 + $0x10] sm:$0xff]
        %v2131 = vld [vmem:[%s2127 + $0x18] sm:$0xff]
        %v2132 = vrot.slane %v1953, 2
        %v2133 = vrot.slane %v1954, 2
        %v2134 = vsel %vm862, %v2132, %v2133
        %v2135 = vsel %vm658, %v2134, 0
        %v2137 = vsel %vm658, %v2133, 0
        %2139 = vmatprep.subr.mxu0 0.0
        %2140 = vmatpush1.msra.mxu0 %v2128
        %2141 = vmatprep.subr.mxu0 0.0
        %2142 = vmatpush1.msra.mxu0 %v2129
        %2143 = vmatprep.subr.mxu0 0.0
        %2144 = vmatpush1.msra.mxu0 %v2130
        %2145 = vmatprep.subr.mxu0 0.0
        %2146 = vmatpush1.msra.mxu0 %v2131
        %2147 = vmatprep.subr.mxu0 0.0
        %2148 = vmatpush1.msra.mxu0 0.0
        %2149 = vmatprep.subr.mxu0 0.0
        %2150 = vmatpush1.msra.mxu0 0.0
        %2151 = vmatprep.subr.mxu0 0.0
        %2152 = vmatpush1.msra.mxu0 0.0
        %2153 = vmatprep.subr.mxu0 0.0
        %2154 = vmatpush1.msra.mxu0 0.0
        %2155 = vmatprep.subr.mxu0 0.0
        %2156 = vmatpush1.msra.mxu0 0.0
        %2157 = vmatprep.subr.mxu0 0.0
        %2158 = vmatpush1.msra.mxu0 0.0
        %2159 = vmatprep.subr.mxu0 0.0
        %2160 = vmatpush1.msra.mxu0 0.0
        %2161 = vmatprep.subr.mxu0 0.0
        %2162 = vmatpush1.msra.mxu0 0.0
        %2163 = vmatprep.subr.mxu0 0.0
        %2164 = vmatpush1.msra.mxu0 0.0
        %2165 = vmatprep.subr.mxu0 0.0
        %2166 = vmatpush1.msra.mxu0 0.0
        %2167 = vmatprep.subr.mxu0 0.0
        %2168 = vmatpush1.msra.mxu0 0.0
        %2169 = vmatprep.subr.mxu0 0.0
        %2170 = vmatpush1.msra.mxu0 0.0
        %2171 = vmatprep.subr.mxu0 0.0
        %2172 = vmatpush1.msra.mxu0 0.0
        %2173 = vmatprep.subr.mxu0 0.0
        %2174 = vmatpush1.msra.mxu0 0.0
        %2175 = vmatprep.subr.mxu0 0.0
        %2176 = vmatpush1.msra.mxu0 0.0
        %2177 = vmatprep.subr.mxu0 0.0
        %2178 = vmatpush1.msra.mxu0 0.0
        %2179 = vmatprep.subr.mxu0 0.0
        %2180 = vmatpush1.msra.mxu0 0.0
        %2181 = vmatprep.subr.mxu0 0.0
        %2182 = vmatpush1.msra.mxu0 0.0
        %2183 = vmatprep.subr.mxu0 0.0
        %2184 = vmatpush1.msra.mxu0 0.0
        %2185 = vmatprep.subr.mxu0 0.0
        %2186 = vmatpush1.msra.mxu0 0.0
        %2187 = vmatprep.subr.mxu0 0.0
        %2188 = vmatpush1.msra.mxu0 0.0
        %2189 = vmatprep.subr.mxu0 0.0
        %2190 = vmatpush1.msra.mxu0 0.0
        %2191 = vmatprep.subr.mxu0 0.0
        %2192 = vmatpush1.msra.mxu0 0.0
        %2193 = vmatprep.subr.mxu0 0.0
        %2194 = vmatpush1.msra.mxu0 0.0
        %2195 = vmatprep.subr.mxu0 0.0
        %2196 = vmatpush1.msra.mxu0 0.0
        %2197 = vmatprep.subr.mxu0 0.0
        %2198 = vmatpush1.msra.mxu0 0.0
        %2199 = vmatprep.subr.mxu0 0.0
        %2200 = vmatpush1.msra.mxu0 0.0
        %2201 = vmatprep.subr.mxu0 0.0
        %2202 = vmatpush1.msra.mxu0 0.0
        %2203 = vmatprep.mubr.f32.mxu0 0.0
        %2204 = vmatmul.mubr.f32.gmra.mrb[0].mxu0 %v2135
        %v2205 = vpop.f32.mrb[0].mxu0
        %v2206 = vadd.f32 0.0, %v2205
        %v2207 = vpop.f32.mrb[0].mxu0
        %2208 = vmatprep.mubr.f32.mxu0 0.0
        %2209 = vmatmul.mubr.f32.gmra.mrb[0].mxu0 %v2137
        %v2210 = vpop.f32.mrb[0].mxu0
        %v2211 = vadd.f32 0.0, %v2210
        %v2212 = vpop.f32.mrb[0].mxu0
        %2213 = vdwg.mxu0
        %v2214 = vadd.f32 %v2119, %v2206
        %v2215 = vadd.f32 %v2124, %v2211
        %v2216 = vld [vmem:[%s11] sm:$0x1]
        %v2218 = vlaneseq
        %v2219 = vshrl.u32 %v2218, 7
        %v2220 = vsub.s32 0, %v2219
        %v2221 = vrot.slane %v2216, %v2220
        %v2223 = vadd.f32 %v2214, %v2221
        %v2224 = vadd.f32 %v2215, %v2221
        %vm2225 = vcmp.gt.f32.partialorder %v2223, 0.0
        %vm2226 = vcmp.gt.f32.partialorder %v2224, 0.0
        %v2227 = vmul.f32 %v2223, 0.2
        %v2228 = vmul.f32 %v2224, 0.2
        %v2229 = vsel %vm2225, %v2223, %v2227
        %v2230 = vsel %vm2226, %v2224, %v2228
        %s2231 = sadd.s32 %s656, 4294967293
        %v2232 = vstv %s2231
        %v2233 = vadd.s32 %v2232, %v978
        %v2234 = vadd.s32 %v2232, %v979
        %vm2235 = vcmp.ge.s32.totalorder %v2233, 0
        %vm2236 = vcmp.ge.s32.totalorder %v2234, 0
        %vm2237 = vcmp.lt.s32.totalorder %v2233, 8
        %vm2238 = vcmp.lt.s32.totalorder %v2234, 8
        %vm2239 = vmand %vm2235, %vm2237
        %vm2240 = vmand %vm2236, %vm2238
        %v2241 = vsel %vm2239, 1, 0
        %v2242 = vsel %vm2240, 1, 0
        %vm2243 = vcmp.eq.s32.totalorder %v2241, 1
        %vm2244 = vcmp.eq.s32.totalorder %v2242, 1
        %v2245 = vsel %vm2243, %v2229, 0.0
        %v2246 = vsel %vm2244, %v2230, 0.0
        %v2247 = vld [vmem:[%s12] sm:$0xff]
        %v2248 = vld [vmem:[%s12 + $0x8] sm:$0xff]
        %v2249 = vld [vmem:[%s12 + $0x10] sm:$0xff]
        %v2250 = vld [vmem:[%s12 + $0x18] sm:$0xff]
        %s2251 = scalar_lea.vmem %s12, 32
        %v2252 = vld [vmem:[%s2251] sm:$0xff]
        %v2253 = vld [vmem:[%s2251 + $0x8] sm:$0xff]
        %v2254 = vld [vmem:[%s2251 + $0x10] sm:$0xff]
        %v2255 = vld [vmem:[%s2251 + $0x18] sm:$0xff]
        %v2258 = vrot.slane %v2245, 1
        %v2259 = vrot.slane %v2246, 1
        %v2260 = vsel %vm679, %v2258, %v2259
        %v2261 = vsel %vm658, %v2260, 0
        %v2263 = vsel %vm658, %v2259, 0
        %2265 = vmatprep.subr.mxu0 0.0
        %2266 = vmatpush1.msra.mxu0 %v2252
        %2267 = vmatprep.subr.mxu0 0.0
        %2268 = vmatpush1.msra.mxu0 %v2253
        %2269 = vmatprep.subr.mxu0 0.0
        %2270 = vmatpush1.msra.mxu0 %v2254
        %2271 = vmatprep.subr.mxu0 0.0
        %2272 = vmatpush1.msra.mxu0 %v2255
        %2273 = vmatprep.subr.mxu0 0.0
        %2274 = vmatpush1.msra.mxu0 0.0
        %2275 = vmatprep.subr.mxu0 0.0
        %2276 = vmatpush1.msra.mxu0 0.0
        %2277 = vmatprep.subr.mxu0 0.0
        %2278 = vmatpush1.msra.mxu0 0.0
        %2279 = vmatprep.subr.mxu0 0.0
        %2280 = vmatpush1.msra.mxu0 0.0
        %2281 = vmatprep.subr.mxu0 0.0
        %2282 = vmatpush1.msra.mxu0 0.0
        %2283 = vmatprep.subr.mxu0 0.0
        %2284 = vmatpush1.msra.mxu0 0.0
        %2285 = vmatprep.subr.mxu0 0.0
        %2286 = vmatpush1.msra.mxu0 0.0
        %2287 = vmatprep.subr.mxu0 0.0
        %2288 = vmatpush1.msra.mxu0 0.0
        %2289 = vmatprep.subr.mxu0 0.0
        %2290 = vmatpush1.msra.mxu0 0.0
        %2291 = vmatprep.subr.mxu0 0.0
        %2292 = vmatpush1.msra.mxu0 0.0
        %2293 = vmatprep.subr.mxu0 0.0
        %2294 = vmatpush1.msra.mxu0 0.0
        %2295 = vmatprep.subr.mxu0 0.0
        %2296 = vmatpush1.msra.mxu0 0.0
        %2297 = vmatprep.subr.mxu0 0.0
        %2298 = vmatpush1.msra.mxu0 0.0
        %2299 = vmatprep.subr.mxu0 0.0
        %2300 = vmatpush1.msra.mxu0 0.0
        %2301 = vmatprep.subr.mxu0 0.0
        %2302 = vmatpush1.msra.mxu0 0.0
        %2303 = vmatprep.subr.mxu0 0.0
        %2304 = vmatpush1.msra.mxu0 0.0
        %2305 = vmatprep.subr.mxu0 0.0
        %2306 = vmatpush1.msra.mxu0 0.0
        %2307 = vmatprep.subr.mxu0 0.0
        %2308 = vmatpush1.msra.mxu0 0.0
        %2309 = vmatprep.subr.mxu0 0.0
        %2310 = vmatpush1.msra.mxu0 0.0
        %2311 = vmatprep.subr.mxu0 0.0
        %2312 = vmatpush1.msra.mxu0 0.0
        %2313 = vmatprep.subr.mxu0 0.0
        %2314 = vmatpush1.msra.mxu0 0.0
        %2315 = vmatprep.subr.mxu0 0.0
        %2316 = vmatpush1.msra.mxu0 0.0
        %2317 = vmatprep.subr.mxu0 0.0
        %2318 = vmatpush1.msra.mxu0 0.0
        %2319 = vmatprep.subr.mxu0 0.0
        %2320 = vmatpush1.msra.mxu0 0.0
        %2321 = vmatprep.subr.mxu0 0.0
        %2322 = vmatpush1.msra.mxu0 0.0
        %2323 = vmatprep.subr.mxu0 0.0
        %2324 = vmatpush1.msra.mxu0 0.0
        %2325 = vmatprep.subr.mxu0 0.0
        %2326 = vmatpush1.msra.mxu0 0.0
        %2327 = vmatprep.subr.mxu0 0.0
        %2328 = vmatpush1.msra.mxu0 0.0
        %2329 = vmatprep.mubr.f32.mxu0 0.0
        %2330 = vmatmul.mubr.f32.gmra.mrb[0].mxu0 %v2261
        %v2331 = vpop.f32.mrb[0].mxu0
        %v2332 = vadd.f32 0.0, %v2331
        %v2333 = vpop.f32.mrb[0].mxu0
        %2334 = vmatprep.mubr.f32.mxu0 0.0
        %2335 = vmatmul.mubr.f32.gmra.mrb[0].mxu0 %v2263
        %v2336 = vpop.f32.mrb[0].mxu0
        %v2337 = vadd.f32 0.0, %v2336
        %v2338 = vpop.f32.mrb[0].mxu0
        %2339 = vdwg.mxu0
        %v2340 = vsel %vm658, %v2245, 0
        %v2342 = vsel %vm658, %v2246, 0
        %2344 = vmatprep.subr.mxu0 0.0
        %2345 = vmatpush1.msra.mxu0 %v2247
        %2346 = vmatprep.subr.mxu0 0.0
        %2347 = vmatpush1.msra.mxu0 %v2248
        %2348 = vmatprep.subr.mxu0 0.0
        %2349 = vmatpush1.msra.mxu0 %v2249
        %2350 = vmatprep.subr.mxu0 0.0
        %2351 = vmatpush1.msra.mxu0 %v2250
        %2352 = vmatprep.subr.mxu0 0.0
        %2353 = vmatpush1.msra.mxu0 0.0
        %2354 = vmatprep.subr.mxu0 0.0
        %2355 = vmatpush1.msra.mxu0 0.0
        %2356 = vmatprep.subr.mxu0 0.0
        %2357 = vmatpush1.msra.mxu0 0.0
        %2358 = vmatprep.subr.mxu0 0.0
        %2359 = vmatpush1.msra.mxu0 0.0
        %2360 = vmatprep.subr.mxu0 0.0
        %2361 = vmatpush1.msra.mxu0 0.0
        %2362 = vmatprep.subr.mxu0 0.0
        %2363 = vmatpush1.msra.mxu0 0.0
        %2364 = vmatprep.subr.mxu0 0.0
        %2365 = vmatpush1.msra.mxu0 0.0
        %2366 = vmatprep.subr.mxu0 0.0
        %2367 = vmatpush1.msra.mxu0 0.0
        %2368 = vmatprep.subr.mxu0 0.0
        %2369 = vmatpush1.msra.mxu0 0.0
        %2370 = vmatprep.subr.mxu0 0.0
        %2371 = vmatpush1.msra.mxu0 0.0
        %2372 = vmatprep.subr.mxu0 0.0
        %2373 = vmatpush1.msra.mxu0 0.0
        %2374 = vmatprep.subr.mxu0 0.0
        %2375 = vmatpush1.msra.mxu0 0.0
        %2376 = vmatprep.subr.mxu0 0.0
        %2377 = vmatpush1.msra.mxu0 0.0
        %2378 = vmatprep.subr.mxu0 0.0
        %2379 = vmatpush1.msra.mxu0 0.0
        %2380 = vmatprep.subr.mxu0 0.0
        %2381 = vmatpush1.msra.mxu0 0.0
        %2382 = vmatprep.subr.mxu0 0.0
        %2383 = vmatpush1.msra.mxu0 0.0
        %2384 = vmatprep.subr.mxu0 0.0
        %2385 = vmatpush1.msra.mxu0 0.0
        %2386 = vmatprep.subr.mxu0 0.0
        %2387 = vmatpush1.msra.mxu0 0.0
        %2388 = vmatprep.subr.mxu0 0.0
        %2389 = vmatpush1.msra.mxu0 0.0
        %2390 = vmatprep.subr.mxu0 0.0
        %2391 = vmatpush1.msra.mxu0 0.0
        %2392 = vmatprep.subr.mxu0 0.0
        %2393 = vmatpush1.msra.mxu0 0.0
        %2394 = vmatprep.subr.mxu0 0.0
        %2395 = vmatpush1.msra.mxu0 0.0
        %2396 = vmatprep.subr.mxu0 0.0
        %2397 = vmatpush1.msra.mxu0 0.0
        %2398 = vmatprep.subr.mxu0 0.0
        %2399 = vmatpush1.msra.mxu0 0.0
        %2400 = vmatprep.subr.mxu0 0.0
        %2401 = vmatpush1.msra.mxu0 0.0
        %2402 = vmatprep.subr.mxu0 0.0
        %2403 = vmatpush1.msra.mxu0 0.0
        %2404 = vmatprep.subr.mxu0 0.0
        %2405 = vmatpush1.msra.mxu0 0.0
        %2406 = vmatprep.subr.mxu0 0.0
        %2407 = vmatpush1.msra.mxu0 0.0
        %2408 = vmatprep.mubr.f32.mxu0 0.0
        %2409 = vmatmul.mubr.f32.gmra.mrb[0].mxu0 %v2340
        %v2410 = vpop.f32.mrb[0].mxu0
        %v2411 = vadd.f32 %v2332, %v2410
        %v2412 = vpop.f32.mrb[0].mxu0
        %2413 = vmatprep.mubr.f32.mxu0 0.0
        %2414 = vmatmul.mubr.f32.gmra.mrb[0].mxu0 %v2342
        %v2415 = vpop.f32.mrb[0].mxu0
        %v2416 = vadd.f32 %v2337, %v2415
        %v2417 = vpop.f32.mrb[0].mxu0
        %2418 = vdwg.mxu0
        %s2419 = scalar_lea.vmem %s12, 64
        %v2420 = vld [vmem:[%s2419] sm:$0xff]
        %v2421 = vld [vmem:[%s2419 + $0x8] sm:$0xff]
        %v2422 = vld [vmem:[%s2419 + $0x10] sm:$0xff]
        %v2423 = vld [vmem:[%s2419 + $0x18] sm:$0xff]
        %v2424 = vrot.slane %v2245, 2
        %v2425 = vrot.slane %v2246, 2
        %v2426 = vsel %vm862, %v2424, %v2425
        %v2427 = vsel %vm658, %v2426, 0
        %v2429 = vsel %vm658, %v2425, 0
        %2431 = vmatprep.subr.mxu0 0.0
        %2432 = vmatpush1.msra.mxu0 %v2420
        %2433 = vmatprep.subr.mxu0 0.0
        %2434 = vmatpush1.msra.mxu0 %v2421
        %2435 = vmatprep.subr.mxu0 0.0
        %2436 = vmatpush1.msra.mxu0 %v2422
        %2437 = vmatprep.subr.mxu0 0.0
        %2438 = vmatpush1.msra.mxu0 %v2423
        %2439 = vmatprep.subr.mxu0 0.0
        %2440 = vmatpush1.msra.mxu0 0.0
        %2441 = vmatprep.subr.mxu0 0.0
        %2442 = vmatpush1.msra.mxu0 0.0
        %2443 = vmatprep.subr.mxu0 0.0
        %2444 = vmatpush1.msra.mxu0 0.0
        %2445 = vmatprep.subr.mxu0 0.0
        %2446 = vmatpush1.msra.mxu0 0.0
        %2447 = vmatprep.subr.mxu0 0.0
        %2448 = vmatpush1.msra.mxu0 0.0
        %2449 = vmatprep.subr.mxu0 0.0
        %2450 = vmatpush1.msra.mxu0 0.0
        %2451 = vmatprep.subr.mxu0 0.0
        %2452 = vmatpush1.msra.mxu0 0.0
        %2453 = vmatprep.subr.mxu0 0.0
        %2454 = vmatpush1.msra.mxu0 0.0
        %2455 = vmatprep.subr.mxu0 0.0
        %2456 = vmatpush1.msra.mxu0 0.0
        %2457 = vmatprep.subr.mxu0 0.0
        %2458 = vmatpush1.msra.mxu0 0.0
        %2459 = vmatprep.subr.mxu0 0.0
        %2460 = vmatpush1.msra.mxu0 0.0
        %2461 = vmatprep.subr.mxu0 0.0
        %2462 = vmatpush1.msra.mxu0 0.0
        %2463 = vmatprep.subr.mxu0 0.0
        %2464 = vmatpush1.msra.mxu0 0.0
        %2465 = vmatprep.subr.mxu0 0.0
        %2466 = vmatpush1.msra.mxu0 0.0
        %2467 = vmatprep.subr.mxu0 0.0
        %2468 = vmatpush1.msra.mxu0 0.0
        %2469 = vmatprep.subr.mxu0 0.0
        %2470 = vmatpush1.msra.mxu0 0.0
        %2471 = vmatprep.subr.mxu0 0.0
        %2472 = vmatpush1.msra.mxu0 0.0
        %2473 = vmatprep.subr.mxu0 0.0
        %2474 = vmatpush1.msra.mxu0 0.0
        %2475 = vmatprep.subr.mxu0 0.0
        %2476 = vmatpush1.msra.mxu0 0.0
        %2477 = vmatprep.subr.mxu0 0.0
        %2478 = vmatpush1.msra.mxu0 0.0
        %2479 = vmatprep.subr.mxu0 0.0
        %2480 = vmatpush1.msra.mxu0 0.0
        %2481 = vmatprep.subr.mxu0 0.0
        %2482 = vmatpush1.msra.mxu0 0.0
        %2483 = vmatprep.subr.mxu0 0.0
        %2484 = vmatpush1.msra.mxu0 0.0
        %2485 = vmatprep.subr.mxu0 0.0
        %2486 = vmatpush1.msra.mxu0 0.0
        %2487 = vmatprep.subr.mxu0 0.0
        %2488 = vmatpush1.msra.mxu0 0.0
        %2489 = vmatprep.subr.mxu0 0.0
        %2490 = vmatpush1.msra.mxu0 0.0
        %2491 = vmatprep.subr.mxu0 0.0
        %2492 = vmatpush1.msra.mxu0 0.0
        %2493 = vmatprep.subr.mxu0 0.0
        %2494 = vmatpush1.msra.mxu0 0.0
        %2495 = vmatprep.mubr.f32.mxu0 0.0
        %2496 = vmatmul.mubr.f32.gmra.mrb[0].mxu0 %v2427
        %v2497 = vpop.f32.mrb[0].mxu0
        %v2498 = vadd.f32 0.0, %v2497
        %v2499 = vpop.f32.mrb[0].mxu0
        %2500 = vmatprep.mubr.f32.mxu0 0.0
        %2501 = vmatmul.mubr.f32.gmra.mrb[0].mxu0 %v2429
        %v2502 = vpop.f32.mrb[0].mxu0
        %v2503 = vadd.f32 0.0, %v2502
        %v2504 = vpop.f32.mrb[0].mxu0
        %2505 = vdwg.mxu0
        %v2506 = vadd.f32 %v2411, %v2498
        %v2507 = vadd.f32 %v2416, %v2503
        %v2508 = vld [vmem:[%s13] sm:$0x1]
        %v2510 = vlaneseq
        %v2511 = vshrl.u32 %v2510, 7
        %v2512 = vsub.s32 0, %v2511
        %v2513 = vrot.slane %v2508, %v2512
        %v2515 = vadd.f32 %v2506, %v2513
        %v2516 = vadd.f32 %v2507, %v2513
        %vm2517 = vcmp.gt.f32.partialorder %v2515, 0.0
        %vm2518 = vcmp.gt.f32.partialorder %v2516, 0.0
        %v2519 = vmul.f32 %v2515, 0.2
        %v2520 = vmul.f32 %v2516, 0.2
        %v2521 = vsel %vm2517, %v2515, %v2519
        %v2522 = vsel %vm2518, %v2516, %v2520
        %s2523 = sadd.s32 %s656, 4294967294
        %v2524 = vstv %s2523
        %v2525 = vadd.s32 %v2524, %v978
        %v2526 = vadd.s32 %v2524, %v979
        %vm2527 = vcmp.ge.s32.totalorder %v2525, 0
        %vm2528 = vcmp.ge.s32.totalorder %v2526, 0
        %vm2529 = vcmp.lt.s32.totalorder %v2525, 8
        %vm2530 = vcmp.lt.s32.totalorder %v2526, 8
        %vm2531 = vmand %vm2527, %vm2529
        %vm2532 = vmand %vm2528, %vm2530
        %v2533 = vsel %vm2531, 1, 0
        %v2534 = vsel %vm2532, 1, 0
        %vm2535 = vcmp.eq.s32.totalorder %v2533, 1
        %vm2536 = vcmp.eq.s32.totalorder %v2534, 1
        %v2537 = vsel %vm2535, %v2521, 0.0
        %v2538 = vsel %vm2536, %v2522, 0.0
        %v2539 = vld [vmem:[%s14] sm:$0xff]
        %v2540 = vld [vmem:[%s14 + $0x8] sm:$0xff]
        %s2541 = scalar_lea.vmem %s14, 16
        %v2542 = vld [vmem:[%s2541] sm:$0xff]
        %v2543 = vld [vmem:[%s2541 + $0x8] sm:$0xff]
        %v2546 = vrot.slane %v2537, 1
        %v2547 = vrot.slane %v2538, 1
        %v2548 = vsel %vm679, %v2546, %v2547
        %vm2549 = vcmask 130048
        %v2550 = vsel %vm2549, %v2548, 0
        %v2552 = vsel %vm2549, %v2547, 0
        %2554 = vmatprep.subr.mxu0 0.0
        %2555 = vmatpush1.msra.mxu0 %v2542
        %2556 = vmatprep.subr.mxu0 0.0
        %2557 = vmatpush1.msra.mxu0 %v2543
        %2558 = vmatprep.subr.mxu0 0.0
        %2559 = vmatpush1.msra.mxu0 0.0
        %2560 = vmatprep.subr.mxu0 0.0
        %2561 = vmatpush1.msra.mxu0 0.0
        %2562 = vmatprep.subr.mxu0 0.0
        %2563 = vmatpush1.msra.mxu0 0.0
        %2564 = vmatprep.subr.mxu0 0.0
        %2565 = vmatpush1.msra.mxu0 0.0
        %2566 = vmatprep.subr.mxu0 0.0
        %2567 = vmatpush1.msra.mxu0 0.0
        %2568 = vmatprep.subr.mxu0 0.0
        %2569 = vmatpush1.msra.mxu0 0.0
        %2570 = vmatprep.subr.mxu0 0.0
        %2571 = vmatpush1.msra.mxu0 0.0
        %2572 = vmatprep.subr.mxu0 0.0
        %2573 = vmatpush1.msra.mxu0 0.0
        %2574 = vmatprep.subr.mxu0 0.0
        %2575 = vmatpush1.msra.mxu0 0.0
        %2576 = vmatprep.subr.mxu0 0.0
        %2577 = vmatpush1.msra.mxu0 0.0
        %2578 = vmatprep.subr.mxu0 0.0
        %2579 = vmatpush1.msra.mxu0 0.0
        %2580 = vmatprep.subr.mxu0 0.0
        %2581 = vmatpush1.msra.mxu0 0.0
        %2582 = vmatprep.subr.mxu0 0.0
        %2583 = vmatpush1.msra.mxu0 0.0
        %2584 = vmatprep.subr.mxu0 0.0
        %2585 = vmatpush1.msra.mxu0 0.0
        %2586 = vmatprep.subr.mxu0 0.0
        %2587 = vmatpush1.msra.mxu0 0.0
        %2588 = vmatprep.subr.mxu0 0.0
        %2589 = vmatpush1.msra.mxu0 0.0
        %2590 = vmatprep.subr.mxu0 0.0
        %2591 = vmatpush1.msra.mxu0 0.0
        %2592 = vmatprep.subr.mxu0 0.0
        %2593 = vmatpush1.msra.mxu0 0.0
        %2594 = vmatprep.subr.mxu0 0.0
        %2595 = vmatpush1.msra.mxu0 0.0
        %2596 = vmatprep.subr.mxu0 0.0
        %2597 = vmatpush1.msra.mxu0 0.0
        %2598 = vmatprep.subr.mxu0 0.0
        %2599 = vmatpush1.msra.mxu0 0.0
        %2600 = vmatprep.subr.mxu0 0.0
        %2601 = vmatpush1.msra.mxu0 0.0
        %2602 = vmatprep.subr.mxu0 0.0
        %2603 = vmatpush1.msra.mxu0 0.0
        %2604 = vmatprep.subr.mxu0 0.0
        %2605 = vmatpush1.msra.mxu0 0.0
        %2606 = vmatprep.subr.mxu0 0.0
        %2607 = vmatpush1.msra.mxu0 0.0
        %2608 = vmatprep.subr.mxu0 0.0
        %2609 = vmatpush1.msra.mxu0 0.0
        %2610 = vmatprep.subr.mxu0 0.0
        %2611 = vmatpush1.msra.mxu0 0.0
        %2612 = vmatprep.subr.mxu0 0.0
        %2613 = vmatpush1.msra.mxu0 0.0
        %2614 = vmatprep.subr.mxu0 0.0
        %2615 = vmatpush1.msra.mxu0 0.0
        %2616 = vmatprep.subr.mxu0 0.0
        %2617 = vmatpush1.msra.mxu0 0.0
        %2618 = vmatprep.mubr.f32.mxu0 0.0
        %2619 = vmatmul.mubr.f32.gmra.mrb[0].mxu0 %v2550
        %v2620 = vpop.f32.mrb[0].mxu0
        %v2621 = vadd.f32 0.0, %v2620
        %v2622 = vpop.f32.mrb[0].mxu0
        %2623 = vmatprep.mubr.f32.mxu0 0.0
        %2624 = vmatmul.mubr.f32.gmra.mrb[0].mxu0 %v2552
        %v2625 = vpop.f32.mrb[0].mxu0
        %v2626 = vadd.f32 0.0, %v2625
        %v2627 = vpop.f32.mrb[0].mxu0
        %2628 = vdwg.mxu0
        %v2629 = vsel %vm2549, %v2537, 0
        %v2631 = vsel %vm2549, %v2538, 0
        %2633 = vmatprep.subr.mxu0 0.0
        %2634 = vmatpush1.msra.mxu0 %v2539
        %2635 = vmatprep.subr.mxu0 0.0
        %2636 = vmatpush1.msra.mxu0 %v2540
        %2637 = vmatprep.subr.mxu0 0.0
        %2638 = vmatpush1.msra.mxu0 0.0
        %2639 = vmatprep.subr.mxu0 0.0
        %2640 = vmatpush1.msra.mxu0 0.0
        %2641 = vmatprep.subr.mxu0 0.0
        %2642 = vmatpush1.msra.mxu0 0.0
        %2643 = vmatprep.subr.mxu0 0.0
        %2644 = vmatpush1.msra.mxu0 0.0
        %2645 = vmatprep.subr.mxu0 0.0
        %2646 = vmatpush1.msra.mxu0 0.0
        %2647 = vmatprep.subr.mxu0 0.0
        %2648 = vmatpush1.msra.mxu0 0.0
        %2649 = vmatprep.subr.mxu0 0.0
        %2650 = vmatpush1.msra.mxu0 0.0
        %2651 = vmatprep.subr.mxu0 0.0
        %2652 = vmatpush1.msra.mxu0 0.0
        %2653 = vmatprep.subr.mxu0 0.0
        %2654 = vmatpush1.msra.mxu0 0.0
        %2655 = vmatprep.subr.mxu0 0.0
        %2656 = vmatpush1.msra.mxu0 0.0
        %2657 = vmatprep.subr.mxu0 0.0
        %2658 = vmatpush1.msra.mxu0 0.0
        %2659 = vmatprep.subr.mxu0 0.0
        %2660 = vmatpush1.msra.mxu0 0.0
        %2661 = vmatprep.subr.mxu0 0.0
        %2662 = vmatpush1.msra.mxu0 0.0
        %2663 = vmatprep.subr.mxu0 0.0
        %2664 = vmatpush1.msra.mxu0 0.0
        %2665 = vmatprep.subr.mxu0 0.0
        %2666 = vmatpush1.msra.mxu0 0.0
        %2667 = vmatprep.subr.mxu0 0.0
        %2668 = vmatpush1.msra.mxu0 0.0
        %2669 = vmatprep.subr.mxu0 0.0
        %2670 = vmatpush1.msra.mxu0 0.0
        %2671 = vmatprep.subr.mxu0 0.0
        %2672 = vmatpush1.msra.mxu0 0.0
        %2673 = vmatprep.subr.mxu0 0.0
        %2674 = vmatpush1.msra.mxu0 0.0
        %2675 = vmatprep.subr.mxu0 0.0
        %2676 = vmatpush1.msra.mxu0 0.0
        %2677 = vmatprep.subr.mxu0 0.0
        %2678 = vmatpush1.msra.mxu0 0.0
        %2679 = vmatprep.subr.mxu0 0.0
        %2680 = vmatpush1.msra.mxu0 0.0
        %2681 = vmatprep.subr.mxu0 0.0
        %2682 = vmatpush1.msra.mxu0 0.0
        %2683 = vmatprep.subr.mxu0 0.0
        %2684 = vmatpush1.msra.mxu0 0.0
        %2685 = vmatprep.subr.mxu0 0.0
        %2686 = vmatpush1.msra.mxu0 0.0
        %2687 = vmatprep.subr.mxu0 0.0
        %2688 = vmatpush1.msra.mxu0 0.0
        %2689 = vmatprep.subr.mxu0 0.0
        %2690 = vmatpush1.msra.mxu0 0.0
        %2691 = vmatprep.subr.mxu0 0.0
        %2692 = vmatpush1.msra.mxu0 0.0
        %2693 = vmatprep.subr.mxu0 0.0
        %2694 = vmatpush1.msra.mxu0 0.0
        %2695 = vmatprep.subr.mxu0 0.0
        %2696 = vmatpush1.msra.mxu0 0.0
        %2697 = vmatprep.mubr.f32.mxu0 0.0
        %2698 = vmatmul.mubr.f32.gmra.mrb[0].mxu0 %v2629
        %v2699 = vpop.f32.mrb[0].mxu0
        %v2700 = vadd.f32 %v2621, %v2699
        %v2701 = vpop.f32.mrb[0].mxu0
        %2702 = vmatprep.mubr.f32.mxu0 0.0
        %2703 = vmatmul.mubr.f32.gmra.mrb[0].mxu0 %v2631
        %v2704 = vpop.f32.mrb[0].mxu0
        %v2705 = vadd.f32 %v2626, %v2704
        %v2706 = vpop.f32.mrb[0].mxu0
        %2707 = vdwg.mxu0
        %s2708 = scalar_lea.vmem %s14, 32
        %v2709 = vld [vmem:[%s2708] sm:$0xff]
        %v2710 = vld [vmem:[%s2708 + $0x8] sm:$0xff]
        %v2711 = vrot.slane %v2537, 2
        %v2712 = vrot.slane %v2538, 2
        %v2713 = vsel %vm862, %v2711, %v2712
        %v2714 = vsel %vm2549, %v2713, 0
        %v2716 = vsel %vm2549, %v2712, 0
        %2718 = vmatprep.subr.mxu0 0.0
        %2719 = vmatpush1.msra.mxu0 %v2709
        %2720 = vmatprep.subr.mxu0 0.0
        %2721 = vmatpush1.msra.mxu0 %v2710
        %2722 = vmatprep.subr.mxu0 0.0
        %2723 = vmatpush1.msra.mxu0 0.0
        %2724 = vmatprep.subr.mxu0 0.0
        %2725 = vmatpush1.msra.mxu0 0.0
        %2726 = vmatprep.subr.mxu0 0.0
        %2727 = vmatpush1.msra.mxu0 0.0
        %2728 = vmatprep.subr.mxu0 0.0
        %2729 = vmatpush1.msra.mxu0 0.0
        %2730 = vmatprep.subr.mxu0 0.0
        %2731 = vmatpush1.msra.mxu0 0.0
        %2732 = vmatprep.subr.mxu0 0.0
        %2733 = vmatpush1.msra.mxu0 0.0
        %2734 = vmatprep.subr.mxu0 0.0
        %2735 = vmatpush1.msra.mxu0 0.0
        %2736 = vmatprep.subr.mxu0 0.0
        %2737 = vmatpush1.msra.mxu0 0.0
        %2738 = vmatprep.subr.mxu0 0.0
        %2739 = vmatpush1.msra.mxu0 0.0
        %2740 = vmatprep.subr.mxu0 0.0
        %2741 = vmatpush1.msra.mxu0 0.0
        %2742 = vmatprep.subr.mxu0 0.0
        %2743 = vmatpush1.msra.mxu0 0.0
        %2744 = vmatprep.subr.mxu0 0.0
        %2745 = vmatpush1.msra.mxu0 0.0
        %2746 = vmatprep.subr.mxu0 0.0
        %2747 = vmatpush1.msra.mxu0 0.0
        %2748 = vmatprep.subr.mxu0 0.0
        %2749 = vmatpush1.msra.mxu0 0.0
        %2750 = vmatprep.subr.mxu0 0.0
        %2751 = vmatpush1.msra.mxu0 0.0
        %2752 = vmatprep.subr.mxu0 0.0
        %2753 = vmatpush1.msra.mxu0 0.0
        %2754 = vmatprep.subr.mxu0 0.0
        %2755 = vmatpush1.msra.mxu0 0.0
        %2756 = vmatprep.subr.mxu0 0.0
        %2757 = vmatpush1.msra.mxu0 0.0
        %2758 = vmatprep.subr.mxu0 0.0
        %2759 = vmatpush1.msra.mxu0 0.0
        %2760 = vmatprep.subr.mxu0 0.0
        %2761 = vmatpush1.msra.mxu0 0.0
        %2762 = vmatprep.subr.mxu0 0.0
        %2763 = vmatpush1.msra.mxu0 0.0
        %2764 = vmatprep.subr.mxu0 0.0
        %2765 = vmatpush1.msra.mxu0 0.0
        %2766 = vmatprep.subr.mxu0 0.0
        %2767 = vmatpush1.msra.mxu0 0.0
        %2768 = vmatprep.subr.mxu0 0.0
        %2769 = vmatpush1.msra.mxu0 0.0
        %2770 = vmatprep.subr.mxu0 0.0
        %2771 = vmatpush1.msra.mxu0 0.0
        %2772 = vmatprep.subr.mxu0 0.0
        %2773 = vmatpush1.msra.mxu0 0.0
        %2774 = vmatprep.subr.mxu0 0.0
        %2775 = vmatpush1.msra.mxu0 0.0
        %2776 = vmatprep.subr.mxu0 0.0
        %2777 = vmatpush1.msra.mxu0 0.0
        %2778 = vmatprep.subr.mxu0 0.0
        %2779 = vmatpush1.msra.mxu0 0.0
        %2780 = vmatprep.subr.mxu0 0.0
        %2781 = vmatpush1.msra.mxu0 0.0
        %2782 = vmatprep.mubr.f32.mxu0 0.0
        %2783 = vmatmul.mubr.f32.gmra.mrb[0].mxu0 %v2714
        %v2784 = vpop.f32.mrb[0].mxu0
        %v2785 = vadd.f32 0.0, %v2784
        %v2786 = vpop.f32.mrb[0].mxu0
        %2787 = vmatprep.mubr.f32.mxu0 0.0
        %2788 = vmatmul.mubr.f32.gmra.mrb[0].mxu0 %v2716
        %v2789 = vpop.f32.mrb[0].mxu0
        %v2790 = vadd.f32 0.0, %v2789
        %v2791 = vpop.f32.mrb[0].mxu0
        %2792 = vdwg.mxu0
        %v2793 = vadd.f32 %v2700, %v2785
        %v2794 = vadd.f32 %v2705, %v2790
        %v2795 = vld [vmem:[%s15] sm:$0x1]
        %v2797 = vlaneseq
        %v2798 = vshrl.u32 %v2797, 7
        %v2799 = vsub.s32 0, %v2798
        %v2800 = vrot.slane %v2795, %v2799
        %v2802 = vadd.f32 %v2793, %v2800
        %v2803 = vadd.f32 %v2794, %v2800
        %vm2804 = vcmask 130049
        %2805 = vst.msk [vmem:[%s655 - $0x1] sm:$0xfe] %vm2804, %v2802
        %vm2806 = vcmask 122880
        %2807 = vst.msk [vmem:[%s655 + $0x7] sm:$0x1] %vm2806, %v2803
        %s2808 = sand.u32 %s410, 1
        %s2809 = scalar_lea.sflag [#allocation5], %s2808
        %s2810 = sand.u32 %s410, 1
        %s2811 = smul.addr %s2810, 8
        %s2812 = scalar_lea.vmem [#allocation14], %s2811
        // Predicated region
        $region109: #{tpu_custom_call.1} parent=83 // pred_check
          %p2813 = pneg %p420
        $region110: #{tpu_custom_call.1} parent=83 // pred_check_branch
          %2815 = sbr.rel (%p2813) target = $region112
        $region111: #{tpu_custom_call.1} parent=83 // pred_region
          %s2817 = ssub.s32 128, 128
          %2818 = vsyncadd %s2809, %s2817
          %s2819 = sadd.s32 %s43, %s42
          %s2820 = smul.addr %s2819, 128
          %s2821 = scalar_lea.hbm %s16, %s2820
          %s2823 = sshll.u32 %s2812, 4
          %s2824 = int_to_ptr.vmem [resolvable:$true] %s2823
          %2826 = dma.vmem_to_hbm [thread:$0]  %s2824, 128, %s2821, %s2809
        $region112: #{tpu_custom_call.1} parent=83 // pred_fallthru
          _
      $region84: #{tpu_custom_call.1} parent=5 // pred_fallthru
        _
      %p2827 = scmp.le.s32.totalorder 2, %s33
      // Predicated region
      $region113: #{tpu_custom_call.1} parent=5 // pred_check
        %p2828 = pneg %p2827
      $region114: #{tpu_custom_call.1} parent=5 // pred_check_branch
        %2830 = sbr.rel (%p2828) target = $region116
      $region115: #{tpu_custom_call.1} parent=5 // pred_region
        %s2831 = ssub.s32 %s33, 2
        // Predicated region
        $region117: #{tpu_custom_call.1} parent=115 // pred_check
          %p2832 = pneg %p426
        $region118: #{tpu_custom_call.1} parent=115 // pred_check_branch
          %2834 = sbr.rel (%p2832) target = $region120
        $region119: #{tpu_custom_call.1} parent=115 // pred_region
          %s2835 = sand.u32 %s411, 1
          %s2836 = scalar_lea.sflag [#allocation5], %s2835
          %s2837 = sand.u32 %s411, 1
          %s2838 = smul.addr %s2837, 8
          %s2839 = scalar_lea.vmem [#allocation14], %s2838
          %2840 = dma.done %s2836, 128
        $region120: #{tpu_custom_call.1} parent=115 // pred_fallthru
          _
      $region116: #{tpu_custom_call.1} parent=5 // pred_fallthru
        _
    $region6: #{tpu_custom_call.1} parent=1 // loop_footer
      %s37 = sadd.s32 1, %s33
    $region7: #{tpu_custom_call.1} parent=1 // loop_footer_branch
      %32 = sbr.rel target = $region3
    $region8: #{tpu_custom_call.1} parent=1 // loop_exit
      _
    %2841 = vsyncpa [#allocation4], 1
    %s2842 = scalar_lea.sflag [#allocation4], 1
    %2843 = vsyncpa %s2842, 1
    %2844 = vsyncpa [#allocation7], 1
    %s2845 = scalar_lea.sflag [#allocation7], 1
    %2846 = vsyncpa %s2845, 1
    %2847 = vsyncpa [#allocation10], 1
    %2848 = vsyncpa [#allocation13], 1
    %2849 = vsyncpa [#allocation5], 1
    %s2850 = scalar_lea.sflag [#allocation5], 1
    %2851 = vsyncpa %s2850, 1

</llo_original>
